<compile_context>
chip_gen: v6e
topology: v6e:2x2x1
jax: 0.10.0
libtpu: 0.0.40
codegen_flags: <defaults>
</compile_context>

<pallas_src>
import functools

import jax
import jax.numpy as jnp
import numpy as np
from jax import lax
from jax.experimental import pallas as pl
from jax.experimental.pallas import tpu as pltpu


# --------------------------------------------------------------------------- #
# Kernel                                                                      #
# --------------------------------------------------------------------------- #
def _coattention_kernel(q2_ref, k2_ref, wqT_ref, bq_ref, wkT_ref, bk_ref,
                        wlT_ref, bl_ref, out_ref, *, tb, q_len, kv_len,
                        dim_q, compute_dtype, fuse_qk, pack_lanes):
    f32 = jnp.float32
    # Grid-invariant weights (constant index_map -> DMA'd once, single-buffered
    # when pl.Buffered(1) is honored).  Weights are already in compute_dtype.
    wqT = wqT_ref[...].astype(compute_dtype)      # (dim_q,  dim_q)
    wkT = wkT_ref[...].astype(compute_dtype)      # (dim_kv, dim_q)
    wlT = wlT_ref[...].astype(compute_dtype)      # (seq_len, dim_q)
    bq = bq_ref[...]                              # (1, dim_q) f32
    bk = bk_ref[...]                              # (1, dim_q) f32
    bl = bl_ref[...]                              # (1, dim_q) f32

    q2 = q2_ref[...].astype(compute_dtype)        # (tb*q_len,  dim_q)
    k2 = k2_ref[...].astype(compute_dtype)        # (tb*kv_len, dim_kv)

    # Whole-tile projections: one MXU matmul each for the full batch tile.
    qp_all = jnp.dot(q2, wqT, preferred_element_type=f32) + bq   # (tb*q_len,  dim_q) f32
    kp_all = jnp.dot(k2, wkT, preferred_element_type=f32) + bk   # (tb*kv_len, dim_q) f32
    # Hoisted casts (JAX does not CSE repeated astype).
    qp_all_c = qp_all.astype(compute_dtype)
    kp_all_c = kp_all.astype(compute_dtype)

    if fuse_qk:
        # Small-dim regime: one MXU push train computes all tb q@k^T products;
        # the off-diagonal blocks are free (tiny matmuls pad to full MXU tiles
        # anyway).  Disabled for large dims in the wrapper.
        qk_all = lax.dot_general(qp_all_c, kp_all_c, (((1,), (1,)), ((), ())),
                                 preferred_element_type=f32)     # (tb*q_len, tb*kv_len)

    for lb in range(tb):                                          # static unroll, tb small
        qs = slice(lb * q_len, (lb + 1) * q_len)
        ks = slice(lb * kv_len, (lb + 1) * kv_len)
        q_b = q2[qs, :]                                           # (q_len,  dim_q)
        kp_c = kp_all_c[ks, :]                                    # (kv_len, dim_q)

        if fuse_qk:
            qk = qk_all[qs, ks]                                   # (q_len, kv_len) f32
        else:
            qk = lax.dot_general(qp_all_c[qs, :], kp_c, (((1,), (1,)), ((), ())),
                                 preferred_element_type=f32)

        # Shared-exp softmax: softmax is shift invariant, so one global max and
        # one exp tile serve both normalizations (overflow-safe: qk - m <= 0).
        m = jnp.max(qk, keepdims=True)
        e = jnp.exp(qk - m)
        s_q = jnp.sum(e, axis=0, keepdims=True)                   # (1, kv_len)
        s_k = jnp.sum(e, axis=1, keepdims=True)                   # (q_len, 1)
        # EUP approximate reciprocal + one Newton step (near-exact, cheap VALU).
        r_q = pl.reciprocal(s_q, approx=True)
        r_q = r_q * (2.0 - s_q * r_q)
        r_k = pl.reciprocal(s_k, approx=True)
        r_k = r_k * (2.0 - s_k * r_k)
        a_q = e * r_q                                             # softmax over q_len  (torch dim=1)
        a_k = e * r_k                                             # softmax over kv_len (torch dim=2)

        c_q = jnp.dot(a_q.astype(compute_dtype), kp_c,
                      preferred_element_type=f32)                 # (q_len, dim_q)

        # attn = cat(q, c_q)^T @ (a_k @ Wl^T) + bl   (== Linear_seq(c_k^T))
        awl = jnp.dot(a_k.astype(compute_dtype), wlT,
                      preferred_element_type=f32)                 # (q_len, dim_q)
        awl_c = awl.astype(compute_dtype)
        attn_top = lax.dot_general(q_b, awl_c, (((0,), (0,)), ((), ())),
                                   preferred_element_type=f32) + bl
        attn_bot = lax.dot_general(c_q.astype(compute_dtype), awl_c,
                                   (((0,), (0,)), ((), ())),
                                   preferred_element_type=f32) + bl

        # Per-iteration stores with static slices: no list accumulation, no
        # concatenate, result tiles do not stay live across the unrolled loop.
        if pack_lanes:
            out_ref[0, 0:dim_q, lb * dim_q:(lb + 1) * dim_q] = attn_top
            out_ref[0, dim_q:2 * dim_q, lb * dim_q:(lb + 1) * dim_q] = attn_bot
        else:
            out_ref[lb, 0:dim_q, :] = attn_top
            out_ref[lb, dim_q:2 * dim_q, :] = attn_bot


# --------------------------------------------------------------------------- #
# Generation-aware sizing helpers                                             #
# --------------------------------------------------------------------------- #
def _vmem_limit_bytes():
    """(vmem_limit_bytes, is_small_vmem_chip).  48 MiB on 64-MiB-VMEM chips
    (v7x), 100 MiB on 128-MiB chips (v5e/v6e)."""
    phys = None
    try:
        phys = int(pltpu.get_tpu_info().vmem_capacity_bytes)
    except Exception:
        phys = None
    if not phys:
        try:
            kind = jax.devices()[0].device_kind.lower()
        except Exception:
            kind = ""
        phys = (64 << 20) if "v7" in kind else (128 << 20)
    is_small = phys <= (64 << 20)
    return ((48 << 20) if is_small else (100 << 20)), is_small


def _choose_tb(b, q_len, kv_len, dim_q, dim_kv, seq_len, in_itemsize,
               ws_budget, prefer_multi_step):
    """Largest batch tile whose per-step working set fits the VMEM budget.
    Prefers divisors of b (avoids the jnp.pad HBM copy of q/k) and, on chips
    with two TensorCores, tiles that keep nb >= 2."""
    hard_cap = max(1, min(b, 64,
                          2048 // max(q_len, 1),
                          4096 // max(kv_len, 1)))

    def ws_bytes(t):
        blocks = 2 * t * (q_len * dim_q + kv_len * dim_kv) * in_itemsize   # dbl-buf inputs
        out_elems = (2 * dim_q) * (t * dim_q) if dim_q < 128 else t * 2 * dim_q * dim_q
        blocks += 2 * out_elems * 4                                        # dbl-buf output
        blocks += 2 * (dim_q + dim_kv + seq_len + 3) * dim_q * 4           # weights (conservative)
        interm = 2 * t * (q_len + kv_len) * dim_q * 4                      # qp/kp + casts
        interm += (min(t * q_len, 512) * min(t * kv_len, 512)
                   + 3 * q_len * kv_len) * 4                               # qk(_all)/e/a_q/a_k
        return blocks + interm

    def layout_ok(t):
        # Sublane constraint on the flattened (tb*len, dim) blocks, unless the
        # block covers the whole flattened array (t == b, no padding).
        if t == b:
            return True
        return (t * q_len) % 8 == 0 and (t * kv_len) % 8 == 0

    def ok(t):
        return t <= hard_cap and layout_ok(t) and ws_bytes(t) <= ws_budget

    divs = [t for t in range(1, b + 1) if b % t == 0 and ok(t)]
    cands = divs or [t for t in range(1, b + 1) if ok(t)]
    if not cands:
        cands = [min(t for t in range(1, b + 1) if layout_ok(t))]
    if prefer_multi_step:
        multi = [t for t in cands if -(-b // t) >= 2]
        if multi:
            return max(multi)
    return max(cands)


# --------------------------------------------------------------------------- #
# Wrapper                                                                     #
# --------------------------------------------------------------------------- #
def coattention_pallas(q, k, params, v=None, mask=None, *, batch_tile=None,
                       compute_dtype=jnp.bfloat16):
    # `v` and `mask` are accepted for signature parity with the PyTorch module
    # but its forward never uses them.
    del v, mask
    compute_dtype = jnp.dtype(compute_dtype)
    b, q_len, dim_q = q.shape
    _, kv_len, dim_kv = k.shape
    wq, bq, wk, bk, wl, bl = params
    seq_len = wl.shape[1]
    assert kv_len == seq_len, "kv_len must equal seq_len (as in the PyTorch module)"

    vmem_limit, is_small_vmem = _vmem_limit_bytes()
    if batch_tile is not None:
        tb = int(batch_tile)
    else:
        tb = _choose_tb(b, q_len, kv_len, dim_q, dim_kv, seq_len,
                        in_itemsize=compute_dtype.itemsize,
                        ws_budget=vmem_limit // 2,
                        prefer_multi_step=is_small_vmem)
    nb = pl.cdiv(b, tb)
    b_pad = nb * tb
    if b_pad != b:
        # Only reached when no divisor of b satisfies layout/VMEM constraints.
        pad = b_pad - b
        q = jnp.pad(q, ((0, pad), (0, 0), (0, 0)))
        k = jnp.pad(k, ((0, pad), (0, 0), (0, 0)))

    # Flatten (batch, len) so both projections are single matmuls per grid step.
    # Casting the streamed inputs to compute_dtype here (bf16 default) halves
    # their HBM read traffic and VMEM blocks; matmul operands are cast to
    # compute_dtype in-kernel anyway, so this is numerically identical.
    q2 = q.reshape(b_pad * q_len, dim_q).astype(compute_dtype)
    k2 = k.reshape(b_pad * kv_len, dim_kv).astype(compute_dtype)

    # Pre-transpose weights once on the wrapper side (no per-step XLU work).
    wqT = wq.T.astype(compute_dtype)                          # (dim_q,  dim_q)
    wkT = wk.T.astype(compute_dtype)                          # (dim_kv, dim_q)
    wlT = wl.T.astype(compute_dtype)                          # (seq_len, dim_q)
    bq2 = jnp.asarray(bq, jnp.float32).reshape(1, dim_q)
    bk2 = jnp.asarray(bk, jnp.float32).reshape(1, dim_q)
    bl2 = jnp.asarray(bl, jnp.float32).reshape(1, dim_q)

    # Lane-packed output only when dim_q is below a lane (128); otherwise the
    # natural layout is already lane-dense and the wrapper unpack pass is waste.
    pack_lanes = dim_q < 128
    fuse_qk = (dim_q < 128 and q_len < 128 and kv_len < 128
               and tb * q_len <= 512 and tb * kv_len <= 512)

    kernel = functools.partial(
        _coattention_kernel, tb=tb, q_len=q_len, kv_len=kv_len, dim_q=dim_q,
        compute_dtype=compute_dtype, fuse_qk=fuse_qk, pack_lanes=pack_lanes)

    if pack_lanes:
        out_shape = jax.ShapeDtypeStruct((nb, 2 * dim_q, tb * dim_q), jnp.float32)
        out_spec = pl.BlockSpec((1, 2 * dim_q, tb * dim_q), lambda i: (i, 0, 0))
    else:
        out_shape = jax.ShapeDtypeStruct((b_pad, 2 * dim_q, dim_q), jnp.float32)
        out_spec = pl.BlockSpec((tb, 2 * dim_q, dim_q), lambda i: (i, 0, 0))

    def build_call(single_buffer_weights):
        const2 = lambda i: (0, 0)

        def wspec(shape):
            if single_buffer_weights:
                # Grid-invariant blocks never need double buffering; reclaiming
                # the second copy buys VMEM headroom (biggest win on v7x/v5e).
                return pl.BlockSpec(shape, const2, pipeline_mode=pl.Buffered(1))
            return pl.BlockSpec(shape, const2)

        in_specs = [
            pl.BlockSpec((tb * q_len, dim_q), lambda i: (i, 0)),
            pl.BlockSpec((tb * kv_len, dim_kv), lambda i: (i, 0)),
            wspec((dim_q, dim_q)),
            wspec((1, dim_q)),
            wspec((dim_kv, dim_q)),
            wspec((1, dim_q)),
            wspec((seq_len, dim_q)),
            wspec((1, dim_q)),
        ]
        grid_spec = pltpu.PrefetchScalarGridSpec(
            num_scalar_prefetch=0, grid=(nb,),
            in_specs=in_specs, out_specs=out_spec)
        return pl.pallas_call(
            kernel,
            out_shape=out_shape,
            grid_spec=grid_spec,
            compiler_params=pltpu.CompilerParams(
                dimension_semantics=("parallel",),
                vmem_limit_bytes=vmem_limit))

    args = (q2, k2, wqT, bq2, wkT, bk2, wlT, bl2)
    try:
        out_raw = build_call(True)(*args)
    except Exception:
        # Fallback for JAX versions where BlockSpec.pipeline_mode / pl.Buffered
        # is not supported at the pallas_call level: default double buffering.
        out_raw = build_call(False)(*args)

    if pack_lanes:
        out = out_raw.reshape(nb, 2 * dim_q, tb, dim_q)
        out = jnp.transpose(out, (0, 2, 1, 3)).reshape(b_pad, 2 * dim_q, dim_q)
    else:
        out = out_raw
    return out[:b]


# --------------------------------------------------------------------------- #
# Pure-JAX reference (matches the PyTorch forward exactly)                    #
# --------------------------------------------------------------------------- #
def coattention_ref(q, k, params):
    wq, bq, wk, bk, wl, bl = params
    q_proj = jnp.einsum("bld,od->blo", q, wq) + bq            # (b, q_len, dim_q)
    k_proj = jnp.einsum("bld,od->blo", k, wk) + bk            # (b, kv_len, dim_q)
    qk = jnp.einsum("bqd,bkd->bqk", q_proj, k_proj)           # (b, q_len, kv_len)
    a_q = jax.nn.softmax(qk, axis=1)
    a_k = jax.nn.softmax(qk, axis=2)
    c_q = jnp.einsum("bqk,bkd->bqd", a_q, k_proj)             # (b, q_len, dim_q)
    cat = jnp.concatenate([q, c_q], axis=2)                   # (b, q_len, 2*dim_q)
    c_k = jnp.einsum("bqk,bqd->bkd", a_k, cat)                # (b, kv_len, 2*dim_q)
    attn = jnp.einsum("bkd,ok->bdo", c_k, wl) + bl            # (b, 2*dim_q, dim_q)
    return attn


if __name__ == "__main__":
    # Small shapes consistent with the module (kv_len must equal seq_len).
    B, Q_LEN, DIM_Q = 4, 8, 8
    KV_LEN, DIM_KV = 16, 32
    SEQ_LEN = KV_LEN

    key = jax.random.PRNGKey(0)
    kq, kk, p1, p2, p3, p4, p5, p6 = jax.random.split(key, 8)

    q = jax.random.normal(kq, (B, Q_LEN, DIM_Q), dtype=jnp.float32)
    k = jax.random.normal(kk, (B, KV_LEN, DIM_KV), dtype=jnp.float32)

    # torch.nn.Linear weight layout: (out_features, in_features).
    wq = jax.random.normal(p1, (DIM_Q, DIM_Q), dtype=jnp.float32) * 0.1
    bq = jax.random.normal(p2, (1, DIM_Q), dtype=jnp.float32) * 0.1
    wk = jax.random.normal(p3, (DIM_Q, DIM_KV), dtype=jnp.float32) * 0.1
    bk = jax.random.normal(p4, (1, DIM_Q), dtype=jnp.float32) * 0.1
    wl = jax.random.normal(p5, (DIM_Q, SEQ_LEN), dtype=jnp.float32) * 0.1
    bl = jax.random.normal(p6, (1, DIM_Q), dtype=jnp.float32) * 0.1
    params = (wq, bq, wk, bk, wl, bl)

    ref = jax.block_until_ready(coattention_ref(q, k, params))

    # f32 compute path: tight check against the pure-JAX reference.
    out_f32 = jax.block_until_ready(
        coattention_pallas(q, k, params, compute_dtype=jnp.float32))
    np.testing.assert_allclose(np.asarray(out_f32), np.asarray(ref),
                               rtol=1e-3, atol=1e-3)

    # Default bf16-MXU path (f32 accumulation, f32 softmax math): expected
    # ~1e-2 relative deviation from the f32 reference, so loose tolerance.
    out_bf16 = jax.block_until_ready(coattention_pallas(q, k, params))
    np.testing.assert_allclose(np.asarray(out_bf16), np.asarray(ref),
                               rtol=1e-1, atol=1e-1)

    print("KERNEL_OK")
</pallas_src>

<mosaic_0001>
module attributes {stable_mosaic.version = 11 : i64} {
  func.func @_coattention_kernel(%arg0: i32, %arg1: memref<32x8xf32, #tpu.memory_space<vmem>>, %arg2: memref<64x32xf32, #tpu.memory_space<vmem>>, %arg3: memref<8x8xf32, #tpu.memory_space<vmem>>, %arg4: memref<1x8xf32, #tpu.memory_space<vmem>>, %arg5: memref<32x8xf32, #tpu.memory_space<vmem>>, %arg6: memref<1x8xf32, #tpu.memory_space<vmem>>, %arg7: memref<16x8xf32, #tpu.memory_space<vmem>>, %arg8: memref<1x8xf32, #tpu.memory_space<vmem>>, %arg9: memref<1x16x32xf32, #tpu.memory_space<vmem>>) attributes {dimension_semantics = [#tpu.dimension_semantics<parallel>], iteration_bounds = array<i64: 1>, scalar_prefetch = 0 : i64, scratch_operands = 0 : i64, tpu.core_type = #tpu.core_type<tc>, window_params = [{transform_indices = @transform_0, window_bounds = array<i64: 32, 8>}, {transform_indices = @transform_1, window_bounds = array<i64: 64, 32>}, {pipeline_mode = #tpu.pipeline_mode<synchronous>, transform_indices = @transform_2, window_bounds = array<i64: 8, 8>}, {pipeline_mode = #tpu.pipeline_mode<synchronous>, transform_indices = @transform_3, window_bounds = array<i64: 1, 8>}, {pipeline_mode = #tpu.pipeline_mode<synchronous>, transform_indices = @transform_4, window_bounds = array<i64: 32, 8>}, {pipeline_mode = #tpu.pipeline_mode<synchronous>, transform_indices = @transform_5, window_bounds = array<i64: 1, 8>}, {pipeline_mode = #tpu.pipeline_mode<synchronous>, transform_indices = @transform_6, window_bounds = array<i64: 16, 8>}, {pipeline_mode = #tpu.pipeline_mode<synchronous>, transform_indices = @transform_7, window_bounds = array<i64: 1, 8>}, {transform_indices = @transform_8, window_bounds = array<i64: 1, 16, 32>}]} {
    %c0 = arith.constant 0 : index
    %c0_0 = arith.constant 0 : index
    %0 = vector.load %arg3[%c0, %c0_0] : memref<8x8xf32, #tpu.memory_space<vmem>>, vector<8x8xf32>
    %c0_1 = arith.constant 0 : index
    %c0_2 = arith.constant 0 : index
    %1 = vector.load %arg5[%c0_1, %c0_2] : memref<32x8xf32, #tpu.memory_space<vmem>>, vector<32x8xf32>
    %c0_3 = arith.constant 0 : index
    %c0_4 = arith.constant 0 : index
    %2 = vector.load %arg7[%c0_3, %c0_4] : memref<16x8xf32, #tpu.memory_space<vmem>>, vector<16x8xf32>
    %c0_5 = arith.constant 0 : index
    %c0_6 = arith.constant 0 : index
    %3 = vector.load %arg4[%c0_5, %c0_6] : memref<1x8xf32, #tpu.memory_space<vmem>>, vector<1x8xf32>
    %c0_7 = arith.constant 0 : index
    %c0_8 = arith.constant 0 : index
    %4 = vector.load %arg6[%c0_7, %c0_8] : memref<1x8xf32, #tpu.memory_space<vmem>>, vector<1x8xf32>
    %c0_9 = arith.constant 0 : index
    %c0_10 = arith.constant 0 : index
    %5 = vector.load %arg8[%c0_9, %c0_10] : memref<1x8xf32, #tpu.memory_space<vmem>>, vector<1x8xf32>
    %c0_11 = arith.constant 0 : index
    %c0_12 = arith.constant 0 : index
    %6 = vector.load %arg1[%c0_11, %c0_12] : memref<32x8xf32, #tpu.memory_space<vmem>>, vector<32x8xf32>
    %c0_13 = arith.constant 0 : index
    %c0_14 = arith.constant 0 : index
    %7 = vector.load %arg2[%c0_13, %c0_14] : memref<64x32xf32, #tpu.memory_space<vmem>>, vector<64x32xf32>
    %cst = arith.constant dense<0.000000e+00> : vector<32x8xf32>
    %8 = tpu.matmul %6, %0, %cst {dimension_numbers = #tpu.dot_dimension_numbers<[1], [0], [0], [1], [0, 0, 1, 1], [], []>} : vector<32x8xf32>, vector<8x8xf32>, vector<32x8xf32> -> vector<32x8xf32>
    %9 = vector.broadcast %3 : vector<1x8xf32> to vector<32x8xf32>
    %10 = arith.addf %8, %9 : vector<32x8xf32>
    %cst_15 = arith.constant dense<0.000000e+00> : vector<64x8xf32>
    %11 = tpu.matmul %7, %1, %cst_15 {dimension_numbers = #tpu.dot_dimension_numbers<[1], [0], [0], [1], [0, 0, 1, 1], [], []>} : vector<64x32xf32>, vector<32x8xf32>, vector<64x8xf32> -> vector<64x8xf32>
    %12 = vector.broadcast %4 : vector<1x8xf32> to vector<64x8xf32>
    %13 = arith.addf %11, %12 : vector<64x8xf32>
    %cst_16 = arith.constant dense<0.000000e+00> : vector<32x64xf32>
    %14 = tpu.matmul %10, %13, %cst_16 {dimension_numbers = #tpu.dot_dimension_numbers<[1], [1], [0], [0], [0, 0, 1, 0], [], []>} : vector<32x8xf32>, vector<64x8xf32>, vector<32x64xf32> -> vector<32x64xf32>
    %15 = vector.extract_strided_slice %6 {offsets = [0, 0], sizes = [8, 8], strides = [1, 1]} : vector<32x8xf32> to vector<8x8xf32>
    %16 = vector.extract_strided_slice %13 {offsets = [0, 0], sizes = [16, 8], strides = [1, 1]} : vector<64x8xf32> to vector<16x8xf32>
    %17 = vector.extract_strided_slice %14 {offsets = [0, 0], sizes = [8, 16], strides = [1, 1]} : vector<32x64xf32> to vector<8x16xf32>
    %18 = vector.shape_cast %17 : vector<8x16xf32> to vector<1x8x16xf32>
    %cst_17 = arith.constant dense<0xFF800000> : vector<1xf32>
    %19 = vector.multi_reduction <maximumf>, %18, %cst_17 [1, 2] : vector<1x8x16xf32> to vector<1xf32>
    %20 = vector.shape_cast %19 : vector<1xf32> to vector<1x1x1xf32>
    %21 = vector.extract %20[0, 0, 0] : f32 from vector<1x1x1xf32>
    %22 = vector.broadcast %21 : f32 to vector<1x1xf32>
    %23 = vector.broadcast %22 : vector<1x1xf32> to vector<8x16xf32>
    %24 = arith.subf %17, %23 : vector<8x16xf32>
    %25 = math.exp %24 : vector<8x16xf32>
    %cst_18 = arith.constant dense<0.000000e+00> : vector<16xf32>
    %26 = vector.multi_reduction <add>, %25, %cst_18 [0] : vector<8x16xf32> to vector<16xf32>
    %27 = vector.shape_cast %26 : vector<16xf32> to vector<1x16xf32>
    %cst_19 = arith.constant dense<0.000000e+00> : vector<8xf32>
    %28 = vector.multi_reduction <add>, %25, %cst_19 [1] : vector<8x16xf32> to vector<8xf32>
    %29 = vector.shape_cast %28 : vector<8xf32> to vector<8x1xf32>
    %30 = tpu.reciprocal %27 {approx = true} : vector<1x16xf32> -> vector<1x16xf32>
    %31 = arith.mulf %27, %30 : vector<1x16xf32>
    %cst_20 = arith.constant 2.000000e+00 : f32
    %32 = vector.broadcast %cst_20 : f32 to vector<1x16xf32>
    %33 = arith.subf %32, %31 : vector<1x16xf32>
    %34 = arith.mulf %30, %33 : vector<1x16xf32>
    %35 = tpu.reciprocal %29 {approx = true} : vector<8x1xf32> -> vector<8x1xf32>
    %36 = arith.mulf %29, %35 : vector<8x1xf32>
    %cst_21 = arith.constant 2.000000e+00 : f32
    %37 = vector.broadcast %cst_21 : f32 to vector<8x1xf32>
    %38 = arith.subf %37, %36 : vector<8x1xf32>
    %39 = arith.mulf %35, %38 : vector<8x1xf32>
    %40 = vector.broadcast %34 : vector<1x16xf32> to vector<8x16xf32>
    %41 = arith.mulf %25, %40 : vector<8x16xf32>
    %42 = vector.broadcast %39 : vector<8x1xf32> to vector<8x16xf32>
    %43 = arith.mulf %25, %42 : vector<8x16xf32>
    %cst_22 = arith.constant dense<0.000000e+00> : vector<8x8xf32>
    %44 = tpu.matmul %41, %16, %cst_22 {dimension_numbers = #tpu.dot_dimension_numbers<[1], [0], [0], [1], [0, 0, 1, 1], [], []>} : vector<8x16xf32>, vector<16x8xf32>, vector<8x8xf32> -> vector<8x8xf32>
    %cst_23 = arith.constant dense<0.000000e+00> : vector<8x8xf32>
    %45 = tpu.matmul %43, %2, %cst_23 {dimension_numbers = #tpu.dot_dimension_numbers<[1], [0], [0], [1], [0, 0, 1, 1], [], []>} : vector<8x16xf32>, vector<16x8xf32>, vector<8x8xf32> -> vector<8x8xf32>
    %cst_24 = arith.constant dense<0.000000e+00> : vector<8x8xf32>
    %46 = tpu.matmul %15, %45, %cst_24 {dimension_numbers = #tpu.dot_dimension_numbers<[0], [0], [1], [1], [0, 1, 1, 1], [], []>} : vector<8x8xf32>, vector<8x8xf32>, vector<8x8xf32> -> vector<8x8xf32>
    %47 = vector.broadcast %5 : vector<1x8xf32> to vector<8x8xf32>
    %48 = arith.addf %46, %47 : vector<8x8xf32>
    %cst_25 = arith.constant dense<0.000000e+00> : vector<8x8xf32>
    %49 = tpu.matmul %44, %45, %cst_25 {dimension_numbers = #tpu.dot_dimension_numbers<[0], [0], [1], [1], [0, 1, 1, 1], [], []>} : vector<8x8xf32>, vector<8x8xf32>, vector<8x8xf32> -> vector<8x8xf32>
    %50 = vector.broadcast %5 : vector<1x8xf32> to vector<8x8xf32>
    %51 = arith.addf %49, %50 : vector<8x8xf32>
    %c0_26 = arith.constant 0 : index
    %c0_27 = arith.constant 0 : index
    %c0_28 = arith.constant 0 : index
    %52 = vector.load %arg9[%c0_26, %c0_27, %c0_28] : memref<1x16x32xf32, #tpu.memory_space<vmem>>, vector<1x8x8xf32>
    %53 = vector.shape_cast %52 : vector<1x8x8xf32> to vector<8x8xf32>
    %54 = vector.shape_cast %48 : vector<8x8xf32> to vector<1x8x8xf32>
    tpu.vector_store %arg9[%c0_26, %c0_27, %c0_28], %54 {strides = array<i32>} : memref<1x16x32xf32, #tpu.memory_space<vmem>>, vector<1x8x8xf32>,
    %c0_29 = arith.constant 0 : index
    %c8 = arith.constant 8 : index
    %c0_30 = arith.constant 0 : index
    %55 = vector.load %arg9[%c0_29, %c8, %c0_30] : memref<1x16x32xf32, #tpu.memory_space<vmem>>, vector<1x8x8xf32>
    %56 = vector.shape_cast %55 : vector<1x8x8xf32> to vector<8x8xf32>
    %57 = vector.shape_cast %51 : vector<8x8xf32> to vector<1x8x8xf32>
    tpu.vector_store %arg9[%c0_29, %c8, %c0_30], %57 {strides = array<i32>} : memref<1x16x32xf32, #tpu.memory_space<vmem>>, vector<1x8x8xf32>,
    %58 = vector.extract_strided_slice %6 {offsets = [8, 0], sizes = [8, 8], strides = [1, 1]} : vector<32x8xf32> to vector<8x8xf32>
    %59 = vector.extract_strided_slice %13 {offsets = [16, 0], sizes = [16, 8], strides = [1, 1]} : vector<64x8xf32> to vector<16x8xf32>
    %60 = vector.extract_strided_slice %14 {offsets = [8, 16], sizes = [8, 16], strides = [1, 1]} : vector<32x64xf32> to vector<8x16xf32>
    %61 = vector.shape_cast %60 : vector<8x16xf32> to vector<1x8x16xf32>
    %cst_31 = arith.constant dense<0xFF800000> : vector<1xf32>
    %62 = vector.multi_reduction <maximumf>, %61, %cst_31 [1, 2] : vector<1x8x16xf32> to vector<1xf32>
    %63 = vector.shape_cast %62 : vector<1xf32> to vector<1x1x1xf32>
    %64 = vector.extract %63[0, 0, 0] : f32 from vector<1x1x1xf32>
    %65 = vector.broadcast %64 : f32 to vector<1x1xf32>
    %66 = vector.broadcast %65 : vector<1x1xf32> to vector<8x16xf32>
    %67 = arith.subf %60, %66 : vector<8x16xf32>
    %68 = math.exp %67 : vector<8x16xf32>
    %cst_32 = arith.constant dense<0.000000e+00> : vector<16xf32>
    %69 = vector.multi_reduction <add>, %68, %cst_32 [0] : vector<8x16xf32> to vector<16xf32>
    %70 = vector.shape_cast %69 : vector<16xf32> to vector<1x16xf32>
    %cst_33 = arith.constant dense<0.000000e+00> : vector<8xf32>
    %71 = vector.multi_reduction <add>, %68, %cst_33 [1] : vector<8x16xf32> to vector<8xf32>
    %72 = vector.shape_cast %71 : vector<8xf32> to vector<8x1xf32>
    %73 = tpu.reciprocal %70 {approx = true} : vector<1x16xf32> -> vector<1x16xf32>
    %74 = arith.mulf %70, %73 : vector<1x16xf32>
    %cst_34 = arith.constant 2.000000e+00 : f32
    %75 = vector.broadcast %cst_34 : f32 to vector<1x16xf32>
    %76 = arith.subf %75, %74 : vector<1x16xf32>
    %77 = arith.mulf %73, %76 : vector<1x16xf32>
    %78 = tpu.reciprocal %72 {approx = true} : vector<8x1xf32> -> vector<8x1xf32>
    %79 = arith.mulf %72, %78 : vector<8x1xf32>
    %cst_35 = arith.constant 2.000000e+00 : f32
    %80 = vector.broadcast %cst_35 : f32 to vector<8x1xf32>
    %81 = arith.subf %80, %79 : vector<8x1xf32>
    %82 = arith.mulf %78, %81 : vector<8x1xf32>
    %83 = vector.broadcast %77 : vector<1x16xf32> to vector<8x16xf32>
    %84 = arith.mulf %68, %83 : vector<8x16xf32>
    %85 = vector.broadcast %82 : vector<8x1xf32> to vector<8x16xf32>
    %86 = arith.mulf %68, %85 : vector<8x16xf32>
    %cst_36 = arith.constant dense<0.000000e+00> : vector<8x8xf32>
    %87 = tpu.matmul %84, %59, %cst_36 {dimension_numbers = #tpu.dot_dimension_numbers<[1], [0], [0], [1], [0, 0, 1, 1], [], []>} : vector<8x16xf32>, vector<16x8xf32>, vector<8x8xf32> -> vector<8x8xf32>
    %cst_37 = arith.constant dense<0.000000e+00> : vector<8x8xf32>
    %88 = tpu.matmul %86, %2, %cst_37 {dimension_numbers = #tpu.dot_dimension_numbers<[1], [0], [0], [1], [0, 0, 1, 1], [], []>} : vector<8x16xf32>, vector<16x8xf32>, vector<8x8xf32> -> vector<8x8xf32>
    %cst_38 = arith.constant dense<0.000000e+00> : vector<8x8xf32>
    %89 = tpu.matmul %58, %88, %cst_38 {dimension_numbers = #tpu.dot_dimension_numbers<[0], [0], [1], [1], [0, 1, 1, 1], [], []>} : vector<8x8xf32>, vector<8x8xf32>, vector<8x8xf32> -> vector<8x8xf32>
    %90 = vector.broadcast %5 : vector<1x8xf32> to vector<8x8xf32>
    %91 = arith.addf %89, %90 : vector<8x8xf32>
    %cst_39 = arith.constant dense<0.000000e+00> : vector<8x8xf32>
    %92 = tpu.matmul %87, %88, %cst_39 {dimension_numbers = #tpu.dot_dimension_numbers<[0], [0], [1], [1], [0, 1, 1, 1], [], []>} : vector<8x8xf32>, vector<8x8xf32>, vector<8x8xf32> -> vector<8x8xf32>
    %93 = vector.broadcast %5 : vector<1x8xf32> to vector<8x8xf32>
    %94 = arith.addf %92, %93 : vector<8x8xf32>
    %c0_40 = arith.constant 0 : index
    %c0_41 = arith.constant 0 : index
    %c8_42 = arith.constant 8 : index
    %95 = vector.load %arg9[%c0_40, %c0_41, %c8_42] : memref<1x16x32xf32, #tpu.memory_space<vmem>>, vector<1x8x8xf32>
    %96 = vector.shape_cast %95 : vector<1x8x8xf32> to vector<8x8xf32>
    %97 = vector.shape_cast %91 : vector<8x8xf32> to vector<1x8x8xf32>
    tpu.vector_store %arg9[%c0_40, %c0_41, %c8_42], %97 {strides = array<i32>} : memref<1x16x32xf32, #tpu.memory_space<vmem>>, vector<1x8x8xf32>,
    %c0_43 = arith.constant 0 : index
    %c8_44 = arith.constant 8 : index
    %c8_45 = arith.constant 8 : index
    %98 = vector.load %arg9[%c0_43, %c8_44, %c8_45] : memref<1x16x32xf32, #tpu.memory_space<vmem>>, vector<1x8x8xf32>
    %99 = vector.shape_cast %98 : vector<1x8x8xf32> to vector<8x8xf32>
    %100 = vector.shape_cast %94 : vector<8x8xf32> to vector<1x8x8xf32>
    tpu.vector_store %arg9[%c0_43, %c8_44, %c8_45], %100 {strides = array<i32>} : memref<1x16x32xf32, #tpu.memory_space<vmem>>, vector<1x8x8xf32>,
    %101 = vector.extract_strided_slice %6 {offsets = [16, 0], sizes = [8, 8], strides = [1, 1]} : vector<32x8xf32> to vector<8x8xf32>
    %102 = vector.extract_strided_slice %13 {offsets = [32, 0], sizes = [16, 8], strides = [1, 1]} : vector<64x8xf32> to vector<16x8xf32>
    %103 = vector.extract_strided_slice %14 {offsets = [16, 32], sizes = [8, 16], strides = [1, 1]} : vector<32x64xf32> to vector<8x16xf32>
    %104 = vector.shape_cast %103 : vector<8x16xf32> to vector<1x8x16xf32>
    %cst_46 = arith.constant dense<0xFF800000> : vector<1xf32>
    %105 = vector.multi_reduction <maximumf>, %104, %cst_46 [1, 2] : vector<1x8x16xf32> to vector<1xf32>
    %106 = vector.shape_cast %105 : vector<1xf32> to vector<1x1x1xf32>
    %107 = vector.extract %106[0, 0, 0] : f32 from vector<1x1x1xf32>
    %108 = vector.broadcast %107 : f32 to vector<1x1xf32>
    %109 = vector.broadcast %108 : vector<1x1xf32> to vector<8x16xf32>
    %110 = arith.subf %103, %109 : vector<8x16xf32>
    %111 = math.exp %110 : vector<8x16xf32>
    %cst_47 = arith.constant dense<0.000000e+00> : vector<16xf32>
    %112 = vector.multi_reduction <add>, %111, %cst_47 [0] : vector<8x16xf32> to vector<16xf32>
    %113 = vector.shape_cast %112 : vector<16xf32> to vector<1x16xf32>
    %cst_48 = arith.constant dense<0.000000e+00> : vector<8xf32>
    %114 = vector.multi_reduction <add>, %111, %cst_48 [1] : vector<8x16xf32> to vector<8xf32>
    %115 = vector.shape_cast %114 : vector<8xf32> to vector<8x1xf32>
    %116 = tpu.reciprocal %113 {approx = true} : vector<1x16xf32> -> vector<1x16xf32>
    %117 = arith.mulf %113, %116 : vector<1x16xf32>
    %cst_49 = arith.constant 2.000000e+00 : f32
    %118 = vector.broadcast %cst_49 : f32 to vector<1x16xf32>
    %119 = arith.subf %118, %117 : vector<1x16xf32>
    %120 = arith.mulf %116, %119 : vector<1x16xf32>
    %121 = tpu.reciprocal %115 {approx = true} : vector<8x1xf32> -> vector<8x1xf32>
    %122 = arith.mulf %115, %121 : vector<8x1xf32>
    %cst_50 = arith.constant 2.000000e+00 : f32
    %123 = vector.broadcast %cst_50 : f32 to vector<8x1xf32>
    %124 = arith.subf %123, %122 : vector<8x1xf32>
    %125 = arith.mulf %121, %124 : vector<8x1xf32>
    %126 = vector.broadcast %120 : vector<1x16xf32> to vector<8x16xf32>
    %127 = arith.mulf %111, %126 : vector<8x16xf32>
    %128 = vector.broadcast %125 : vector<8x1xf32> to vector<8x16xf32>
    %129 = arith.mulf %111, %128 : vector<8x16xf32>
    %cst_51 = arith.constant dense<0.000000e+00> : vector<8x8xf32>
    %130 = tpu.matmul %127, %102, %cst_51 {dimension_numbers = #tpu.dot_dimension_numbers<[1], [0], [0], [1], [0, 0, 1, 1], [], []>} : vector<8x16xf32>, vector<16x8xf32>, vector<8x8xf32> -> vector<8x8xf32>
    %cst_52 = arith.constant dense<0.000000e+00> : vector<8x8xf32>
    %131 = tpu.matmul %129, %2, %cst_52 {dimension_numbers = #tpu.dot_dimension_numbers<[1], [0], [0], [1], [0, 0, 1, 1], [], []>} : vector<8x16xf32>, vector<16x8xf32>, vector<8x8xf32> -> vector<8x8xf32>
    %cst_53 = arith.constant dense<0.000000e+00> : vector<8x8xf32>
    %132 = tpu.matmul %101, %131, %cst_53 {dimension_numbers = #tpu.dot_dimension_numbers<[0], [0], [1], [1], [0, 1, 1, 1], [], []>} : vector<8x8xf32>, vector<8x8xf32>, vector<8x8xf32> -> vector<8x8xf32>
    %133 = vector.broadcast %5 : vector<1x8xf32> to vector<8x8xf32>
    %134 = arith.addf %132, %133 : vector<8x8xf32>
    %cst_54 = arith.constant dense<0.000000e+00> : vector<8x8xf32>
    %135 = tpu.matmul %130, %131, %cst_54 {dimension_numbers = #tpu.dot_dimension_numbers<[0], [0], [1], [1], [0, 1, 1, 1], [], []>} : vector<8x8xf32>, vector<8x8xf32>, vector<8x8xf32> -> vector<8x8xf32>
    %136 = vector.broadcast %5 : vector<1x8xf32> to vector<8x8xf32>
    %137 = arith.addf %135, %136 : vector<8x8xf32>
    %c0_55 = arith.constant 0 : index
    %c0_56 = arith.constant 0 : index
    %c16 = arith.constant 16 : index
    %138 = vector.load %arg9[%c0_55, %c0_56, %c16] : memref<1x16x32xf32, #tpu.memory_space<vmem>>, vector<1x8x8xf32>
    %139 = vector.shape_cast %138 : vector<1x8x8xf32> to vector<8x8xf32>
    %140 = vector.shape_cast %134 : vector<8x8xf32> to vector<1x8x8xf32>
    tpu.vector_store %arg9[%c0_55, %c0_56, %c16], %140 {strides = array<i32>} : memref<1x16x32xf32, #tpu.memory_space<vmem>>, vector<1x8x8xf32>,
    %c0_57 = arith.constant 0 : index
    %c8_58 = arith.constant 8 : index
    %c16_59 = arith.constant 16 : index
    %141 = vector.load %arg9[%c0_57, %c8_58, %c16_59] : memref<1x16x32xf32, #tpu.memory_space<vmem>>, vector<1x8x8xf32>
    %142 = vector.shape_cast %141 : vector<1x8x8xf32> to vector<8x8xf32>
    %143 = vector.shape_cast %137 : vector<8x8xf32> to vector<1x8x8xf32>
    tpu.vector_store %arg9[%c0_57, %c8_58, %c16_59], %143 {strides = array<i32>} : memref<1x16x32xf32, #tpu.memory_space<vmem>>, vector<1x8x8xf32>,
    %144 = vector.extract_strided_slice %6 {offsets = [24, 0], sizes = [8, 8], strides = [1, 1]} : vector<32x8xf32> to vector<8x8xf32>
    %145 = vector.extract_strided_slice %13 {offsets = [48, 0], sizes = [16, 8], strides = [1, 1]} : vector<64x8xf32> to vector<16x8xf32>
    %146 = vector.extract_strided_slice %14 {offsets = [24, 48], sizes = [8, 16], strides = [1, 1]} : vector<32x64xf32> to vector<8x16xf32>
    %147 = vector.shape_cast %146 : vector<8x16xf32> to vector<1x8x16xf32>
    %cst_60 = arith.constant dense<0xFF800000> : vector<1xf32>
    %148 = vector.multi_reduction <maximumf>, %147, %cst_60 [1, 2] : vector<1x8x16xf32> to vector<1xf32>
    %149 = vector.shape_cast %148 : vector<1xf32> to vector<1x1x1xf32>
    %150 = vector.extract %149[0, 0, 0] : f32 from vector<1x1x1xf32>
    %151 = vector.broadcast %150 : f32 to vector<1x1xf32>
    %152 = vector.broadcast %151 : vector<1x1xf32> to vector<8x16xf32>
    %153 = arith.subf %146, %152 : vector<8x16xf32>
    %154 = math.exp %153 : vector<8x16xf32>
    %cst_61 = arith.constant dense<0.000000e+00> : vector<16xf32>
    %155 = vector.multi_reduction <add>, %154, %cst_61 [0] : vector<8x16xf32> to vector<16xf32>
    %156 = vector.shape_cast %155 : vector<16xf32> to vector<1x16xf32>
    %cst_62 = arith.constant dense<0.000000e+00> : vector<8xf32>
    %157 = vector.multi_reduction <add>, %154, %cst_62 [1] : vector<8x16xf32> to vector<8xf32>
    %158 = vector.shape_cast %157 : vector<8xf32> to vector<8x1xf32>
    %159 = tpu.reciprocal %156 {approx = true} : vector<1x16xf32> -> vector<1x16xf32>
    %160 = arith.mulf %156, %159 : vector<1x16xf32>
    %cst_63 = arith.constant 2.000000e+00 : f32
    %161 = vector.broadcast %cst_63 : f32 to vector<1x16xf32>
    %162 = arith.subf %161, %160 : vector<1x16xf32>
    %163 = arith.mulf %159, %162 : vector<1x16xf32>
    %164 = tpu.reciprocal %158 {approx = true} : vector<8x1xf32> -> vector<8x1xf32>
    %165 = arith.mulf %158, %164 : vector<8x1xf32>
    %cst_64 = arith.constant 2.000000e+00 : f32
    %166 = vector.broadcast %cst_64 : f32 to vector<8x1xf32>
    %167 = arith.subf %166, %165 : vector<8x1xf32>
    %168 = arith.mulf %164, %167 : vector<8x1xf32>
    %169 = vector.broadcast %163 : vector<1x16xf32> to vector<8x16xf32>
    %170 = arith.mulf %154, %169 : vector<8x16xf32>
    %171 = vector.broadcast %168 : vector<8x1xf32> to vector<8x16xf32>
    %172 = arith.mulf %154, %171 : vector<8x16xf32>
    %cst_65 = arith.constant dense<0.000000e+00> : vector<8x8xf32>
    %173 = tpu.matmul %170, %145, %cst_65 {dimension_numbers = #tpu.dot_dimension_numbers<[1], [0], [0], [1], [0, 0, 1, 1], [], []>} : vector<8x16xf32>, vector<16x8xf32>, vector<8x8xf32> -> vector<8x8xf32>
    %cst_66 = arith.constant dense<0.000000e+00> : vector<8x8xf32>
    %174 = tpu.matmul %172, %2, %cst_66 {dimension_numbers = #tpu.dot_dimension_numbers<[1], [0], [0], [1], [0, 0, 1, 1], [], []>} : vector<8x16xf32>, vector<16x8xf32>, vector<8x8xf32> -> vector<8x8xf32>
    %cst_67 = arith.constant dense<0.000000e+00> : vector<8x8xf32>
    %175 = tpu.matmul %144, %174, %cst_67 {dimension_numbers = #tpu.dot_dimension_numbers<[0], [0], [1], [1], [0, 1, 1, 1], [], []>} : vector<8x8xf32>, vector<8x8xf32>, vector<8x8xf32> -> vector<8x8xf32>
    %176 = vector.broadcast %5 : vector<1x8xf32> to vector<8x8xf32>
    %177 = arith.addf %175, %176 : vector<8x8xf32>
    %cst_68 = arith.constant dense<0.000000e+00> : vector<8x8xf32>
    %178 = tpu.matmul %173, %174, %cst_68 {dimension_numbers = #tpu.dot_dimension_numbers<[0], [0], [1], [1], [0, 1, 1, 1], [], []>} : vector<8x8xf32>, vector<8x8xf32>, vector<8x8xf32> -> vector<8x8xf32>
    %179 = vector.broadcast %5 : vector<1x8xf32> to vector<8x8xf32>
    %180 = arith.addf %178, %179 : vector<8x8xf32>
    %c0_69 = arith.constant 0 : index
    %c0_70 = arith.constant 0 : index
    %c24 = arith.constant 24 : index
    %181 = vector.load %arg9[%c0_69, %c0_70, %c24] : memref<1x16x32xf32, #tpu.memory_space<vmem>>, vector<1x8x8xf32>
    %182 = vector.shape_cast %181 : vector<1x8x8xf32> to vector<8x8xf32>
    %183 = vector.shape_cast %177 : vector<8x8xf32> to vector<1x8x8xf32>
    tpu.vector_store %arg9[%c0_69, %c0_70, %c24], %183 {strides = array<i32>} : memref<1x16x32xf32, #tpu.memory_space<vmem>>, vector<1x8x8xf32>,
    %c0_71 = arith.constant 0 : index
    %c8_72 = arith.constant 8 : index
    %c24_73 = arith.constant 24 : index
    %184 = vector.load %arg9[%c0_71, %c8_72, %c24_73] : memref<1x16x32xf32, #tpu.memory_space<vmem>>, vector<1x8x8xf32>
    %185 = vector.shape_cast %184 : vector<1x8x8xf32> to vector<8x8xf32>
    %186 = vector.shape_cast %180 : vector<8x8xf32> to vector<1x8x8xf32>
    tpu.vector_store %arg9[%c0_71, %c8_72, %c24_73], %186 {strides = array<i32>} : memref<1x16x32xf32, #tpu.memory_space<vmem>>, vector<1x8x8xf32>,
    return
  }
  func.func @transform_0(%arg0: i32) -> (i32, i32) {
    %c0_i32 = arith.constant 0 : i32
    %c0_i32_0 = arith.constant 0 : i32
    return %arg0, %c0_i32 : i32, i32
  }
  func.func @transform_1(%arg0: i32) -> (i32, i32) {
    %c0_i32 = arith.constant 0 : i32
    %c0_i32_0 = arith.constant 0 : i32
    return %arg0, %c0_i32 : i32, i32
  }
  func.func @transform_2(%arg0: i32) -> (i32, i32) {
    %c0_i32 = arith.constant 0 : i32
    %c0_i32_0 = arith.constant 0 : i32
    %c0_i32_1 = arith.constant 0 : i32
    return %c0_i32, %c0_i32_0 : i32, i32
  }
  func.func @transform_3(%arg0: i32) -> (i32, i32) {
    %c0_i32 = arith.constant 0 : i32
    %c0_i32_0 = arith.constant 0 : i32
    %c0_i32_1 = arith.constant 0 : i32
    return %c0_i32, %c0_i32_0 : i32, i32
  }
  func.func @transform_4(%arg0: i32) -> (i32, i32) {
    %c0_i32 = arith.constant 0 : i32
    %c0_i32_0 = arith.constant 0 : i32
    %c0_i32_1 = arith.constant 0 : i32
    return %c0_i32, %c0_i32_0 : i32, i32
  }
  func.func @transform_5(%arg0: i32) -> (i32, i32) {
    %c0_i32 = arith.constant 0 : i32
    %c0_i32_0 = arith.constant 0 : i32
    %c0_i32_1 = arith.constant 0 : i32
    return %c0_i32, %c0_i32_0 : i32, i32
  }
  func.func @transform_6(%arg0: i32) -> (i32, i32) {
    %c0_i32 = arith.constant 0 : i32
    %c0_i32_0 = arith.constant 0 : i32
    %c0_i32_1 = arith.constant 0 : i32
    return %c0_i32, %c0_i32_0 : i32, i32
  }
  func.func @transform_7(%arg0: i32) -> (i32, i32) {
    %c0_i32 = arith.constant 0 : i32
    %c0_i32_0 = arith.constant 0 : i32
    %c0_i32_1 = arith.constant 0 : i32
    return %c0_i32, %c0_i32_0 : i32, i32
  }
  func.func @transform_8(%arg0: i32) -> (i32, i32, i32) {
    %c0_i32 = arith.constant 0 : i32
    %c0_i32_0 = arith.constant 0 : i32
    %c0_i32_1 = arith.constant 0 : i32
    return %arg0, %c0_i32, %c0_i32_0 : i32, i32, i32
  }
}

module attributes {stable_mosaic.version = 11 : i64} {
  func.func @_coattention_kernel(%arg0: i32, %arg1: memref<32x8xf32, #tpu.memory_space<vmem>>, %arg2: memref<64x32xf32, #tpu.memory_space<vmem>>, %arg3: memref<8x8xf32, #tpu.memory_space<vmem>>, %arg4: memref<1x8xf32, #tpu.memory_space<vmem>>, %arg5: memref<32x8xf32, #tpu.memory_space<vmem>>, %arg6: memref<1x8xf32, #tpu.memory_space<vmem>>, %arg7: memref<16x8xf32, #tpu.memory_space<vmem>>, %arg8: memref<1x8xf32, #tpu.memory_space<vmem>>, %arg9: memref<1x16x32xf32, #tpu.memory_space<vmem>>) attributes {dimension_semantics = [#tpu.dimension_semantics<parallel>], iteration_bounds = array<i64: 1>, scalar_prefetch = 0 : i64, scratch_operands = 0 : i64, tpu.core_type = #tpu.core_type<tc>, window_params = [{transform_indices = @transform_0, window_bounds = array<i64: 32, 8>}, {transform_indices = @transform_1, window_bounds = array<i64: 64, 32>}, {pipeline_mode = #tpu.pipeline_mode<synchronous>, transform_indices = @transform_2, window_bounds = array<i64: 8, 8>}, {pipeline_mode = #tpu.pipeline_mode<synchronous>, transform_indices = @transform_3, window_bounds = array<i64: 1, 8>}, {pipeline_mode = #tpu.pipeline_mode<synchronous>, transform_indices = @transform_4, window_bounds = array<i64: 32, 8>}, {pipeline_mode = #tpu.pipeline_mode<synchronous>, transform_indices = @transform_5, window_bounds = array<i64: 1, 8>}, {pipeline_mode = #tpu.pipeline_mode<synchronous>, transform_indices = @transform_6, window_bounds = array<i64: 16, 8>}, {pipeline_mode = #tpu.pipeline_mode<synchronous>, transform_indices = @transform_7, window_bounds = array<i64: 1, 8>}, {transform_indices = @transform_8, window_bounds = array<i64: 1, 16, 32>}]} {
    %c0 = arith.constant 0 : index
    %c0_0 = arith.constant 0 : index
    %0 = vector.load %arg3[%c0, %c0_0] : memref<8x8xf32, #tpu.memory_space<vmem>>, vector<8x8xf32>
    %c0_1 = arith.constant 0 : index
    %c0_2 = arith.constant 0 : index
    %1 = vector.load %arg5[%c0_1, %c0_2] : memref<32x8xf32, #tpu.memory_space<vmem>>, vector<32x8xf32>
    %c0_3 = arith.constant 0 : index
    %c0_4 = arith.constant 0 : index
    %2 = vector.load %arg7[%c0_3, %c0_4] : memref<16x8xf32, #tpu.memory_space<vmem>>, vector<16x8xf32>
    %c0_5 = arith.constant 0 : index
    %c0_6 = arith.constant 0 : index
    %3 = vector.load %arg4[%c0_5, %c0_6] : memref<1x8xf32, #tpu.memory_space<vmem>>, vector<1x8xf32>
    %c0_7 = arith.constant 0 : index
    %c0_8 = arith.constant 0 : index
    %4 = vector.load %arg6[%c0_7, %c0_8] : memref<1x8xf32, #tpu.memory_space<vmem>>, vector<1x8xf32>
    %c0_9 = arith.constant 0 : index
    %c0_10 = arith.constant 0 : index
    %5 = vector.load %arg8[%c0_9, %c0_10] : memref<1x8xf32, #tpu.memory_space<vmem>>, vector<1x8xf32>
    %c0_11 = arith.constant 0 : index
    %c0_12 = arith.constant 0 : index
    %6 = vector.load %arg1[%c0_11, %c0_12] : memref<32x8xf32, #tpu.memory_space<vmem>>, vector<32x8xf32>
    %c0_13 = arith.constant 0 : index
    %c0_14 = arith.constant 0 : index
    %7 = vector.load %arg2[%c0_13, %c0_14] : memref<64x32xf32, #tpu.memory_space<vmem>>, vector<64x32xf32>
    %cst = arith.constant dense<0.000000e+00> : vector<32x8xf32>
    %8 = tpu.matmul %6, %0, %cst {dimension_numbers = #tpu.dot_dimension_numbers<[1], [0], [0], [1], [0, 0, 1, 1], [], []>} : vector<32x8xf32>, vector<8x8xf32>, vector<32x8xf32> -> vector<32x8xf32>
    %9 = vector.broadcast %3 : vector<1x8xf32> to vector<32x8xf32>
    %10 = arith.addf %8, %9 : vector<32x8xf32>
    %cst_15 = arith.constant dense<0.000000e+00> : vector<64x8xf32>
    %11 = tpu.matmul %7, %1, %cst_15 {dimension_numbers = #tpu.dot_dimension_numbers<[1], [0], [0], [1], [0, 0, 1, 1], [], []>} : vector<64x32xf32>, vector<32x8xf32>, vector<64x8xf32> -> vector<64x8xf32>
    %12 = vector.broadcast %4 : vector<1x8xf32> to vector<64x8xf32>
    %13 = arith.addf %11, %12 : vector<64x8xf32>
    %cst_16 = arith.constant dense<0.000000e+00> : vector<32x64xf32>
    %14 = tpu.matmul %10, %13, %cst_16 {dimension_numbers = #tpu.dot_dimension_numbers<[1], [1], [0], [0], [0, 0, 1, 0], [], []>} : vector<32x8xf32>, vector<64x8xf32>, vector<32x64xf32> -> vector<32x64xf32>
    %15 = vector.extract_strided_slice %6 {offsets = [0, 0], sizes = [8, 8], strides = [1, 1]} : vector<32x8xf32> to vector<8x8xf32>
    %16 = vector.extract_strided_slice %13 {offsets = [0, 0], sizes = [16, 8], strides = [1, 1]} : vector<64x8xf32> to vector<16x8xf32>
    %17 = vector.extract_strided_slice %14 {offsets = [0, 0], sizes = [8, 16], strides = [1, 1]} : vector<32x64xf32> to vector<8x16xf32>
    %18 = vector.shape_cast %17 : vector<8x16xf32> to vector<1x8x16xf32>
    %cst_17 = arith.constant dense<0xFF800000> : vector<1xf32>
    %19 = vector.multi_reduction <maximumf>, %18, %cst_17 [1, 2] : vector<1x8x16xf32> to vector<1xf32>
    %20 = vector.shape_cast %19 : vector<1xf32> to vector<1x1x1xf32>
    %21 = vector.extract %20[0, 0, 0] : f32 from vector<1x1x1xf32>
    %22 = vector.broadcast %21 : f32 to vector<1x1xf32>
    %23 = vector.broadcast %22 : vector<1x1xf32> to vector<8x16xf32>
    %24 = arith.subf %17, %23 : vector<8x16xf32>
    %25 = math.exp %24 : vector<8x16xf32>
    %cst_18 = arith.constant dense<0.000000e+00> : vector<16xf32>
    %26 = vector.multi_reduction <add>, %25, %cst_18 [0] : vector<8x16xf32> to vector<16xf32>
    %27 = vector.shape_cast %26 : vector<16xf32> to vector<1x16xf32>
    %cst_19 = arith.constant dense<0.000000e+00> : vector<8xf32>
    %28 = vector.multi_reduction <add>, %25, %cst_19 [1] : vector<8x16xf32> to vector<8xf32>
    %29 = vector.shape_cast %28 : vector<8xf32> to vector<8x1xf32>
    %30 = tpu.reciprocal %27 {approx = true} : vector<1x16xf32> -> vector<1x16xf32>
    %31 = arith.mulf %27, %30 : vector<1x16xf32>
    %cst_20 = arith.constant 2.000000e+00 : f32
    %32 = vector.broadcast %cst_20 : f32 to vector<1x16xf32>
    %33 = arith.subf %32, %31 : vector<1x16xf32>
    %34 = arith.mulf %30, %33 : vector<1x16xf32>
    %35 = tpu.reciprocal %29 {approx = true} : vector<8x1xf32> -> vector<8x1xf32>
    %36 = arith.mulf %29, %35 : vector<8x1xf32>
    %cst_21 = arith.constant 2.000000e+00 : f32
    %37 = vector.broadcast %cst_21 : f32 to vector<8x1xf32>
    %38 = arith.subf %37, %36 : vector<8x1xf32>
    %39 = arith.mulf %35, %38 : vector<8x1xf32>
    %40 = vector.broadcast %34 : vector<1x16xf32> to vector<8x16xf32>
    %41 = arith.mulf %25, %40 : vector<8x16xf32>
    %42 = vector.broadcast %39 : vector<8x1xf32> to vector<8x16xf32>
    %43 = arith.mulf %25, %42 : vector<8x16xf32>
    %cst_22 = arith.constant dense<0.000000e+00> : vector<8x8xf32>
    %44 = tpu.matmul %41, %16, %cst_22 {dimension_numbers = #tpu.dot_dimension_numbers<[1], [0], [0], [1], [0, 0, 1, 1], [], []>} : vector<8x16xf32>, vector<16x8xf32>, vector<8x8xf32> -> vector<8x8xf32>
    %cst_23 = arith.constant dense<0.000000e+00> : vector<8x8xf32>
    %45 = tpu.matmul %43, %2, %cst_23 {dimension_numbers = #tpu.dot_dimension_numbers<[1], [0], [0], [1], [0, 0, 1, 1], [], []>} : vector<8x16xf32>, vector<16x8xf32>, vector<8x8xf32> -> vector<8x8xf32>
    %cst_24 = arith.constant dense<0.000000e+00> : vector<8x8xf32>
    %46 = tpu.matmul %15, %45, %cst_24 {dimension_numbers = #tpu.dot_dimension_numbers<[0], [0], [1], [1], [0, 1, 1, 1], [], []>} : vector<8x8xf32>, vector<8x8xf32>, vector<8x8xf32> -> vector<8x8xf32>
    %47 = vector.broadcast %5 : vector<1x8xf32> to vector<8x8xf32>
    %48 = arith.addf %46, %47 : vector<8x8xf32>
    %cst_25 = arith.constant dense<0.000000e+00> : vector<8x8xf32>
    %49 = tpu.matmul %44, %45, %cst_25 {dimension_numbers = #tpu.dot_dimension_numbers<[0], [0], [1], [1], [0, 1, 1, 1], [], []>} : vector<8x8xf32>, vector<8x8xf32>, vector<8x8xf32> -> vector<8x8xf32>
    %50 = vector.broadcast %5 : vector<1x8xf32> to vector<8x8xf32>
    %51 = arith.addf %49, %50 : vector<8x8xf32>
    %c0_26 = arith.constant 0 : index
    %c0_27 = arith.constant 0 : index
    %c0_28 = arith.constant 0 : index
    %52 = vector.load %arg9[%c0_26, %c0_27, %c0_28] : memref<1x16x32xf32, #tpu.memory_space<vmem>>, vector<1x8x8xf32>
    %53 = vector.shape_cast %52 : vector<1x8x8xf32> to vector<8x8xf32>
    %54 = vector.shape_cast %48 : vector<8x8xf32> to vector<1x8x8xf32>
    tpu.vector_store %arg9[%c0_26, %c0_27, %c0_28], %54 {strides = array<i32>} : memref<1x16x32xf32, #tpu.memory_space<vmem>>, vector<1x8x8xf32>,
    %c0_29 = arith.constant 0 : index
    %c8 = arith.constant 8 : index
    %c0_30 = arith.constant 0 : index
    %55 = vector.load %arg9[%c0_29, %c8, %c0_30] : memref<1x16x32xf32, #tpu.memory_space<vmem>>, vector<1x8x8xf32>
    %56 = vector.shape_cast %55 : vector<1x8x8xf32> to vector<8x8xf32>
    %57 = vector.shape_cast %51 : vector<8x8xf32> to vector<1x8x8xf32>
    tpu.vector_store %arg9[%c0_29, %c8, %c0_30], %57 {strides = array<i32>} : memref<1x16x32xf32, #tpu.memory_space<vmem>>, vector<1x8x8xf32>,
    %58 = vector.extract_strided_slice %6 {offsets = [8, 0], sizes = [8, 8], strides = [1, 1]} : vector<32x8xf32> to vector<8x8xf32>
    %59 = vector.extract_strided_slice %13 {offsets = [16, 0], sizes = [16, 8], strides = [1, 1]} : vector<64x8xf32> to vector<16x8xf32>
    %60 = vector.extract_strided_slice %14 {offsets = [8, 16], sizes = [8, 16], strides = [1, 1]} : vector<32x64xf32> to vector<8x16xf32>
    %61 = vector.shape_cast %60 : vector<8x16xf32> to vector<1x8x16xf32>
    %cst_31 = arith.constant dense<0xFF800000> : vector<1xf32>
    %62 = vector.multi_reduction <maximumf>, %61, %cst_31 [1, 2] : vector<1x8x16xf32> to vector<1xf32>
    %63 = vector.shape_cast %62 : vector<1xf32> to vector<1x1x1xf32>
    %64 = vector.extract %63[0, 0, 0] : f32 from vector<1x1x1xf32>
    %65 = vector.broadcast %64 : f32 to vector<1x1xf32>
    %66 = vector.broadcast %65 : vector<1x1xf32> to vector<8x16xf32>
    %67 = arith.subf %60, %66 : vector<8x16xf32>
    %68 = math.exp %67 : vector<8x16xf32>
    %cst_32 = arith.constant dense<0.000000e+00> : vector<16xf32>
    %69 = vector.multi_reduction <add>, %68, %cst_32 [0] : vector<8x16xf32> to vector<16xf32>
    %70 = vector.shape_cast %69 : vector<16xf32> to vector<1x16xf32>
    %cst_33 = arith.constant dense<0.000000e+00> : vector<8xf32>
    %71 = vector.multi_reduction <add>, %68, %cst_33 [1] : vector<8x16xf32> to vector<8xf32>
    %72 = vector.shape_cast %71 : vector<8xf32> to vector<8x1xf32>
    %73 = tpu.reciprocal %70 {approx = true} : vector<1x16xf32> -> vector<1x16xf32>
    %74 = arith.mulf %70, %73 : vector<1x16xf32>
    %cst_34 = arith.constant 2.000000e+00 : f32
    %75 = vector.broadcast %cst_34 : f32 to vector<1x16xf32>
    %76 = arith.subf %75, %74 : vector<1x16xf32>
    %77 = arith.mulf %73, %76 : vector<1x16xf32>
    %78 = tpu.reciprocal %72 {approx = true} : vector<8x1xf32> -> vector<8x1xf32>
    %79 = arith.mulf %72, %78 : vector<8x1xf32>
    %cst_35 = arith.constant 2.000000e+00 : f32
    %80 = vector.broadcast %cst_35 : f32 to vector<8x1xf32>
    %81 = arith.subf %80, %79 : vector<8x1xf32>
    %82 = arith.mulf %78, %81 : vector<8x1xf32>
    %83 = vector.broadcast %77 : vector<1x16xf32> to vector<8x16xf32>
    %84 = arith.mulf %68, %83 : vector<8x16xf32>
    %85 = vector.broadcast %82 : vector<8x1xf32> to vector<8x16xf32>
    %86 = arith.mulf %68, %85 : vector<8x16xf32>
    %cst_36 = arith.constant dense<0.000000e+00> : vector<8x8xf32>
    %87 = tpu.matmul %84, %59, %cst_36 {dimension_numbers = #tpu.dot_dimension_numbers<[1], [0], [0], [1], [0, 0, 1, 1], [], []>} : vector<8x16xf32>, vector<16x8xf32>, vector<8x8xf32> -> vector<8x8xf32>
    %cst_37 = arith.constant dense<0.000000e+00> : vector<8x8xf32>
    %88 = tpu.matmul %86, %2, %cst_37 {dimension_numbers = #tpu.dot_dimension_numbers<[1], [0], [0], [1], [0, 0, 1, 1], [], []>} : vector<8x16xf32>, vector<16x8xf32>, vector<8x8xf32> -> vector<8x8xf32>
    %cst_38 = arith.constant dense<0.000000e+00> : vector<8x8xf32>
    %89 = tpu.matmul %58, %88, %cst_38 {dimension_numbers = #tpu.dot_dimension_numbers<[0], [0], [1], [1], [0, 1, 1, 1], [], []>} : vector<8x8xf32>, vector<8x8xf32>, vector<8x8xf32> -> vector<8x8xf32>
    %90 = vector.broadcast %5 : vector<1x8xf32> to vector<8x8xf32>
    %91 = arith.addf %89, %90 : vector<8x8xf32>
    %cst_39 = arith.constant dense<0.000000e+00> : vector<8x8xf32>
    %92 = tpu.matmul %87, %88, %cst_39 {dimension_numbers = #tpu.dot_dimension_numbers<[0], [0], [1], [1], [0, 1, 1, 1], [], []>} : vector<8x8xf32>, vector<8x8xf32>, vector<8x8xf32> -> vector<8x8xf32>
    %93 = vector.broadcast %5 : vector<1x8xf32> to vector<8x8xf32>
    %94 = arith.addf %92, %93 : vector<8x8xf32>
    %c0_40 = arith.constant 0 : index
    %c0_41 = arith.constant 0 : index
    %c8_42 = arith.constant 8 : index
    %95 = vector.load %arg9[%c0_40, %c0_41, %c8_42] : memref<1x16x32xf32, #tpu.memory_space<vmem>>, vector<1x8x8xf32>
    %96 = vector.shape_cast %95 : vector<1x8x8xf32> to vector<8x8xf32>
    %97 = vector.shape_cast %91 : vector<8x8xf32> to vector<1x8x8xf32>
    tpu.vector_store %arg9[%c0_40, %c0_41, %c8_42], %97 {strides = array<i32>} : memref<1x16x32xf32, #tpu.memory_space<vmem>>, vector<1x8x8xf32>,
    %c0_43 = arith.constant 0 : index
    %c8_44 = arith.constant 8 : index
    %c8_45 = arith.constant 8 : index
    %98 = vector.load %arg9[%c0_43, %c8_44, %c8_45] : memref<1x16x32xf32, #tpu.memory_space<vmem>>, vector<1x8x8xf32>
    %99 = vector.shape_cast %98 : vector<1x8x8xf32> to vector<8x8xf32>
    %100 = vector.shape_cast %94 : vector<8x8xf32> to vector<1x8x8xf32>
    tpu.vector_store %arg9[%c0_43, %c8_44, %c8_45], %100 {strides = array<i32>} : memref<1x16x32xf32, #tpu.memory_space<vmem>>, vector<1x8x8xf32>,
    %101 = vector.extract_strided_slice %6 {offsets = [16, 0], sizes = [8, 8], strides = [1, 1]} : vector<32x8xf32> to vector<8x8xf32>
    %102 = vector.extract_strided_slice %13 {offsets = [32, 0], sizes = [16, 8], strides = [1, 1]} : vector<64x8xf32> to vector<16x8xf32>
    %103 = vector.extract_strided_slice %14 {offsets = [16, 32], sizes = [8, 16], strides = [1, 1]} : vector<32x64xf32> to vector<8x16xf32>
    %104 = vector.shape_cast %103 : vector<8x16xf32> to vector<1x8x16xf32>
    %cst_46 = arith.constant dense<0xFF800000> : vector<1xf32>
    %105 = vector.multi_reduction <maximumf>, %104, %cst_46 [1, 2] : vector<1x8x16xf32> to vector<1xf32>
    %106 = vector.shape_cast %105 : vector<1xf32> to vector<1x1x1xf32>
    %107 = vector.extract %106[0, 0, 0] : f32 from vector<1x1x1xf32>
    %108 = vector.broadcast %107 : f32 to vector<1x1xf32>
    %109 = vector.broadcast %108 : vector<1x1xf32> to vector<8x16xf32>
    %110 = arith.subf %103, %109 : vector<8x16xf32>
    %111 = math.exp %110 : vector<8x16xf32>
    %cst_47 = arith.constant dense<0.000000e+00> : vector<16xf32>
    %112 = vector.multi_reduction <add>, %111, %cst_47 [0] : vector<8x16xf32> to vector<16xf32>
    %113 = vector.shape_cast %112 : vector<16xf32> to vector<1x16xf32>
    %cst_48 = arith.constant dense<0.000000e+00> : vector<8xf32>
    %114 = vector.multi_reduction <add>, %111, %cst_48 [1] : vector<8x16xf32> to vector<8xf32>
    %115 = vector.shape_cast %114 : vector<8xf32> to vector<8x1xf32>
    %116 = tpu.reciprocal %113 {approx = true} : vector<1x16xf32> -> vector<1x16xf32>
    %117 = arith.mulf %113, %116 : vector<1x16xf32>
    %cst_49 = arith.constant 2.000000e+00 : f32
    %118 = vector.broadcast %cst_49 : f32 to vector<1x16xf32>
    %119 = arith.subf %118, %117 : vector<1x16xf32>
    %120 = arith.mulf %116, %119 : vector<1x16xf32>
    %121 = tpu.reciprocal %115 {approx = true} : vector<8x1xf32> -> vector<8x1xf32>
    %122 = arith.mulf %115, %121 : vector<8x1xf32>
    %cst_50 = arith.constant 2.000000e+00 : f32
    %123 = vector.broadcast %cst_50 : f32 to vector<8x1xf32>
    %124 = arith.subf %123, %122 : vector<8x1xf32>
    %125 = arith.mulf %121, %124 : vector<8x1xf32>
    %126 = vector.broadcast %120 : vector<1x16xf32> to vector<8x16xf32>
    %127 = arith.mulf %111, %126 : vector<8x16xf32>
    %128 = vector.broadcast %125 : vector<8x1xf32> to vector<8x16xf32>
    %129 = arith.mulf %111, %128 : vector<8x16xf32>
    %cst_51 = arith.constant dense<0.000000e+00> : vector<8x8xf32>
    %130 = tpu.matmul %127, %102, %cst_51 {dimension_numbers = #tpu.dot_dimension_numbers<[1], [0], [0], [1], [0, 0, 1, 1], [], []>} : vector<8x16xf32>, vector<16x8xf32>, vector<8x8xf32> -> vector<8x8xf32>
    %cst_52 = arith.constant dense<0.000000e+00> : vector<8x8xf32>
    %131 = tpu.matmul %129, %2, %cst_52 {dimension_numbers = #tpu.dot_dimension_numbers<[1], [0], [0], [1], [0, 0, 1, 1], [], []>} : vector<8x16xf32>, vector<16x8xf32>, vector<8x8xf32> -> vector<8x8xf32>
    %cst_53 = arith.constant dense<0.000000e+00> : vector<8x8xf32>
    %132 = tpu.matmul %101, %131, %cst_53 {dimension_numbers = #tpu.dot_dimension_numbers<[0], [0], [1], [1], [0, 1, 1, 1], [], []>} : vector<8x8xf32>, vector<8x8xf32>, vector<8x8xf32> -> vector<8x8xf32>
    %133 = vector.broadcast %5 : vector<1x8xf32> to vector<8x8xf32>
    %134 = arith.addf %132, %133 : vector<8x8xf32>
    %cst_54 = arith.constant dense<0.000000e+00> : vector<8x8xf32>
    %135 = tpu.matmul %130, %131, %cst_54 {dimension_numbers = #tpu.dot_dimension_numbers<[0], [0], [1], [1], [0, 1, 1, 1], [], []>} : vector<8x8xf32>, vector<8x8xf32>, vector<8x8xf32> -> vector<8x8xf32>
    %136 = vector.broadcast %5 : vector<1x8xf32> to vector<8x8xf32>
    %137 = arith.addf %135, %136 : vector<8x8xf32>
    %c0_55 = arith.constant 0 : index
    %c0_56 = arith.constant 0 : index
    %c16 = arith.constant 16 : index
    %138 = vector.load %arg9[%c0_55, %c0_56, %c16] : memref<1x16x32xf32, #tpu.memory_space<vmem>>, vector<1x8x8xf32>
    %139 = vector.shape_cast %138 : vector<1x8x8xf32> to vector<8x8xf32>
    %140 = vector.shape_cast %134 : vector<8x8xf32> to vector<1x8x8xf32>
    tpu.vector_store %arg9[%c0_55, %c0_56, %c16], %140 {strides = array<i32>} : memref<1x16x32xf32, #tpu.memory_space<vmem>>, vector<1x8x8xf32>,
    %c0_57 = arith.constant 0 : index
    %c8_58 = arith.constant 8 : index
    %c16_59 = arith.constant 16 : index
    %141 = vector.load %arg9[%c0_57, %c8_58, %c16_59] : memref<1x16x32xf32, #tpu.memory_space<vmem>>, vector<1x8x8xf32>
    %142 = vector.shape_cast %141 : vector<1x8x8xf32> to vector<8x8xf32>
    %143 = vector.shape_cast %137 : vector<8x8xf32> to vector<1x8x8xf32>
    tpu.vector_store %arg9[%c0_57, %c8_58, %c16_59], %143 {strides = array<i32>} : memref<1x16x32xf32, #tpu.memory_space<vmem>>, vector<1x8x8xf32>,
    %144 = vector.extract_strided_slice %6 {offsets = [24, 0], sizes = [8, 8], strides = [1, 1]} : vector<32x8xf32> to vector<8x8xf32>
    %145 = vector.extract_strided_slice %13 {offsets = [48, 0], sizes = [16, 8], strides = [1, 1]} : vector<64x8xf32> to vector<16x8xf32>
    %146 = vector.extract_strided_slice %14 {offsets = [24, 48], sizes = [8, 16], strides = [1, 1]} : vector<32x64xf32> to vector<8x16xf32>
    %147 = vector.shape_cast %146 : vector<8x16xf32> to vector<1x8x16xf32>
    %cst_60 = arith.constant dense<0xFF800000> : vector<1xf32>
    %148 = vector.multi_reduction <maximumf>, %147, %cst_60 [1, 2] : vector<1x8x16xf32> to vector<1xf32>
    %149 = vector.shape_cast %148 : vector<1xf32> to vector<1x1x1xf32>
    %150 = vector.extract %149[0, 0, 0] : f32 from vector<1x1x1xf32>
    %151 = vector.broadcast %150 : f32 to vector<1x1xf32>
    %152 = vector.broadcast %151 : vector<1x1xf32> to vector<8x16xf32>
    %153 = arith.subf %146, %152 : vector<8x16xf32>
    %154 = math.exp %153 : vector<8x16xf32>
    %cst_61 = arith.constant dense<0.000000e+00> : vector<16xf32>
    %155 = vector.multi_reduction <add>, %154, %cst_61 [0] : vector<8x16xf32> to vector<16xf32>
    %156 = vector.shape_cast %155 : vector<16xf32> to vector<1x16xf32>
    %cst_62 = arith.constant dense<0.000000e+00> : vector<8xf32>
    %157 = vector.multi_reduction <add>, %154, %cst_62 [1] : vector<8x16xf32> to vector<8xf32>
    %158 = vector.shape_cast %157 : vector<8xf32> to vector<8x1xf32>
    %159 = tpu.reciprocal %156 {approx = true} : vector<1x16xf32> -> vector<1x16xf32>
    %160 = arith.mulf %156, %159 : vector<1x16xf32>
    %cst_63 = arith.constant 2.000000e+00 : f32
    %161 = vector.broadcast %cst_63 : f32 to vector<1x16xf32>
    %162 = arith.subf %161, %160 : vector<1x16xf32>
    %163 = arith.mulf %159, %162 : vector<1x16xf32>
    %164 = tpu.reciprocal %158 {approx = true} : vector<8x1xf32> -> vector<8x1xf32>
    %165 = arith.mulf %158, %164 : vector<8x1xf32>
    %cst_64 = arith.constant 2.000000e+00 : f32
    %166 = vector.broadcast %cst_64 : f32 to vector<8x1xf32>
    %167 = arith.subf %166, %165 : vector<8x1xf32>
    %168 = arith.mulf %164, %167 : vector<8x1xf32>
    %169 = vector.broadcast %163 : vector<1x16xf32> to vector<8x16xf32>
    %170 = arith.mulf %154, %169 : vector<8x16xf32>
    %171 = vector.broadcast %168 : vector<8x1xf32> to vector<8x16xf32>
    %172 = arith.mulf %154, %171 : vector<8x16xf32>
    %cst_65 = arith.constant dense<0.000000e+00> : vector<8x8xf32>
    %173 = tpu.matmul %170, %145, %cst_65 {dimension_numbers = #tpu.dot_dimension_numbers<[1], [0], [0], [1], [0, 0, 1, 1], [], []>} : vector<8x16xf32>, vector<16x8xf32>, vector<8x8xf32> -> vector<8x8xf32>
    %cst_66 = arith.constant dense<0.000000e+00> : vector<8x8xf32>
    %174 = tpu.matmul %172, %2, %cst_66 {dimension_numbers = #tpu.dot_dimension_numbers<[1], [0], [0], [1], [0, 0, 1, 1], [], []>} : vector<8x16xf32>, vector<16x8xf32>, vector<8x8xf32> -> vector<8x8xf32>
    %cst_67 = arith.constant dense<0.000000e+00> : vector<8x8xf32>
    %175 = tpu.matmul %144, %174, %cst_67 {dimension_numbers = #tpu.dot_dimension_numbers<[0], [0], [1], [1], [0, 1, 1, 1], [], []>} : vector<8x8xf32>, vector<8x8xf32>, vector<8x8xf32> -> vector<8x8xf32>
    %176 = vector.broadcast %5 : vector<1x8xf32> to vector<8x8xf32>
    %177 = arith.addf %175, %176 : vector<8x8xf32>
    %cst_68 = arith.constant dense<0.000000e+00> : vector<8x8xf32>
    %178 = tpu.matmul %173, %174, %cst_68 {dimension_numbers = #tpu.dot_dimension_numbers<[0], [0], [1], [1], [0, 1, 1, 1], [], []>} : vector<8x8xf32>, vector<8x8xf32>, vector<8x8xf32> -> vector<8x8xf32>
    %179 = vector.broadcast %5 : vector<1x8xf32> to vector<8x8xf32>
    %180 = arith.addf %178, %179 : vector<8x8xf32>
    %c0_69 = arith.constant 0 : index
    %c0_70 = arith.constant 0 : index
    %c24 = arith.constant 24 : index
    %181 = vector.load %arg9[%c0_69, %c0_70, %c24] : memref<1x16x32xf32, #tpu.memory_space<vmem>>, vector<1x8x8xf32>
    %182 = vector.shape_cast %181 : vector<1x8x8xf32> to vector<8x8xf32>
    %183 = vector.shape_cast %177 : vector<8x8xf32> to vector<1x8x8xf32>
    tpu.vector_store %arg9[%c0_69, %c0_70, %c24], %183 {strides = array<i32>} : memref<1x16x32xf32, #tpu.memory_space<vmem>>, vector<1x8x8xf32>,
    %c0_71 = arith.constant 0 : index
    %c8_72 = arith.constant 8 : index
    %c24_73 = arith.constant 24 : index
    %184 = vector.load %arg9[%c0_71, %c8_72, %c24_73] : memref<1x16x32xf32, #tpu.memory_space<vmem>>, vector<1x8x8xf32>
    %185 = vector.shape_cast %184 : vector<1x8x8xf32> to vector<8x8xf32>
    %186 = vector.shape_cast %180 : vector<8x8xf32> to vector<1x8x8xf32>
    tpu.vector_store %arg9[%c0_71, %c8_72, %c24_73], %186 {strides = array<i32>} : memref<1x16x32xf32, #tpu.memory_space<vmem>>, vector<1x8x8xf32>,
    return
  }
  func.func @transform_0(%arg0: i32) -> (i32, i32) {
    %c0_i32 = arith.constant 0 : i32
    %c0_i32_0 = arith.constant 0 : i32
    return %arg0, %c0_i32 : i32, i32
  }
  func.func @transform_1(%arg0: i32) -> (i32, i32) {
    %c0_i32 = arith.constant 0 : i32
    %c0_i32_0 = arith.constant 0 : i32
    return %arg0, %c0_i32 : i32, i32
  }
  func.func @transform_2(%arg0: i32) -> (i32, i32) {
    %c0_i32 = arith.constant 0 : i32
    %c0_i32_0 = arith.constant 0 : i32
    %c0_i32_1 = arith.constant 0 : i32
    return %c0_i32, %c0_i32_0 : i32, i32
  }
  func.func @transform_3(%arg0: i32) -> (i32, i32) {
    %c0_i32 = arith.constant 0 : i32
    %c0_i32_0 = arith.constant 0 : i32
    %c0_i32_1 = arith.constant 0 : i32
    return %c0_i32, %c0_i32_0 : i32, i32
  }
  func.func @transform_4(%arg0: i32) -> (i32, i32) {
    %c0_i32 = arith.constant 0 : i32
    %c0_i32_0 = arith.constant 0 : i32
    %c0_i32_1 = arith.constant 0 : i32
    return %c0_i32, %c0_i32_0 : i32, i32
  }
  func.func @transform_5(%arg0: i32) -> (i32, i32) {
    %c0_i32 = arith.constant 0 : i32
    %c0_i32_0 = arith.constant 0 : i32
    %c0_i32_1 = arith.constant 0 : i32
    return %c0_i32, %c0_i32_0 : i32, i32
  }
  func.func @transform_6(%arg0: i32) -> (i32, i32) {
    %c0_i32 = arith.constant 0 : i32
    %c0_i32_0 = arith.constant 0 : i32
    %c0_i32_1 = arith.constant 0 : i32
    return %c0_i32, %c0_i32_0 : i32, i32
  }
  func.func @transform_7(%arg0: i32) -> (i32, i32) {
    %c0_i32 = arith.constant 0 : i32
    %c0_i32_0 = arith.constant 0 : i32
    %c0_i32_1 = arith.constant 0 : i32
    return %c0_i32, %c0_i32_0 : i32, i32
  }
  func.func @transform_8(%arg0: i32) -> (i32, i32, i32) {
    %c0_i32 = arith.constant 0 : i32
    %c0_i32_0 = arith.constant 0 : i32
    %c0_i32_1 = arith.constant 0 : i32
    return %arg0, %c0_i32, %c0_i32_0 : i32, i32, i32
  }
}

</mosaic_0001>

<llo_original>
// kernel: tpu_custom_call.1
$region0: #{tpu_custom_call.1}
  #allocation0 [shape = 'u32[]', space=smem, size = 0x4, offset = 0x4, fixed_abs, tag = 'smem constant byte address 0x4 - core index']
  #allocation1 [shape = 'u32[144,128]{1,0:T(1,128)}', space=vmem, size = 0x12000, scoped, tag = 'internal scratch']
  %s0 = inlined_call_operand.vmem [shape: f32[32,8], index: 0, kind: input, shape index: {}]
  %s1 = inlined_call_operand.vmem [shape: f32[64,32], index: 1, kind: input, shape index: {}]
  %s2 = inlined_call_operand.vmem [shape: f32[8,8], index: 2, kind: input, shape index: {}]
  %s3 = inlined_call_operand.vmem [shape: f32[1,8], index: 3, kind: input, shape index: {}]
  %s4 = inlined_call_operand.vmem [shape: f32[32,8], index: 4, kind: input, shape index: {}]
  %s5 = inlined_call_operand.vmem [shape: f32[1,8], index: 5, kind: input, shape index: {}]
  %s6 = inlined_call_operand.vmem [shape: f32[16,8], index: 6, kind: input, shape index: {}]
  %s7 = inlined_call_operand.vmem [shape: f32[1,8], index: 7, kind: input, shape index: {}]
  %s8 = inlined_call_operand.hbm [shape: f32[1,16,32], index: 8, kind: output, shape index: {}]
  %s9 = sld [smem:[#allocation0]]
  $region42: #{tpu_custom_call.1} parent=0
    _
  %s11 = ssub.s32 1, %s9
  %s12 = scalar_select 0, %s11, %s9
  $region1: #{tpu_custom_call.1} parent=0
    #allocation2 [shape = 'u8[8192]{0}', space=vmem, size = 0x2000, scoped, tag = 'output window, operand 0, single buffered']
    #allocation3 [shape = 's32[1]{0}', space=sflag, size = 0x4, scoped, tag = 'scoped memory for tpu_custom_call.1']
    %13 = vsyncpa [#allocation3], 0
    // Predicated region
    $region2: #{tpu_custom_call.1} parent=1 // pred_check
      _
    $region3: #{tpu_custom_call.1} parent=1 // pred_check_branch
      %15 = sbr.rel (0) target = $region5
    $region4: #{tpu_custom_call.1} parent=1 // pred_region
      _
    $region5: #{tpu_custom_call.1} parent=1 // pred_fallthru
      _
    // Predicated region
    $region6: #{tpu_custom_call.1} parent=1 // pred_check
      _
    $region7: #{tpu_custom_call.1} parent=1 // pred_check_branch
      %17 = sbr.rel (0) target = $region9
    $region8: #{tpu_custom_call.1} parent=1 // pred_region
      _
    $region9: #{tpu_custom_call.1} parent=1 // pred_fallthru
      _
    // Predicated region
    $region10: #{tpu_custom_call.1} parent=1 // pred_check
      _
    $region11: #{tpu_custom_call.1} parent=1 // pred_check_branch
      %19 = sbr.rel (0) target = $region13
    $region12: #{tpu_custom_call.1} parent=1 // pred_region
      _
    $region13: #{tpu_custom_call.1} parent=1 // pred_fallthru
      _
    // Predicated region
    $region14: #{tpu_custom_call.1} parent=1 // pred_check
      _
    $region15: #{tpu_custom_call.1} parent=1 // pred_check_branch
      %21 = sbr.rel (0) target = $region17
    $region16: #{tpu_custom_call.1} parent=1 // pred_region
      _
    $region17: #{tpu_custom_call.1} parent=1 // pred_fallthru
      _
    // Predicated region
    $region18: #{tpu_custom_call.1} parent=1 // pred_check
      _
    $region19: #{tpu_custom_call.1} parent=1 // pred_check_branch
      %23 = sbr.rel (0) target = $region21
    $region20: #{tpu_custom_call.1} parent=1 // pred_region
      _
    $region21: #{tpu_custom_call.1} parent=1 // pred_fallthru
      _
    // Predicated region
    $region22: #{tpu_custom_call.1} parent=1 // pred_check
      _
    $region23: #{tpu_custom_call.1} parent=1 // pred_check_branch
      %25 = sbr.rel (0) target = $region25
    $region24: #{tpu_custom_call.1} parent=1 // pred_region
      _
    $region25: #{tpu_custom_call.1} parent=1 // pred_fallthru
      _
    // Predicated region
    $region26: #{tpu_custom_call.1} parent=1 // pred_check
      _
    $region27: #{tpu_custom_call.1} parent=1 // pred_check_branch
      %27 = sbr.rel (0) target = $region29
    $region28: #{tpu_custom_call.1} parent=1 // pred_region
      _
    $region29: #{tpu_custom_call.1} parent=1 // pred_fallthru
      _
    // Predicated region
    $region30: #{tpu_custom_call.1} parent=1 // pred_check
      _
    $region31: #{tpu_custom_call.1} parent=1 // pred_check_branch
      %29 = sbr.rel (0) target = $region33
    $region32: #{tpu_custom_call.1} parent=1 // pred_region
      _
    $region33: #{tpu_custom_call.1} parent=1 // pred_fallthru
      _
    %v30 = vld [vmem:[%s2] sm:$0xff]
    %v31 = vld [vmem:[%s4] sm:$0xff]
    %v32 = vld [vmem:[%s4 + $0x8] sm:$0xff]
    %v33 = vld [vmem:[%s4 + $0x10] sm:$0xff]
    %v34 = vld [vmem:[%s4 + $0x18] sm:$0xff]
    %v35 = vld [vmem:[%s6] sm:$0xff]
    %v36 = vld [vmem:[%s6 + $0x8] sm:$0xff]
    %v37 = vld [vmem:[%s3] sm:$0x1]
    %v38 = vld [vmem:[%s5] sm:$0x1]
    %v39 = vld [vmem:[%s7] sm:$0x1]
    %v40 = vld [vmem:[%s0] sm:$0xff]
    %v41 = vld [vmem:[%s0 + $0x8] sm:$0xff]
    %v42 = vld [vmem:[%s0 + $0x10] sm:$0xff]
    %v43 = vld [vmem:[%s0 + $0x18] sm:$0xff]
    %v44 = vld [vmem:[%s1] sm:$0xff]
    %v45 = vld [vmem:[%s1 + $0x8] sm:$0xff]
    %v46 = vld [vmem:[%s1 + $0x10] sm:$0xff]
    %v47 = vld [vmem:[%s1 + $0x18] sm:$0xff]
    %v48 = vld [vmem:[%s1 + $0x20] sm:$0xff]
    %v49 = vld [vmem:[%s1 + $0x28] sm:$0xff]
    %v50 = vld [vmem:[%s1 + $0x30] sm:$0xff]
    %v51 = vld [vmem:[%s1 + $0x38] sm:$0xff]
    %v53 = vlaneseq
    %v54 = vshrl.u32 %v53, 7
    %v55 = vsub.s32 0, %v54
    %v56 = vrot.slane %v37, %v55
    %vm58 = vcmask 64512
    %v60 = vsel %vm58, %v40, 0
    %v63 = vsel %vm58, %v41, 0
    %v66 = vsel %vm58, %v42, 0
    %v69 = vsel %vm58, %v43, 0
    %71 = vmatprep.subr.mxu0 0.0
    %72 = vmatpush1.msra.mxu0 0.0
    %73 = vmatprep.subr.mxu0 0.0
    %74 = vmatpush1.msra.mxu0 0.0
    %75 = vmatprep.subr.mxu0 0.0
    %76 = vmatpush1.msra.mxu0 0.0
    %77 = vmatprep.subr.mxu0 0.0
    %78 = vmatpush1.msra.mxu0 0.0
    %79 = vmatprep.subr.mxu0 0.0
    %80 = vmatpush1.msra.mxu0 0.0
    %81 = vmatprep.subr.mxu0 0.0
    %82 = vmatpush1.msra.mxu0 0.0
    %83 = vmatprep.subr.mxu0 0.0
    %84 = vmatpush1.msra.mxu0 0.0
    %85 = vmatprep.subr.mxu0 0.0
    %86 = vmatpush1.msra.mxu0 0.0
    %87 = vmatprep.subr.mxu0 0.0
    %88 = vmatpush1.msra.mxu0 0.0
    %89 = vmatprep.subr.mxu0 0.0
    %90 = vmatpush1.msra.mxu0 0.0
    %91 = vmatprep.subr.mxu0 0.0
    %92 = vmatpush1.msra.mxu0 0.0
    %93 = vmatprep.subr.mxu0 0.0
    %94 = vmatpush1.msra.mxu0 0.0
    %95 = vmatprep.subr.mxu0 0.0
    %96 = vmatpush1.msra.mxu0 0.0
    %97 = vmatprep.subr.mxu0 0.0
    %98 = vmatpush1.msra.mxu0 0.0
    %99 = vmatprep.subr.mxu0 0.0
    %100 = vmatpush1.msra.mxu0 0.0
    %101 = vmatprep.subr.mxu0 0.0
    %102 = vmatpush1.msra.mxu0 %v30
    %103 = vmatprep.subr.mxu0 0.0
    %104 = vmatpush2.msra.mxu0 0.0
    %105 = vmatprep.subr.mxu0 0.0
    %106 = vmatpush2.msra.mxu0 0.0
    %107 = vmatprep.subr.mxu0 0.0
    %108 = vmatpush2.msra.mxu0 0.0
    %109 = vmatprep.subr.mxu0 0.0
    %110 = vmatpush2.msra.mxu0 0.0
    %111 = vmatprep.subr.mxu0 0.0
    %112 = vmatpush2.msra.mxu0 0.0
    %113 = vmatprep.subr.mxu0 0.0
    %114 = vmatpush2.msra.mxu0 0.0
    %115 = vmatprep.subr.mxu0 0.0
    %116 = vmatpush2.msra.mxu0 0.0
    %117 = vmatprep.subr.mxu0 0.0
    %118 = vmatpush2.msra.mxu0 0.0
    %119 = vmatprep.subr.mxu0 0.0
    %120 = vmatpush2.msra.mxu0 0.0
    %121 = vmatprep.subr.mxu0 0.0
    %122 = vmatpush2.msra.mxu0 0.0
    %123 = vmatprep.subr.mxu0 0.0
    %124 = vmatpush2.msra.mxu0 0.0
    %125 = vmatprep.subr.mxu0 0.0
    %126 = vmatpush2.msra.mxu0 0.0
    %127 = vmatprep.subr.mxu0 0.0
    %128 = vmatpush2.msra.mxu0 0.0
    %129 = vmatprep.subr.mxu0 0.0
    %130 = vmatpush2.msra.mxu0 0.0
    %131 = vmatprep.subr.mxu0 0.0
    %132 = vmatpush2.msra.mxu0 0.0
    %133 = vmatprep.subr.mxu0 0.0
    %134 = vmatpush2.msra.mxu0 0.0
    %135 = vmatprep.mubr.f32.mxu0 0.0
    %136 = vmatmul.mubr.f32.gmra.mxu0 %v60
    %v137 = vpop.f32.mrf.mxu0
    %v138 = vadd.f32 %v56, %v137
    %v139 = vpop.f32.mrf.mxu0
    %140 = vmatprep.mubr.f32.mxu0 0.0
    %141 = vmatmul.mubr.f32.gmra.mxu0 %v63
    %v142 = vpop.f32.mrf.mxu0
    %v143 = vadd.f32 %v56, %v142
    %v144 = vpop.f32.mrf.mxu0
    %145 = vmatprep.mubr.f32.mxu0 0.0
    %146 = vmatmul.mubr.f32.gmra.mxu0 %v66
    %v147 = vpop.f32.mrf.mxu0
    %v148 = vadd.f32 %v56, %v147
    %v149 = vpop.f32.mrf.mxu0
    %150 = vmatprep.mubr.f32.mxu0 0.0
    %151 = vmatmul.mubr.f32.gmra.mxu0 %v69
    %v152 = vpop.f32.mrf.mxu0
    %v153 = vadd.f32 %v56, %v152
    %v154 = vpop.f32.mrf.mxu0
    %155 = vdwg.mxu0
    %v157 = vlaneseq
    %v158 = vshrl.u32 %v157, 7
    %v159 = vsub.s32 0, %v158
    %v160 = vrot.slane %v38, %v159
    %vm162 = vcmask 261120
    %v164 = vsel %vm162, %v44, 0
    %v167 = vsel %vm162, %v45, 0
    %v170 = vsel %vm162, %v46, 0
    %v173 = vsel %vm162, %v47, 0
    %v176 = vsel %vm162, %v48, 0
    %v179 = vsel %vm162, %v49, 0
    %v182 = vsel %vm162, %v50, 0
    %v185 = vsel %vm162, %v51, 0
    %187 = vmatprep.subr.mxu0 0.0
    %188 = vmatpush1.msra.mxu0 0.0
    %189 = vmatprep.subr.mxu0 0.0
    %190 = vmatpush1.msra.mxu0 0.0
    %191 = vmatprep.subr.mxu0 0.0
    %192 = vmatpush1.msra.mxu0 0.0
    %193 = vmatprep.subr.mxu0 0.0
    %194 = vmatpush1.msra.mxu0 0.0
    %195 = vmatprep.subr.mxu0 0.0
    %196 = vmatpush1.msra.mxu0 0.0
    %197 = vmatprep.subr.mxu0 0.0
    %198 = vmatpush1.msra.mxu0 0.0
    %199 = vmatprep.subr.mxu0 0.0
    %200 = vmatpush1.msra.mxu0 0.0
    %201 = vmatprep.subr.mxu0 0.0
    %202 = vmatpush1.msra.mxu0 0.0
    %203 = vmatprep.subr.mxu0 0.0
    %204 = vmatpush1.msra.mxu0 0.0
    %205 = vmatprep.subr.mxu0 0.0
    %206 = vmatpush1.msra.mxu0 0.0
    %207 = vmatprep.subr.mxu0 0.0
    %208 = vmatpush1.msra.mxu0 0.0
    %209 = vmatprep.subr.mxu0 0.0
    %210 = vmatpush1.msra.mxu0 0.0
    %211 = vmatprep.subr.mxu0 0.0
    %212 = vmatpush1.msra.mxu0 %v34
    %213 = vmatprep.subr.mxu0 0.0
    %214 = vmatpush1.msra.mxu0 %v33
    %215 = vmatprep.subr.mxu0 0.0
    %216 = vmatpush1.msra.mxu0 %v32
    %217 = vmatprep.subr.mxu0 0.0
    %218 = vmatpush1.msra.mxu0 %v31
    %219 = vmatprep.subr.mxu0 0.0
    %220 = vmatpush2.msra.mxu0 0.0
    %221 = vmatprep.subr.mxu0 0.0
    %222 = vmatpush2.msra.mxu0 0.0
    %223 = vmatprep.subr.mxu0 0.0
    %224 = vmatpush2.msra.mxu0 0.0
    %225 = vmatprep.subr.mxu0 0.0
    %226 = vmatpush2.msra.mxu0 0.0
    %227 = vmatprep.subr.mxu0 0.0
    %228 = vmatpush2.msra.mxu0 0.0
    %229 = vmatprep.subr.mxu0 0.0
    %230 = vmatpush2.msra.mxu0 0.0
    %231 = vmatprep.subr.mxu0 0.0
    %232 = vmatpush2.msra.mxu0 0.0
    %233 = vmatprep.subr.mxu0 0.0
    %234 = vmatpush2.msra.mxu0 0.0
    %235 = vmatprep.subr.mxu0 0.0
    %236 = vmatpush2.msra.mxu0 0.0
    %237 = vmatprep.subr.mxu0 0.0
    %238 = vmatpush2.msra.mxu0 0.0
    %239 = vmatprep.subr.mxu0 0.0
    %240 = vmatpush2.msra.mxu0 0.0
    %241 = vmatprep.subr.mxu0 0.0
    %242 = vmatpush2.msra.mxu0 0.0
    %243 = vmatprep.subr.mxu0 0.0
    %244 = vmatpush2.msra.mxu0 0.0
    %245 = vmatprep.subr.mxu0 0.0
    %246 = vmatpush2.msra.mxu0 0.0
    %247 = vmatprep.subr.mxu0 0.0
    %248 = vmatpush2.msra.mxu0 0.0
    %249 = vmatprep.subr.mxu0 0.0
    %250 = vmatpush2.msra.mxu0 0.0
    %251 = vmatprep.mubr.f32.mxu0 0.0
    %252 = vmatmul.mubr.f32.gmra.mxu0 %v164
    %v253 = vpop.f32.mrf.mxu0
    %v254 = vadd.f32 %v160, %v253
    %v255 = vpop.f32.mrf.mxu0
    %256 = vmatprep.mubr.f32.mxu0 0.0
    %257 = vmatmul.mubr.f32.gmra.mxu0 %v167
    %v258 = vpop.f32.mrf.mxu0
    %v259 = vadd.f32 %v160, %v258
    %v260 = vpop.f32.mrf.mxu0
    %261 = vmatprep.mubr.f32.mxu0 0.0
    %262 = vmatmul.mubr.f32.gmra.mxu0 %v170
    %v263 = vpop.f32.mrf.mxu0
    %v264 = vadd.f32 %v160, %v263
    %v265 = vpop.f32.mrf.mxu0
    %266 = vmatprep.mubr.f32.mxu0 0.0
    %267 = vmatmul.mubr.f32.gmra.mxu0 %v173
    %v268 = vpop.f32.mrf.mxu0
    %v269 = vadd.f32 %v160, %v268
    %v270 = vpop.f32.mrf.mxu0
    %271 = vmatprep.mubr.f32.mxu0 0.0
    %272 = vmatmul.mubr.f32.gmra.mxu0 %v176
    %v273 = vpop.f32.mrf.mxu0
    %v274 = vadd.f32 %v160, %v273
    %v275 = vpop.f32.mrf.mxu0
    %276 = vmatprep.mubr.f32.mxu0 0.0
    %277 = vmatmul.mubr.f32.gmra.mxu0 %v179
    %v278 = vpop.f32.mrf.mxu0
    %v279 = vadd.f32 %v160, %v278
    %v280 = vpop.f32.mrf.mxu0
    %281 = vmatprep.mubr.f32.mxu0 0.0
    %282 = vmatmul.mubr.f32.gmra.mxu0 %v182
    %v283 = vpop.f32.mrf.mxu0
    %v284 = vadd.f32 %v160, %v283
    %v285 = vpop.f32.mrf.mxu0
    %286 = vmatprep.mubr.f32.mxu0 0.0
    %287 = vmatmul.mubr.f32.gmra.mxu0 %v185
    %v288 = vpop.f32.mrf.mxu0
    %v289 = vadd.f32 %v160, %v288
    %v290 = vpop.f32.mrf.mxu0
    %291 = vdwg.mxu0
    %v293 = vsel %vm58, %v138, 0
    %v296 = vsel %vm58, %v143, 0
    %v299 = vsel %vm58, %v148, 0
    %v302 = vsel %vm58, %v153, 0
    %v305 = vsel %vm58, %v254, 0
    %v308 = vsel %vm58, %v259, 0
    %v311 = vsel %vm58, %v264, 0
    %v314 = vsel %vm58, %v269, 0
    %v317 = vsel %vm58, %v274, 0
    %v320 = vsel %vm58, %v279, 0
    %v323 = vsel %vm58, %v284, 0
    %v326 = vsel %vm58, %v289, 0
    %328 = vmatprep.subr.mxu0 0.0
    %329 = vmatpush1.xpose.msra.mxu0 0.0
    %330 = vmatprep.subr.mxu0 0.0
    %331 = vmatpush1.xpose.msra.mxu0 0.0
    %332 = vmatprep.subr.mxu0 0.0
    %333 = vmatpush1.xpose.msra.mxu0 0.0
    %334 = vmatprep.subr.mxu0 0.0
    %335 = vmatpush1.xpose.msra.mxu0 0.0
    %336 = vmatprep.subr.mxu0 0.0
    %337 = vmatpush1.xpose.msra.mxu0 0.0
    %338 = vmatprep.subr.mxu0 0.0
    %339 = vmatpush1.xpose.msra.mxu0 0.0
    %340 = vmatprep.subr.mxu0 0.0
    %341 = vmatpush1.xpose.msra.mxu0 0.0
    %342 = vmatprep.subr.mxu0 0.0
    %343 = vmatpush1.xpose.msra.mxu0 0.0
    %344 = vmatprep.subr.mxu0 0.0
    %345 = vmatpush1.xpose.msra.mxu0 %v326
    %346 = vmatprep.subr.mxu0 0.0
    %347 = vmatpush1.xpose.msra.mxu0 %v323
    %348 = vmatprep.subr.mxu0 0.0
    %349 = vmatpush1.xpose.msra.mxu0 %v320
    %350 = vmatprep.subr.mxu0 0.0
    %351 = vmatpush1.xpose.msra.mxu0 %v317
    %352 = vmatprep.subr.mxu0 0.0
    %353 = vmatpush1.xpose.msra.mxu0 %v314
    %354 = vmatprep.subr.mxu0 0.0
    %355 = vmatpush1.xpose.msra.mxu0 %v311
    %356 = vmatprep.subr.mxu0 0.0
    %357 = vmatpush1.xpose.msra.mxu0 %v308
    %358 = vmatprep.subr.mxu0 0.0
    %359 = vmatpush1.xpose.msra.mxu0 %v305
    %360 = vmatprep.subr.mxu0 0.0
    %361 = vmatpush2.xpose.msra.mxu0 0.0
    %362 = vmatprep.subr.mxu0 0.0
    %363 = vmatpush2.xpose.msra.mxu0 0.0
    %364 = vmatprep.subr.mxu0 0.0
    %365 = vmatpush2.xpose.msra.mxu0 0.0
    %366 = vmatprep.subr.mxu0 0.0
    %367 = vmatpush2.xpose.msra.mxu0 0.0
    %368 = vmatprep.subr.mxu0 0.0
    %369 = vmatpush2.xpose.msra.mxu0 0.0
    %370 = vmatprep.subr.mxu0 0.0
    %371 = vmatpush2.xpose.msra.mxu0 0.0
    %372 = vmatprep.subr.mxu0 0.0
    %373 = vmatpush2.xpose.msra.mxu0 0.0
    %374 = vmatprep.subr.mxu0 0.0
    %375 = vmatpush2.xpose.msra.mxu0 0.0
    %376 = vmatprep.subr.mxu0 0.0
    %377 = vmatpush2.xpose.msra.mxu0 0.0
    %378 = vmatprep.subr.mxu0 0.0
    %379 = vmatpush2.xpose.msra.mxu0 0.0
    %380 = vmatprep.subr.mxu0 0.0
    %381 = vmatpush2.xpose.msra.mxu0 0.0
    %382 = vmatprep.subr.mxu0 0.0
    %383 = vmatpush2.xpose.msra.mxu0 0.0
    %384 = vmatprep.subr.mxu0 0.0
    %385 = vmatpush2.xpose.msra.mxu0 0.0
    %386 = vmatprep.subr.mxu0 0.0
    %387 = vmatpush2.xpose.msra.mxu0 0.0
    %388 = vmatprep.subr.mxu0 0.0
    %389 = vmatpush2.xpose.msra.mxu0 0.0
    %390 = vmatprep.subr.mxu0 0.0
    %391 = vmatpush2.xpose.msra.mxu0 0.0
    %392 = vmatprep.mubr.f32.mxu0 0.0
    %393 = vmatmul.mubr.f32.gmra.mxu0 %v293
    %v394 = vpop.f32.mrf.mxu0
    %v395 = vadd.f32 0.0, %v394
    %v396 = vpop.f32.mrf.mxu0
    %397 = vmatprep.mubr.f32.mxu0 0.0
    %398 = vmatmul.mubr.f32.gmra.mxu0 %v296
    %v399 = vpop.f32.mrf.mxu0
    %v400 = vadd.f32 0.0, %v399
    %v401 = vpop.f32.mrf.mxu0
    %402 = vmatprep.mubr.f32.mxu0 0.0
    %403 = vmatmul.mubr.f32.gmra.mxu0 %v299
    %v404 = vpop.f32.mrf.mxu0
    %v405 = vadd.f32 0.0, %v404
    %v406 = vpop.f32.mrf.mxu0
    %407 = vmatprep.mubr.f32.mxu0 0.0
    %408 = vmatmul.mubr.f32.gmra.mxu0 %v302
    %v409 = vpop.f32.mrf.mxu0
    %v410 = vadd.f32 0.0, %v409
    %v411 = vpop.f32.mrf.mxu0
    %412 = vdwg.mxu0
    %vm413 = vcmask 130048
    %v414 = vsel %vm413, %v395, -inf
    %415 = vmax.xlane.f32.xlu0 %v414
    %v416 = vpop.xlane.xlu0 %415
    %v417 = vrot.slane %v416, 4
    %v418 = vmax.f32 %v416, %v417
    %v419 = vrot.slane %v418, 2
    %v420 = vmax.f32 %v418, %v419
    %v421 = vrot.slane %v420, 1
    %v422 = vmax.f32 %v420, %v421
    %s423 = vtos %v422
    %v424 = vstv %s423
    %v425 = vsub.f32 %v395, %v424
    %v426 = vmul.f32 %v425, 1.442695
    %v427 = vpow.pop %v426
    %v428 = vsel %vm413, %v427, 0.0
    %v429 = vrot.slane %v428, 4
    %v430 = vadd.f32 %v428, %v429
    %v431 = vrot.slane %v430, 2
    %v432 = vadd.f32 %v430, %v431
    %v433 = vrot.slane %v432, 1
    %v434 = vadd.f32 %v432, %v433
    %435 = vadd.xlane.f32.xlu0 %v428
    %v436 = vpop.xlane.xlu0 %435
    %v437 = vrcp.pop %v434
    %v438 = vmul.f32 %v434, %v437
    %v439 = vsub.f32 2.0, %v438
    %v440 = vmul.f32 %v437, %v439
    %v441 = vrcp.pop %v436
    %v442 = vmul.f32 %v436, %v441
    %v443 = vsub.f32 2.0, %v442
    %v444 = vmul.f32 %v441, %v443
    %v445 = vmul.f32 %v427, %v440
    %v446 = vmul.f32 %v427, %v444
    %v448 = vsel %vm413, %v445, 0
    %450 = vmatprep.subr.mxu0 0.0
    %451 = vmatpush1.msra.mxu0 0.0
    %452 = vmatprep.subr.mxu0 0.0
    %453 = vmatpush1.msra.mxu0 0.0
    %454 = vmatprep.subr.mxu0 0.0
    %455 = vmatpush1.msra.mxu0 0.0
    %456 = vmatprep.subr.mxu0 0.0
    %457 = vmatpush1.msra.mxu0 0.0
    %458 = vmatprep.subr.mxu0 0.0
    %459 = vmatpush1.msra.mxu0 0.0
    %460 = vmatprep.subr.mxu0 0.0
    %461 = vmatpush1.msra.mxu0 0.0
    %462 = vmatprep.subr.mxu0 0.0
    %463 = vmatpush1.msra.mxu0 0.0
    %464 = vmatprep.subr.mxu0 0.0
    %465 = vmatpush1.msra.mxu0 0.0
    %466 = vmatprep.subr.mxu0 0.0
    %467 = vmatpush1.msra.mxu0 0.0
    %468 = vmatprep.subr.mxu0 0.0
    %469 = vmatpush1.msra.mxu0 0.0
    %470 = vmatprep.subr.mxu0 0.0
    %471 = vmatpush1.msra.mxu0 0.0
    %472 = vmatprep.subr.mxu0 0.0
    %473 = vmatpush1.msra.mxu0 0.0
    %474 = vmatprep.subr.mxu0 0.0
    %475 = vmatpush1.msra.mxu0 0.0
    %476 = vmatprep.subr.mxu0 0.0
    %477 = vmatpush1.msra.mxu0 0.0
    %478 = vmatprep.subr.mxu0 0.0
    %479 = vmatpush1.msra.mxu0 %v259
    %480 = vmatprep.subr.mxu0 0.0
    %481 = vmatpush1.msra.mxu0 %v254
    %482 = vmatprep.subr.mxu0 0.0
    %483 = vmatpush2.msra.mxu0 0.0
    %484 = vmatprep.subr.mxu0 0.0
    %485 = vmatpush2.msra.mxu0 0.0
    %486 = vmatprep.subr.mxu0 0.0
    %487 = vmatpush2.msra.mxu0 0.0
    %488 = vmatprep.subr.mxu0 0.0
    %489 = vmatpush2.msra.mxu0 0.0
    %490 = vmatprep.subr.mxu0 0.0
    %491 = vmatpush2.msra.mxu0 0.0
    %492 = vmatprep.subr.mxu0 0.0
    %493 = vmatpush2.msra.mxu0 0.0
    %494 = vmatprep.subr.mxu0 0.0
    %495 = vmatpush2.msra.mxu0 0.0
    %496 = vmatprep.subr.mxu0 0.0
    %497 = vmatpush2.msra.mxu0 0.0
    %498 = vmatprep.subr.mxu0 0.0
    %499 = vmatpush2.msra.mxu0 0.0
    %500 = vmatprep.subr.mxu0 0.0
    %501 = vmatpush2.msra.mxu0 0.0
    %502 = vmatprep.subr.mxu0 0.0
    %503 = vmatpush2.msra.mxu0 0.0
    %504 = vmatprep.subr.mxu0 0.0
    %505 = vmatpush2.msra.mxu0 0.0
    %506 = vmatprep.subr.mxu0 0.0
    %507 = vmatpush2.msra.mxu0 0.0
    %508 = vmatprep.subr.mxu0 0.0
    %509 = vmatpush2.msra.mxu0 0.0
    %510 = vmatprep.subr.mxu0 0.0
    %511 = vmatpush2.msra.mxu0 0.0
    %512 = vmatprep.subr.mxu0 0.0
    %513 = vmatpush2.msra.mxu0 0.0
    %514 = vmatprep.mubr.f32.mxu0 0.0
    %515 = vmatmul.mubr.f32.gmra.mxu0 %v448
    %v516 = vpop.f32.mrf.mxu0
    %v517 = vadd.f32 0.0, %v516
    %v518 = vpop.f32.mrf.mxu0
    %519 = vdwg.mxu0
    %v521 = vsel %vm413, %v446, 0
    %523 = vmatprep.subr.mxu0 0.0
    %524 = vmatpush1.msra.mxu0 0.0
    %525 = vmatprep.subr.mxu0 0.0
    %526 = vmatpush1.msra.mxu0 0.0
    %527 = vmatprep.subr.mxu0 0.0
    %528 = vmatpush1.msra.mxu0 0.0
    %529 = vmatprep.subr.mxu0 0.0
    %530 = vmatpush1.msra.mxu0 0.0
    %531 = vmatprep.subr.mxu0 0.0
    %532 = vmatpush1.msra.mxu0 0.0
    %533 = vmatprep.subr.mxu0 0.0
    %534 = vmatpush1.msra.mxu0 0.0
    %535 = vmatprep.subr.mxu0 0.0
    %536 = vmatpush1.msra.mxu0 0.0
    %537 = vmatprep.subr.mxu0 0.0
    %538 = vmatpush1.msra.mxu0 0.0
    %539 = vmatprep.subr.mxu0 0.0
    %540 = vmatpush1.msra.mxu0 0.0
    %541 = vmatprep.subr.mxu0 0.0
    %542 = vmatpush1.msra.mxu0 0.0
    %543 = vmatprep.subr.mxu0 0.0
    %544 = vmatpush1.msra.mxu0 0.0
    %545 = vmatprep.subr.mxu0 0.0
    %546 = vmatpush1.msra.mxu0 0.0
    %547 = vmatprep.subr.mxu0 0.0
    %548 = vmatpush1.msra.mxu0 0.0
    %549 = vmatprep.subr.mxu0 0.0
    %550 = vmatpush1.msra.mxu0 0.0
    %551 = vmatprep.subr.mxu0 0.0
    %552 = vmatpush1.msra.mxu0 %v36
    %553 = vmatprep.subr.mxu0 0.0
    %554 = vmatpush1.msra.mxu0 %v35
    %555 = vmatprep.subr.mxu0 0.0
    %556 = vmatpush2.msra.mxu0 0.0
    %557 = vmatprep.subr.mxu0 0.0
    %558 = vmatpush2.msra.mxu0 0.0
    %559 = vmatprep.subr.mxu0 0.0
    %560 = vmatpush2.msra.mxu0 0.0
    %561 = vmatprep.subr.mxu0 0.0
    %562 = vmatpush2.msra.mxu0 0.0
    %563 = vmatprep.subr.mxu0 0.0
    %564 = vmatpush2.msra.mxu0 0.0
    %565 = vmatprep.subr.mxu0 0.0
    %566 = vmatpush2.msra.mxu0 0.0
    %567 = vmatprep.subr.mxu0 0.0
    %568 = vmatpush2.msra.mxu0 0.0
    %569 = vmatprep.subr.mxu0 0.0
    %570 = vmatpush2.msra.mxu0 0.0
    %571 = vmatprep.subr.mxu0 0.0
    %572 = vmatpush2.msra.mxu0 0.0
    %573 = vmatprep.subr.mxu0 0.0
    %574 = vmatpush2.msra.mxu0 0.0
    %575 = vmatprep.subr.mxu0 0.0
    %576 = vmatpush2.msra.mxu0 0.0
    %577 = vmatprep.subr.mxu0 0.0
    %578 = vmatpush2.msra.mxu0 0.0
    %579 = vmatprep.subr.mxu0 0.0
    %580 = vmatpush2.msra.mxu0 0.0
    %581 = vmatprep.subr.mxu0 0.0
    %582 = vmatpush2.msra.mxu0 0.0
    %583 = vmatprep.subr.mxu0 0.0
    %584 = vmatpush2.msra.mxu0 0.0
    %585 = vmatprep.subr.mxu0 0.0
    %586 = vmatpush2.msra.mxu0 0.0
    %587 = vmatprep.mubr.f32.mxu0 0.0
    %588 = vmatmul.mubr.f32.gmra.mxu0 %v521
    %v589 = vpop.f32.mrf.mxu0
    %v590 = vadd.f32 0.0, %v589
    %v591 = vpop.f32.mrf.mxu0
    %592 = vdwg.mxu0
    %v594 = vlaneseq
    %v595 = vshrl.u32 %v594, 7
    %v596 = vsub.s32 0, %v595
    %v597 = vrot.slane %v39, %v596
    %599 = vxpose.xlu0.b32.start [1/16] %v40, 128
    %600 = vxpose.xlu0.b32.cont [2/16] 0.0, 128
    %601 = vxpose.xlu0.b32.cont [3/16] 0.0, 128
    %602 = vxpose.xlu0.b32.cont [4/16] 0.0, 128
    %603 = vxpose.xlu0.b32.cont [5/16] 0.0, 128
    %604 = vxpose.xlu0.b32.cont [6/16] 0.0, 128
    %605 = vxpose.xlu0.b32.cont [7/16] 0.0, 128
    %606 = vxpose.xlu0.b32.cont [8/16] 0.0, 128
    %607 = vxpose.xlu0.b32.cont [9/16] 0.0, 128
    %608 = vxpose.xlu0.b32.cont [10/16] 0.0, 128
    %609 = vxpose.xlu0.b32.cont [11/16] 0.0, 128
    %610 = vxpose.xlu0.b32.cont [12/16] 0.0, 128
    %611 = vxpose.xlu0.b32.cont [13/16] 0.0, 128
    %612 = vxpose.xlu0.b32.cont [14/16] 0.0, 128
    %613 = vxpose.xlu0.b32.cont [15/16] 0.0, 128
    %614 = vxpose.xlu0.b32.end [16/16] 0.0, 128
    %v615 = vpop.trf.xlu0
    %v616 = vpop.trf.xlu0
    %v617 = vpop.trf.xlu0
    %v618 = vpop.trf.xlu0
    %v619 = vpop.trf.xlu0
    %v620 = vpop.trf.xlu0
    %v621 = vpop.trf.xlu0
    %v622 = vpop.trf.xlu0
    %v623 = vpop.trf.xlu0
    %v624 = vpop.trf.xlu0
    %v625 = vpop.trf.xlu0
    %v626 = vpop.trf.xlu0
    %v627 = vpop.trf.xlu0
    %v628 = vpop.trf.xlu0
    %v629 = vpop.trf.xlu0
    %v630 = vpop.trf.xlu0
    %v632 = vsel %vm58, %v615, 0
    %634 = vmatprep.subr.mxu0 0.0
    %635 = vmatpush1.msra.mxu0 0.0
    %636 = vmatprep.subr.mxu0 0.0
    %637 = vmatpush1.msra.mxu0 0.0
    %638 = vmatprep.subr.mxu0 0.0
    %639 = vmatpush1.msra.mxu0 0.0
    %640 = vmatprep.subr.mxu0 0.0
    %641 = vmatpush1.msra.mxu0 0.0
    %642 = vmatprep.subr.mxu0 0.0
    %643 = vmatpush1.msra.mxu0 0.0
    %644 = vmatprep.subr.mxu0 0.0
    %645 = vmatpush1.msra.mxu0 0.0
    %646 = vmatprep.subr.mxu0 0.0
    %647 = vmatpush1.msra.mxu0 0.0
    %648 = vmatprep.subr.mxu0 0.0
    %649 = vmatpush1.msra.mxu0 0.0
    %650 = vmatprep.subr.mxu0 0.0
    %651 = vmatpush1.msra.mxu0 0.0
    %652 = vmatprep.subr.mxu0 0.0
    %653 = vmatpush1.msra.mxu0 0.0
    %654 = vmatprep.subr.mxu0 0.0
    %655 = vmatpush1.msra.mxu0 0.0
    %656 = vmatprep.subr.mxu0 0.0
    %657 = vmatpush1.msra.mxu0 0.0
    %658 = vmatprep.subr.mxu0 0.0
    %659 = vmatpush1.msra.mxu0 0.0
    %660 = vmatprep.subr.mxu0 0.0
    %661 = vmatpush1.msra.mxu0 0.0
    %662 = vmatprep.subr.mxu0 0.0
    %663 = vmatpush1.msra.mxu0 0.0
    %664 = vmatprep.subr.mxu0 0.0
    %665 = vmatpush1.msra.mxu0 %v590
    %666 = vmatprep.subr.mxu0 0.0
    %667 = vmatpush2.msra.mxu0 0.0
    %668 = vmatprep.subr.mxu0 0.0
    %669 = vmatpush2.msra.mxu0 0.0
    %670 = vmatprep.subr.mxu0 0.0
    %671 = vmatpush2.msra.mxu0 0.0
    %672 = vmatprep.subr.mxu0 0.0
    %673 = vmatpush2.msra.mxu0 0.0
    %674 = vmatprep.subr.mxu0 0.0
    %675 = vmatpush2.msra.mxu0 0.0
    %676 = vmatprep.subr.mxu0 0.0
    %677 = vmatpush2.msra.mxu0 0.0
    %678 = vmatprep.subr.mxu0 0.0
    %679 = vmatpush2.msra.mxu0 0.0
    %680 = vmatprep.subr.mxu0 0.0
    %681 = vmatpush2.msra.mxu0 0.0
    %682 = vmatprep.subr.mxu0 0.0
    %683 = vmatpush2.msra.mxu0 0.0
    %684 = vmatprep.subr.mxu0 0.0
    %685 = vmatpush2.msra.mxu0 0.0
    %686 = vmatprep.subr.mxu0 0.0
    %687 = vmatpush2.msra.mxu0 0.0
    %688 = vmatprep.subr.mxu0 0.0
    %689 = vmatpush2.msra.mxu0 0.0
    %690 = vmatprep.subr.mxu0 0.0
    %691 = vmatpush2.msra.mxu0 0.0
    %692 = vmatprep.subr.mxu0 0.0
    %693 = vmatpush2.msra.mxu0 0.0
    %694 = vmatprep.subr.mxu0 0.0
    %695 = vmatpush2.msra.mxu0 0.0
    %696 = vmatprep.subr.mxu0 0.0
    %697 = vmatpush2.msra.mxu0 0.0
    %698 = vmatprep.mubr.f32.mxu0 0.0
    %699 = vmatmul.mubr.f32.gmra.mxu0 %v632
    %v700 = vpop.f32.mrf.mxu0
    %v701 = vadd.f32 %v597, %v700
    %v702 = vpop.f32.mrf.mxu0
    %703 = vdwg.mxu0
    %704 = vxpose.xlu0.b32.start [1/16] %v517, 128
    %705 = vxpose.xlu0.b32.cont [2/16] 0.0, 128
    %706 = vxpose.xlu0.b32.cont [3/16] 0.0, 128
    %707 = vxpose.xlu0.b32.cont [4/16] 0.0, 128
    %708 = vxpose.xlu0.b32.cont [5/16] 0.0, 128
    %709 = vxpose.xlu0.b32.cont [6/16] 0.0, 128
    %710 = vxpose.xlu0.b32.cont [7/16] 0.0, 128
    %711 = vxpose.xlu0.b32.cont [8/16] 0.0, 128
    %712 = vxpose.xlu0.b32.cont [9/16] 0.0, 128
    %713 = vxpose.xlu0.b32.cont [10/16] 0.0, 128
    %714 = vxpose.xlu0.b32.cont [11/16] 0.0, 128
    %715 = vxpose.xlu0.b32.cont [12/16] 0.0, 128
    %716 = vxpose.xlu0.b32.cont [13/16] 0.0, 128
    %717 = vxpose.xlu0.b32.cont [14/16] 0.0, 128
    %718 = vxpose.xlu0.b32.cont [15/16] 0.0, 128
    %719 = vxpose.xlu0.b32.end [16/16] 0.0, 128
    %v720 = vpop.trf.xlu0
    %v721 = vpop.trf.xlu0
    %v722 = vpop.trf.xlu0
    %v723 = vpop.trf.xlu0
    %v724 = vpop.trf.xlu0
    %v725 = vpop.trf.xlu0
    %v726 = vpop.trf.xlu0
    %v727 = vpop.trf.xlu0
    %v728 = vpop.trf.xlu0
    %v729 = vpop.trf.xlu0
    %v730 = vpop.trf.xlu0
    %v731 = vpop.trf.xlu0
    %v732 = vpop.trf.xlu0
    %v733 = vpop.trf.xlu0
    %v734 = vpop.trf.xlu0
    %v735 = vpop.trf.xlu0
    %v737 = vsel %vm58, %v720, 0
    %739 = vmatprep.subr.mxu0 0.0
    %740 = vmatpush1.msra.mxu0 0.0
    %741 = vmatprep.subr.mxu0 0.0
    %742 = vmatpush1.msra.mxu0 0.0
    %743 = vmatprep.subr.mxu0 0.0
    %744 = vmatpush1.msra.mxu0 0.0
    %745 = vmatprep.subr.mxu0 0.0
    %746 = vmatpush1.msra.mxu0 0.0
    %747 = vmatprep.subr.mxu0 0.0
    %748 = vmatpush1.msra.mxu0 0.0
    %749 = vmatprep.subr.mxu0 0.0
    %750 = vmatpush1.msra.mxu0 0.0
    %751 = vmatprep.subr.mxu0 0.0
    %752 = vmatpush1.msra.mxu0 0.0
    %753 = vmatprep.subr.mxu0 0.0
    %754 = vmatpush1.msra.mxu0 0.0
    %755 = vmatprep.subr.mxu0 0.0
    %756 = vmatpush1.msra.mxu0 0.0
    %757 = vmatprep.subr.mxu0 0.0
    %758 = vmatpush1.msra.mxu0 0.0
    %759 = vmatprep.subr.mxu0 0.0
    %760 = vmatpush1.msra.mxu0 0.0
    %761 = vmatprep.subr.mxu0 0.0
    %762 = vmatpush1.msra.mxu0 0.0
    %763 = vmatprep.subr.mxu0 0.0
    %764 = vmatpush1.msra.mxu0 0.0
    %765 = vmatprep.subr.mxu0 0.0
    %766 = vmatpush1.msra.mxu0 0.0
    %767 = vmatprep.subr.mxu0 0.0
    %768 = vmatpush1.msra.mxu0 0.0
    %769 = vmatprep.subr.mxu0 0.0
    %770 = vmatpush1.msra.mxu0 %v590
    %771 = vmatprep.subr.mxu0 0.0
    %772 = vmatpush2.msra.mxu0 0.0
    %773 = vmatprep.subr.mxu0 0.0
    %774 = vmatpush2.msra.mxu0 0.0
    %775 = vmatprep.subr.mxu0 0.0
    %776 = vmatpush2.msra.mxu0 0.0
    %777 = vmatprep.subr.mxu0 0.0
    %778 = vmatpush2.msra.mxu0 0.0
    %779 = vmatprep.subr.mxu0 0.0
    %780 = vmatpush2.msra.mxu0 0.0
    %781 = vmatprep.subr.mxu0 0.0
    %782 = vmatpush2.msra.mxu0 0.0
    %783 = vmatprep.subr.mxu0 0.0
    %784 = vmatpush2.msra.mxu0 0.0
    %785 = vmatprep.subr.mxu0 0.0
    %786 = vmatpush2.msra.mxu0 0.0
    %787 = vmatprep.subr.mxu0 0.0
    %788 = vmatpush2.msra.mxu0 0.0
    %789 = vmatprep.subr.mxu0 0.0
    %790 = vmatpush2.msra.mxu0 0.0
    %791 = vmatprep.subr.mxu0 0.0
    %792 = vmatpush2.msra.mxu0 0.0
    %793 = vmatprep.subr.mxu0 0.0
    %794 = vmatpush2.msra.mxu0 0.0
    %795 = vmatprep.subr.mxu0 0.0
    %796 = vmatpush2.msra.mxu0 0.0
    %797 = vmatprep.subr.mxu0 0.0
    %798 = vmatpush2.msra.mxu0 0.0
    %799 = vmatprep.subr.mxu0 0.0
    %800 = vmatpush2.msra.mxu0 0.0
    %801 = vmatprep.subr.mxu0 0.0
    %802 = vmatpush2.msra.mxu0 0.0
    %803 = vmatprep.mubr.f32.mxu0 0.0
    %804 = vmatmul.mubr.f32.gmra.mxu0 %v737
    %v805 = vpop.f32.mrf.mxu0
    %v806 = vadd.f32 %v597, %v805
    %v807 = vpop.f32.mrf.mxu0
    %808 = vdwg.mxu0
    %809 = vst.msk [vmem:[#allocation2] sm:$0xff] %vm58, %v701
    %810 = vst.msk [vmem:[#allocation2 + $0x8] sm:$0xff] %vm58, %v806
    %vm811 = vcmask 261248
    %v812 = vsel %vm811, %v400, -inf
    %813 = vmax.xlane.f32.xlu0 %v812
    %v814 = vpop.xlane.xlu0 %813
    %v815 = vrot.slane %v814, 4
    %v816 = vmax.f32 %v814, %v815
    %v817 = vrot.slane %v816, 2
    %v818 = vmax.f32 %v816, %v817
    %v819 = vrot.slane %v818, 1
    %v820 = vmax.f32 %v818, %v819
    %s821 = vtos %v820
    %v822 = vstv %s821
    %v823 = vsub.f32 %v400, %v822
    %v824 = vmul.f32 %v823, 1.442695
    %v825 = vpow.pop %v824
    %v826 = vsel %vm811, %v825, 0.0
    %v827 = vrot.slane %v826, 4
    %v828 = vadd.f32 %v826, %v827
    %v829 = vrot.slane %v828, 2
    %v830 = vadd.f32 %v828, %v829
    %v831 = vrot.slane %v830, 1
    %v832 = vadd.f32 %v830, %v831
    %834 = vrot.lane.b32.xlu0 %v825, 112
    %v835 = vpop.permute.xlu0 %834
    %v837 = vsel %vm413, %v835, 0.0
    %838 = vadd.xlane.f32.xlu0 %v837
    %v839 = vpop.xlane.xlu0 %838
    %v840 = vrcp.pop %v832
    %v841 = vmul.f32 %v832, %v840
    %v842 = vsub.f32 2.0, %v841
    %v843 = vmul.f32 %v840, %v842
    %v844 = vrcp.pop %v839
    %v845 = vmul.f32 %v839, %v844
    %v846 = vsub.f32 2.0, %v845
    %v847 = vmul.f32 %v844, %v846
    %v848 = vmul.f32 %v825, %v843
    %v849 = vmul.f32 %v825, %v847
    %851 = vrot.lane.b32.xlu0 %v848, 112
    %v852 = vpop.permute.xlu0 %851
    %v853 = vsel %vm413, %v852, 0
    %855 = vmatprep.subr.mxu0 0.0
    %856 = vmatpush1.msra.mxu0 0.0
    %857 = vmatprep.subr.mxu0 0.0
    %858 = vmatpush1.msra.mxu0 0.0
    %859 = vmatprep.subr.mxu0 0.0
    %860 = vmatpush1.msra.mxu0 0.0
    %861 = vmatprep.subr.mxu0 0.0
    %862 = vmatpush1.msra.mxu0 0.0
    %863 = vmatprep.subr.mxu0 0.0
    %864 = vmatpush1.msra.mxu0 0.0
    %865 = vmatprep.subr.mxu0 0.0
    %866 = vmatpush1.msra.mxu0 0.0
    %867 = vmatprep.subr.mxu0 0.0
    %868 = vmatpush1.msra.mxu0 0.0
    %869 = vmatprep.subr.mxu0 0.0
    %870 = vmatpush1.msra.mxu0 0.0
    %871 = vmatprep.subr.mxu0 0.0
    %872 = vmatpush1.msra.mxu0 0.0
    %873 = vmatprep.subr.mxu0 0.0
    %874 = vmatpush1.msra.mxu0 0.0
    %875 = vmatprep.subr.mxu0 0.0
    %876 = vmatpush1.msra.mxu0 0.0
    %877 = vmatprep.subr.mxu0 0.0
    %878 = vmatpush1.msra.mxu0 0.0
    %879 = vmatprep.subr.mxu0 0.0
    %880 = vmatpush1.msra.mxu0 0.0
    %881 = vmatprep.subr.mxu0 0.0
    %882 = vmatpush1.msra.mxu0 0.0
    %883 = vmatprep.subr.mxu0 0.0
    %884 = vmatpush1.msra.mxu0 %v269
    %885 = vmatprep.subr.mxu0 0.0
    %886 = vmatpush1.msra.mxu0 %v264
    %887 = vmatprep.subr.mxu0 0.0
    %888 = vmatpush2.msra.mxu0 0.0
    %889 = vmatprep.subr.mxu0 0.0
    %890 = vmatpush2.msra.mxu0 0.0
    %891 = vmatprep.subr.mxu0 0.0
    %892 = vmatpush2.msra.mxu0 0.0
    %893 = vmatprep.subr.mxu0 0.0
    %894 = vmatpush2.msra.mxu0 0.0
    %895 = vmatprep.subr.mxu0 0.0
    %896 = vmatpush2.msra.mxu0 0.0
    %897 = vmatprep.subr.mxu0 0.0
    %898 = vmatpush2.msra.mxu0 0.0
    %899 = vmatprep.subr.mxu0 0.0
    %900 = vmatpush2.msra.mxu0 0.0
    %901 = vmatprep.subr.mxu0 0.0
    %902 = vmatpush2.msra.mxu0 0.0
    %903 = vmatprep.subr.mxu0 0.0
    %904 = vmatpush2.msra.mxu0 0.0
    %905 = vmatprep.subr.mxu0 0.0
    %906 = vmatpush2.msra.mxu0 0.0
    %907 = vmatprep.subr.mxu0 0.0
    %908 = vmatpush2.msra.mxu0 0.0
    %909 = vmatprep.subr.mxu0 0.0
    %910 = vmatpush2.msra.mxu0 0.0
    %911 = vmatprep.subr.mxu0 0.0
    %912 = vmatpush2.msra.mxu0 0.0
    %913 = vmatprep.subr.mxu0 0.0
    %914 = vmatpush2.msra.mxu0 0.0
    %915 = vmatprep.subr.mxu0 0.0
    %916 = vmatpush2.msra.mxu0 0.0
    %917 = vmatprep.subr.mxu0 0.0
    %918 = vmatpush2.msra.mxu0 0.0
    %919 = vmatprep.mubr.f32.mxu0 0.0
    %920 = vmatmul.mubr.f32.gmra.mxu0 %v853
    %v921 = vpop.f32.mrf.mxu0
    %v922 = vadd.f32 0.0, %v921
    %v923 = vpop.f32.mrf.mxu0
    %924 = vdwg.mxu0
    %926 = vrot.lane.b32.xlu0 %v849, 112
    %v927 = vpop.permute.xlu0 %926
    %v928 = vsel %vm413, %v927, 0
    %930 = vmatprep.subr.mxu0 0.0
    %931 = vmatpush1.msra.mxu0 0.0
    %932 = vmatprep.subr.mxu0 0.0
    %933 = vmatpush1.msra.mxu0 0.0
    %934 = vmatprep.subr.mxu0 0.0
    %935 = vmatpush1.msra.mxu0 0.0
    %936 = vmatprep.subr.mxu0 0.0
    %937 = vmatpush1.msra.mxu0 0.0
    %938 = vmatprep.subr.mxu0 0.0
    %939 = vmatpush1.msra.mxu0 0.0
    %940 = vmatprep.subr.mxu0 0.0
    %941 = vmatpush1.msra.mxu0 0.0
    %942 = vmatprep.subr.mxu0 0.0
    %943 = vmatpush1.msra.mxu0 0.0
    %944 = vmatprep.subr.mxu0 0.0
    %945 = vmatpush1.msra.mxu0 0.0
    %946 = vmatprep.subr.mxu0 0.0
    %947 = vmatpush1.msra.mxu0 0.0
    %948 = vmatprep.subr.mxu0 0.0
    %949 = vmatpush1.msra.mxu0 0.0
    %950 = vmatprep.subr.mxu0 0.0
    %951 = vmatpush1.msra.mxu0 0.0
    %952 = vmatprep.subr.mxu0 0.0
    %953 = vmatpush1.msra.mxu0 0.0
    %954 = vmatprep.subr.mxu0 0.0
    %955 = vmatpush1.msra.mxu0 0.0
    %956 = vmatprep.subr.mxu0 0.0
    %957 = vmatpush1.msra.mxu0 0.0
    %958 = vmatprep.subr.mxu0 0.0
    %959 = vmatpush1.msra.mxu0 %v36
    %960 = vmatprep.subr.mxu0 0.0
    %961 = vmatpush1.msra.mxu0 %v35
    %962 = vmatprep.subr.mxu0 0.0
    %963 = vmatpush2.msra.mxu0 0.0
    %964 = vmatprep.subr.mxu0 0.0
    %965 = vmatpush2.msra.mxu0 0.0
    %966 = vmatprep.subr.mxu0 0.0
    %967 = vmatpush2.msra.mxu0 0.0
    %968 = vmatprep.subr.mxu0 0.0
    %969 = vmatpush2.msra.mxu0 0.0
    %970 = vmatprep.subr.mxu0 0.0
    %971 = vmatpush2.msra.mxu0 0.0
    %972 = vmatprep.subr.mxu0 0.0
    %973 = vmatpush2.msra.mxu0 0.0
    %974 = vmatprep.subr.mxu0 0.0
    %975 = vmatpush2.msra.mxu0 0.0
    %976 = vmatprep.subr.mxu0 0.0
    %977 = vmatpush2.msra.mxu0 0.0
    %978 = vmatprep.subr.mxu0 0.0
    %979 = vmatpush2.msra.mxu0 0.0
    %980 = vmatprep.subr.mxu0 0.0
    %981 = vmatpush2.msra.mxu0 0.0
    %982 = vmatprep.subr.mxu0 0.0
    %983 = vmatpush2.msra.mxu0 0.0
    %984 = vmatprep.subr.mxu0 0.0
    %985 = vmatpush2.msra.mxu0 0.0
    %986 = vmatprep.subr.mxu0 0.0
    %987 = vmatpush2.msra.mxu0 0.0
    %988 = vmatprep.subr.mxu0 0.0
    %989 = vmatpush2.msra.mxu0 0.0
    %990 = vmatprep.subr.mxu0 0.0
    %991 = vmatpush2.msra.mxu0 0.0
    %992 = vmatprep.subr.mxu0 0.0
    %993 = vmatpush2.msra.mxu0 0.0
    %994 = vmatprep.mubr.f32.mxu0 0.0
    %995 = vmatmul.mubr.f32.gmra.mxu0 %v928
    %v996 = vpop.f32.mrf.mxu0
    %v997 = vadd.f32 0.0, %v996
    %v998 = vpop.f32.mrf.mxu0
    %999 = vdwg.mxu0
    %1000 = vxpose.xlu0.b32.start [1/16] %v41, 128
    %1001 = vxpose.xlu0.b32.cont [2/16] 0.0, 128
    %1002 = vxpose.xlu0.b32.cont [3/16] 0.0, 128
    %1003 = vxpose.xlu0.b32.cont [4/16] 0.0, 128
    %1004 = vxpose.xlu0.b32.cont [5/16] 0.0, 128
    %1005 = vxpose.xlu0.b32.cont [6/16] 0.0, 128
    %1006 = vxpose.xlu0.b32.cont [7/16] 0.0, 128
    %1007 = vxpose.xlu0.b32.cont [8/16] 0.0, 128
    %1008 = vxpose.xlu0.b32.cont [9/16] 0.0, 128
    %1009 = vxpose.xlu0.b32.cont [10/16] 0.0, 128
    %1010 = vxpose.xlu0.b32.cont [11/16] 0.0, 128
    %1011 = vxpose.xlu0.b32.cont [12/16] 0.0, 128
    %1012 = vxpose.xlu0.b32.cont [13/16] 0.0, 128
    %1013 = vxpose.xlu0.b32.cont [14/16] 0.0, 128
    %1014 = vxpose.xlu0.b32.cont [15/16] 0.0, 128
    %1015 = vxpose.xlu0.b32.end [16/16] 0.0, 128
    %v1016 = vpop.trf.xlu0
    %v1017 = vpop.trf.xlu0
    %v1018 = vpop.trf.xlu0
    %v1019 = vpop.trf.xlu0
    %v1020 = vpop.trf.xlu0
    %v1021 = vpop.trf.xlu0
    %v1022 = vpop.trf.xlu0
    %v1023 = vpop.trf.xlu0
    %v1024 = vpop.trf.xlu0
    %v1025 = vpop.trf.xlu0
    %v1026 = vpop.trf.xlu0
    %v1027 = vpop.trf.xlu0
    %v1028 = vpop.trf.xlu0
    %v1029 = vpop.trf.xlu0
    %v1030 = vpop.trf.xlu0
    %v1031 = vpop.trf.xlu0
    %v1033 = vsel %vm58, %v1016, 0
    %1035 = vmatprep.subr.mxu0 0.0
    %1036 = vmatpush1.msra.mxu0 0.0
    %1037 = vmatprep.subr.mxu0 0.0
    %1038 = vmatpush1.msra.mxu0 0.0
    %1039 = vmatprep.subr.mxu0 0.0
    %1040 = vmatpush1.msra.mxu0 0.0
    %1041 = vmatprep.subr.mxu0 0.0
    %1042 = vmatpush1.msra.mxu0 0.0
    %1043 = vmatprep.subr.mxu0 0.0
    %1044 = vmatpush1.msra.mxu0 0.0
    %1045 = vmatprep.subr.mxu0 0.0
    %1046 = vmatpush1.msra.mxu0 0.0
    %1047 = vmatprep.subr.mxu0 0.0
    %1048 = vmatpush1.msra.mxu0 0.0
    %1049 = vmatprep.subr.mxu0 0.0
    %1050 = vmatpush1.msra.mxu0 0.0
    %1051 = vmatprep.subr.mxu0 0.0
    %1052 = vmatpush1.msra.mxu0 0.0
    %1053 = vmatprep.subr.mxu0 0.0
    %1054 = vmatpush1.msra.mxu0 0.0
    %1055 = vmatprep.subr.mxu0 0.0
    %1056 = vmatpush1.msra.mxu0 0.0
    %1057 = vmatprep.subr.mxu0 0.0
    %1058 = vmatpush1.msra.mxu0 0.0
    %1059 = vmatprep.subr.mxu0 0.0
    %1060 = vmatpush1.msra.mxu0 0.0
    %1061 = vmatprep.subr.mxu0 0.0
    %1062 = vmatpush1.msra.mxu0 0.0
    %1063 = vmatprep.subr.mxu0 0.0
    %1064 = vmatpush1.msra.mxu0 0.0
    %1065 = vmatprep.subr.mxu0 0.0
    %1066 = vmatpush1.msra.mxu0 %v997
    %1067 = vmatprep.subr.mxu0 0.0
    %1068 = vmatpush2.msra.mxu0 0.0
    %1069 = vmatprep.subr.mxu0 0.0
    %1070 = vmatpush2.msra.mxu0 0.0
    %1071 = vmatprep.subr.mxu0 0.0
    %1072 = vmatpush2.msra.mxu0 0.0
    %1073 = vmatprep.subr.mxu0 0.0
    %1074 = vmatpush2.msra.mxu0 0.0
    %1075 = vmatprep.subr.mxu0 0.0
    %1076 = vmatpush2.msra.mxu0 0.0
    %1077 = vmatprep.subr.mxu0 0.0
    %1078 = vmatpush2.msra.mxu0 0.0
    %1079 = vmatprep.subr.mxu0 0.0
    %1080 = vmatpush2.msra.mxu0 0.0
    %1081 = vmatprep.subr.mxu0 0.0
    %1082 = vmatpush2.msra.mxu0 0.0
    %1083 = vmatprep.subr.mxu0 0.0
    %1084 = vmatpush2.msra.mxu0 0.0
    %1085 = vmatprep.subr.mxu0 0.0
    %1086 = vmatpush2.msra.mxu0 0.0
    %1087 = vmatprep.subr.mxu0 0.0
    %1088 = vmatpush2.msra.mxu0 0.0
    %1089 = vmatprep.subr.mxu0 0.0
    %1090 = vmatpush2.msra.mxu0 0.0
    %1091 = vmatprep.subr.mxu0 0.0
    %1092 = vmatpush2.msra.mxu0 0.0
    %1093 = vmatprep.subr.mxu0 0.0
    %1094 = vmatpush2.msra.mxu0 0.0
    %1095 = vmatprep.subr.mxu0 0.0
    %1096 = vmatpush2.msra.mxu0 0.0
    %1097 = vmatprep.subr.mxu0 0.0
    %1098 = vmatpush2.msra.mxu0 0.0
    %1099 = vmatprep.mubr.f32.mxu0 0.0
    %1100 = vmatmul.mubr.f32.gmra.mxu0 %v1033
    %v1101 = vpop.f32.mrf.mxu0
    %v1102 = vadd.f32 %v597, %v1101
    %v1103 = vpop.f32.mrf.mxu0
    %1104 = vdwg.mxu0
    %1105 = vxpose.xlu0.b32.start [1/16] %v922, 128
    %1106 = vxpose.xlu0.b32.cont [2/16] 0.0, 128
    %1107 = vxpose.xlu0.b32.cont [3/16] 0.0, 128
    %1108 = vxpose.xlu0.b32.cont [4/16] 0.0, 128
    %1109 = vxpose.xlu0.b32.cont [5/16] 0.0, 128
    %1110 = vxpose.xlu0.b32.cont [6/16] 0.0, 128
    %1111 = vxpose.xlu0.b32.cont [7/16] 0.0, 128
    %1112 = vxpose.xlu0.b32.cont [8/16] 0.0, 128
    %1113 = vxpose.xlu0.b32.cont [9/16] 0.0, 128
    %1114 = vxpose.xlu0.b32.cont [10/16] 0.0, 128
    %1115 = vxpose.xlu0.b32.cont [11/16] 0.0, 128
    %1116 = vxpose.xlu0.b32.cont [12/16] 0.0, 128
    %1117 = vxpose.xlu0.b32.cont [13/16] 0.0, 128
    %1118 = vxpose.xlu0.b32.cont [14/16] 0.0, 128
    %1119 = vxpose.xlu0.b32.cont [15/16] 0.0, 128
    %1120 = vxpose.xlu0.b32.end [16/16] 0.0, 128
    %v1121 = vpop.trf.xlu0
    %v1122 = vpop.trf.xlu0
    %v1123 = vpop.trf.xlu0
    %v1124 = vpop.trf.xlu0
    %v1125 = vpop.trf.xlu0
    %v1126 = vpop.trf.xlu0
    %v1127 = vpop.trf.xlu0
    %v1128 = vpop.trf.xlu0
    %v1129 = vpop.trf.xlu0
    %v1130 = vpop.trf.xlu0
    %v1131 = vpop.trf.xlu0
    %v1132 = vpop.trf.xlu0
    %v1133 = vpop.trf.xlu0
    %v1134 = vpop.trf.xlu0
    %v1135 = vpop.trf.xlu0
    %v1136 = vpop.trf.xlu0
    %v1138 = vsel %vm58, %v1121, 0
    %1140 = vmatprep.subr.mxu0 0.0
    %1141 = vmatpush1.msra.mxu0 0.0
    %1142 = vmatprep.subr.mxu0 0.0
    %1143 = vmatpush1.msra.mxu0 0.0
    %1144 = vmatprep.subr.mxu0 0.0
    %1145 = vmatpush1.msra.mxu0 0.0
    %1146 = vmatprep.subr.mxu0 0.0
    %1147 = vmatpush1.msra.mxu0 0.0
    %1148 = vmatprep.subr.mxu0 0.0
    %1149 = vmatpush1.msra.mxu0 0.0
    %1150 = vmatprep.subr.mxu0 0.0
    %1151 = vmatpush1.msra.mxu0 0.0
    %1152 = vmatprep.subr.mxu0 0.0
    %1153 = vmatpush1.msra.mxu0 0.0
    %1154 = vmatprep.subr.mxu0 0.0
    %1155 = vmatpush1.msra.mxu0 0.0
    %1156 = vmatprep.subr.mxu0 0.0
    %1157 = vmatpush1.msra.mxu0 0.0
    %1158 = vmatprep.subr.mxu0 0.0
    %1159 = vmatpush1.msra.mxu0 0.0
    %1160 = vmatprep.subr.mxu0 0.0
    %1161 = vmatpush1.msra.mxu0 0.0
    %1162 = vmatprep.subr.mxu0 0.0
    %1163 = vmatpush1.msra.mxu0 0.0
    %1164 = vmatprep.subr.mxu0 0.0
    %1165 = vmatpush1.msra.mxu0 0.0
    %1166 = vmatprep.subr.mxu0 0.0
    %1167 = vmatpush1.msra.mxu0 0.0
    %1168 = vmatprep.subr.mxu0 0.0
    %1169 = vmatpush1.msra.mxu0 0.0
    %1170 = vmatprep.subr.mxu0 0.0
    %1171 = vmatpush1.msra.mxu0 %v997
    %1172 = vmatprep.subr.mxu0 0.0
    %1173 = vmatpush2.msra.mxu0 0.0
    %1174 = vmatprep.subr.mxu0 0.0
    %1175 = vmatpush2.msra.mxu0 0.0
    %1176 = vmatprep.subr.mxu0 0.0
    %1177 = vmatpush2.msra.mxu0 0.0
    %1178 = vmatprep.subr.mxu0 0.0
    %1179 = vmatpush2.msra.mxu0 0.0
    %1180 = vmatprep.subr.mxu0 0.0
    %1181 = vmatpush2.msra.mxu0 0.0
    %1182 = vmatprep.subr.mxu0 0.0
    %1183 = vmatpush2.msra.mxu0 0.0
    %1184 = vmatprep.subr.mxu0 0.0
    %1185 = vmatpush2.msra.mxu0 0.0
    %1186 = vmatprep.subr.mxu0 0.0
    %1187 = vmatpush2.msra.mxu0 0.0
    %1188 = vmatprep.subr.mxu0 0.0
    %1189 = vmatpush2.msra.mxu0 0.0
    %1190 = vmatprep.subr.mxu0 0.0
    %1191 = vmatpush2.msra.mxu0 0.0
    %1192 = vmatprep.subr.mxu0 0.0
    %1193 = vmatpush2.msra.mxu0 0.0
    %1194 = vmatprep.subr.mxu0 0.0
    %1195 = vmatpush2.msra.mxu0 0.0
    %1196 = vmatprep.subr.mxu0 0.0
    %1197 = vmatpush2.msra.mxu0 0.0
    %1198 = vmatprep.subr.mxu0 0.0
    %1199 = vmatpush2.msra.mxu0 0.0
    %1200 = vmatprep.subr.mxu0 0.0
    %1201 = vmatpush2.msra.mxu0 0.0
    %1202 = vmatprep.subr.mxu0 0.0
    %1203 = vmatpush2.msra.mxu0 0.0
    %1204 = vmatprep.mubr.f32.mxu0 0.0
    %1205 = vmatmul.mubr.f32.gmra.mxu0 %v1138
    %v1206 = vpop.f32.mrf.mxu0
    %v1207 = vadd.f32 %v597, %v1206
    %v1208 = vpop.f32.mrf.mxu0
    %1209 = vdwg.mxu0
    %1211 = vrot.lane.b32.xlu0 %v1102, 8
    %v1212 = vpop.permute.xlu0 %1211
    %vm1214 = vcmask 130112
    %1215 = vst.msk [vmem:[#allocation2] sm:$0xff] %vm1214, %v1212
    %1217 = vrot.lane.b32.xlu0 %v1207, 8
    %v1218 = vpop.permute.xlu0 %1217
    %1220 = vst.msk [vmem:[#allocation2 + $0x8] sm:$0xff] %vm1214, %v1218
    %vm1221 = vcmask 392448
    %v1222 = vsel %vm1221, %v405, -inf
    %1223 = vmax.xlane.f32.xlu0 %v1222
    %v1224 = vpop.xlane.xlu0 %1223
    %v1225 = vrot.slane %v1224, 4
    %v1226 = vmax.f32 %v1224, %v1225
    %v1227 = vrot.slane %v1226, 2
    %v1228 = vmax.f32 %v1226, %v1227
    %v1229 = vrot.slane %v1228, 1
    %v1230 = vmax.f32 %v1228, %v1229
    %s1231 = vtos %v1230
    %v1232 = vstv %s1231
    %v1233 = vsub.f32 %v405, %v1232
    %v1234 = vmul.f32 %v1233, 1.442695
    %v1235 = vpow.pop %v1234
    %v1236 = vsel %vm1221, %v1235, 0.0
    %v1237 = vrot.slane %v1236, 4
    %v1238 = vadd.f32 %v1236, %v1237
    %v1239 = vrot.slane %v1238, 2
    %v1240 = vadd.f32 %v1238, %v1239
    %v1241 = vrot.slane %v1240, 1
    %v1242 = vadd.f32 %v1240, %v1241
    %1244 = vrot.lane.b32.xlu0 %v1235, 96
    %v1245 = vpop.permute.xlu0 %1244
    %v1247 = vsel %vm413, %v1245, 0.0
    %1248 = vadd.xlane.f32.xlu0 %v1247
    %v1249 = vpop.xlane.xlu0 %1248
    %v1250 = vrcp.pop %v1242
    %v1251 = vmul.f32 %v1242, %v1250
    %v1252 = vsub.f32 2.0, %v1251
    %v1253 = vmul.f32 %v1250, %v1252
    %v1254 = vrcp.pop %v1249
    %v1255 = vmul.f32 %v1249, %v1254
    %v1256 = vsub.f32 2.0, %v1255
    %v1257 = vmul.f32 %v1254, %v1256
    %v1258 = vmul.f32 %v1235, %v1253
    %v1259 = vmul.f32 %v1235, %v1257
    %1261 = vrot.lane.b32.xlu0 %v1258, 96
    %v1262 = vpop.permute.xlu0 %1261
    %v1263 = vsel %vm413, %v1262, 0
    %1265 = vmatprep.subr.mxu0 0.0
    %1266 = vmatpush1.msra.mxu0 0.0
    %1267 = vmatprep.subr.mxu0 0.0
    %1268 = vmatpush1.msra.mxu0 0.0
    %1269 = vmatprep.subr.mxu0 0.0
    %1270 = vmatpush1.msra.mxu0 0.0
    %1271 = vmatprep.subr.mxu0 0.0
    %1272 = vmatpush1.msra.mxu0 0.0
    %1273 = vmatprep.subr.mxu0 0.0
    %1274 = vmatpush1.msra.mxu0 0.0
    %1275 = vmatprep.subr.mxu0 0.0
    %1276 = vmatpush1.msra.mxu0 0.0
    %1277 = vmatprep.subr.mxu0 0.0
    %1278 = vmatpush1.msra.mxu0 0.0
    %1279 = vmatprep.subr.mxu0 0.0
    %1280 = vmatpush1.msra.mxu0 0.0
    %1281 = vmatprep.subr.mxu0 0.0
    %1282 = vmatpush1.msra.mxu0 0.0
    %1283 = vmatprep.subr.mxu0 0.0
    %1284 = vmatpush1.msra.mxu0 0.0
    %1285 = vmatprep.subr.mxu0 0.0
    %1286 = vmatpush1.msra.mxu0 0.0
    %1287 = vmatprep.subr.mxu0 0.0
    %1288 = vmatpush1.msra.mxu0 0.0
    %1289 = vmatprep.subr.mxu0 0.0
    %1290 = vmatpush1.msra.mxu0 0.0
    %1291 = vmatprep.subr.mxu0 0.0
    %1292 = vmatpush1.msra.mxu0 0.0
    %1293 = vmatprep.subr.mxu0 0.0
    %1294 = vmatpush1.msra.mxu0 %v279
    %1295 = vmatprep.subr.mxu0 0.0
    %1296 = vmatpush1.msra.mxu0 %v274
    %1297 = vmatprep.subr.mxu0 0.0
    %1298 = vmatpush2.msra.mxu0 0.0
    %1299 = vmatprep.subr.mxu0 0.0
    %1300 = vmatpush2.msra.mxu0 0.0
    %1301 = vmatprep.subr.mxu0 0.0
    %1302 = vmatpush2.msra.mxu0 0.0
    %1303 = vmatprep.subr.mxu0 0.0
    %1304 = vmatpush2.msra.mxu0 0.0
    %1305 = vmatprep.subr.mxu0 0.0
    %1306 = vmatpush2.msra.mxu0 0.0
    %1307 = vmatprep.subr.mxu0 0.0
    %1308 = vmatpush2.msra.mxu0 0.0
    %1309 = vmatprep.subr.mxu0 0.0
    %1310 = vmatpush2.msra.mxu0 0.0
    %1311 = vmatprep.subr.mxu0 0.0
    %1312 = vmatpush2.msra.mxu0 0.0
    %1313 = vmatprep.subr.mxu0 0.0
    %1314 = vmatpush2.msra.mxu0 0.0
    %1315 = vmatprep.subr.mxu0 0.0
    %1316 = vmatpush2.msra.mxu0 0.0
    %1317 = vmatprep.subr.mxu0 0.0
    %1318 = vmatpush2.msra.mxu0 0.0
    %1319 = vmatprep.subr.mxu0 0.0
    %1320 = vmatpush2.msra.mxu0 0.0
    %1321 = vmatprep.subr.mxu0 0.0
    %1322 = vmatpush2.msra.mxu0 0.0
    %1323 = vmatprep.subr.mxu0 0.0
    %1324 = vmatpush2.msra.mxu0 0.0
    %1325 = vmatprep.subr.mxu0 0.0
    %1326 = vmatpush2.msra.mxu0 0.0
    %1327 = vmatprep.subr.mxu0 0.0
    %1328 = vmatpush2.msra.mxu0 0.0
    %1329 = vmatprep.mubr.f32.mxu0 0.0
    %1330 = vmatmul.mubr.f32.gmra.mxu0 %v1263
    %v1331 = vpop.f32.mrf.mxu0
    %v1332 = vadd.f32 0.0, %v1331
    %v1333 = vpop.f32.mrf.mxu0
    %1334 = vdwg.mxu0
    %1336 = vrot.lane.b32.xlu0 %v1259, 96
    %v1337 = vpop.permute.xlu0 %1336
    %v1338 = vsel %vm413, %v1337, 0
    %1340 = vmatprep.subr.mxu0 0.0
    %1341 = vmatpush1.msra.mxu0 0.0
    %1342 = vmatprep.subr.mxu0 0.0
    %1343 = vmatpush1.msra.mxu0 0.0
    %1344 = vmatprep.subr.mxu0 0.0
    %1345 = vmatpush1.msra.mxu0 0.0
    %1346 = vmatprep.subr.mxu0 0.0
    %1347 = vmatpush1.msra.mxu0 0.0
    %1348 = vmatprep.subr.mxu0 0.0
    %1349 = vmatpush1.msra.mxu0 0.0
    %1350 = vmatprep.subr.mxu0 0.0
    %1351 = vmatpush1.msra.mxu0 0.0
    %1352 = vmatprep.subr.mxu0 0.0
    %1353 = vmatpush1.msra.mxu0 0.0
    %1354 = vmatprep.subr.mxu0 0.0
    %1355 = vmatpush1.msra.mxu0 0.0
    %1356 = vmatprep.subr.mxu0 0.0
    %1357 = vmatpush1.msra.mxu0 0.0
    %1358 = vmatprep.subr.mxu0 0.0
    %1359 = vmatpush1.msra.mxu0 0.0
    %1360 = vmatprep.subr.mxu0 0.0
    %1361 = vmatpush1.msra.mxu0 0.0
    %1362 = vmatprep.subr.mxu0 0.0
    %1363 = vmatpush1.msra.mxu0 0.0
    %1364 = vmatprep.subr.mxu0 0.0
    %1365 = vmatpush1.msra.mxu0 0.0
    %1366 = vmatprep.subr.mxu0 0.0
    %1367 = vmatpush1.msra.mxu0 0.0
    %1368 = vmatprep.subr.mxu0 0.0
    %1369 = vmatpush1.msra.mxu0 %v36
    %1370 = vmatprep.subr.mxu0 0.0
    %1371 = vmatpush1.msra.mxu0 %v35
    %1372 = vmatprep.subr.mxu0 0.0
    %1373 = vmatpush2.msra.mxu0 0.0
    %1374 = vmatprep.subr.mxu0 0.0
    %1375 = vmatpush2.msra.mxu0 0.0
    %1376 = vmatprep.subr.mxu0 0.0
    %1377 = vmatpush2.msra.mxu0 0.0
    %1378 = vmatprep.subr.mxu0 0.0
    %1379 = vmatpush2.msra.mxu0 0.0
    %1380 = vmatprep.subr.mxu0 0.0
    %1381 = vmatpush2.msra.mxu0 0.0
    %1382 = vmatprep.subr.mxu0 0.0
    %1383 = vmatpush2.msra.mxu0 0.0
    %1384 = vmatprep.subr.mxu0 0.0
    %1385 = vmatpush2.msra.mxu0 0.0
    %1386 = vmatprep.subr.mxu0 0.0
    %1387 = vmatpush2.msra.mxu0 0.0
    %1388 = vmatprep.subr.mxu0 0.0
    %1389 = vmatpush2.msra.mxu0 0.0
    %1390 = vmatprep.subr.mxu0 0.0
    %1391 = vmatpush2.msra.mxu0 0.0
    %1392 = vmatprep.subr.mxu0 0.0
    %1393 = vmatpush2.msra.mxu0 0.0
    %1394 = vmatprep.subr.mxu0 0.0
    %1395 = vmatpush2.msra.mxu0 0.0
    %1396 = vmatprep.subr.mxu0 0.0
    %1397 = vmatpush2.msra.mxu0 0.0
    %1398 = vmatprep.subr.mxu0 0.0
    %1399 = vmatpush2.msra.mxu0 0.0
    %1400 = vmatprep.subr.mxu0 0.0
    %1401 = vmatpush2.msra.mxu0 0.0
    %1402 = vmatprep.subr.mxu0 0.0
    %1403 = vmatpush2.msra.mxu0 0.0
    %1404 = vmatprep.mubr.f32.mxu0 0.0
    %1405 = vmatmul.mubr.f32.gmra.mxu0 %v1338
    %v1406 = vpop.f32.mrf.mxu0
    %v1407 = vadd.f32 0.0, %v1406
    %v1408 = vpop.f32.mrf.mxu0
    %1409 = vdwg.mxu0
    %1410 = vxpose.xlu0.b32.start [1/16] %v42, 128
    %1411 = vxpose.xlu0.b32.cont [2/16] 0.0, 128
    %1412 = vxpose.xlu0.b32.cont [3/16] 0.0, 128
    %1413 = vxpose.xlu0.b32.cont [4/16] 0.0, 128
    %1414 = vxpose.xlu0.b32.cont [5/16] 0.0, 128
    %1415 = vxpose.xlu0.b32.cont [6/16] 0.0, 128
    %1416 = vxpose.xlu0.b32.cont [7/16] 0.0, 128
    %1417 = vxpose.xlu0.b32.cont [8/16] 0.0, 128
    %1418 = vxpose.xlu0.b32.cont [9/16] 0.0, 128
    %1419 = vxpose.xlu0.b32.cont [10/16] 0.0, 128
    %1420 = vxpose.xlu0.b32.cont [11/16] 0.0, 128
    %1421 = vxpose.xlu0.b32.cont [12/16] 0.0, 128
    %1422 = vxpose.xlu0.b32.cont [13/16] 0.0, 128
    %1423 = vxpose.xlu0.b32.cont [14/16] 0.0, 128
    %1424 = vxpose.xlu0.b32.cont [15/16] 0.0, 128
    %1425 = vxpose.xlu0.b32.end [16/16] 0.0, 128
    %v1426 = vpop.trf.xlu0
    %v1427 = vpop.trf.xlu0
    %v1428 = vpop.trf.xlu0
    %v1429 = vpop.trf.xlu0
    %v1430 = vpop.trf.xlu0
    %v1431 = vpop.trf.xlu0
    %v1432 = vpop.trf.xlu0
    %v1433 = vpop.trf.xlu0
    %v1434 = vpop.trf.xlu0
    %v1435 = vpop.trf.xlu0
    %v1436 = vpop.trf.xlu0
    %v1437 = vpop.trf.xlu0
    %v1438 = vpop.trf.xlu0
    %v1439 = vpop.trf.xlu0
    %v1440 = vpop.trf.xlu0
    %v1441 = vpop.trf.xlu0
    %v1443 = vsel %vm58, %v1426, 0
    %1445 = vmatprep.subr.mxu0 0.0
    %1446 = vmatpush1.msra.mxu0 0.0
    %1447 = vmatprep.subr.mxu0 0.0
    %1448 = vmatpush1.msra.mxu0 0.0
    %1449 = vmatprep.subr.mxu0 0.0
    %1450 = vmatpush1.msra.mxu0 0.0
    %1451 = vmatprep.subr.mxu0 0.0
    %1452 = vmatpush1.msra.mxu0 0.0
    %1453 = vmatprep.subr.mxu0 0.0
    %1454 = vmatpush1.msra.mxu0 0.0
    %1455 = vmatprep.subr.mxu0 0.0
    %1456 = vmatpush1.msra.mxu0 0.0
    %1457 = vmatprep.subr.mxu0 0.0
    %1458 = vmatpush1.msra.mxu0 0.0
    %1459 = vmatprep.subr.mxu0 0.0
    %1460 = vmatpush1.msra.mxu0 0.0
    %1461 = vmatprep.subr.mxu0 0.0
    %1462 = vmatpush1.msra.mxu0 0.0
    %1463 = vmatprep.subr.mxu0 0.0
    %1464 = vmatpush1.msra.mxu0 0.0
    %1465 = vmatprep.subr.mxu0 0.0
    %1466 = vmatpush1.msra.mxu0 0.0
    %1467 = vmatprep.subr.mxu0 0.0
    %1468 = vmatpush1.msra.mxu0 0.0
    %1469 = vmatprep.subr.mxu0 0.0
    %1470 = vmatpush1.msra.mxu0 0.0
    %1471 = vmatprep.subr.mxu0 0.0
    %1472 = vmatpush1.msra.mxu0 0.0
    %1473 = vmatprep.subr.mxu0 0.0
    %1474 = vmatpush1.msra.mxu0 0.0
    %1475 = vmatprep.subr.mxu0 0.0
    %1476 = vmatpush1.msra.mxu0 %v1407
    %1477 = vmatprep.subr.mxu0 0.0
    %1478 = vmatpush2.msra.mxu0 0.0
    %1479 = vmatprep.subr.mxu0 0.0
    %1480 = vmatpush2.msra.mxu0 0.0
    %1481 = vmatprep.subr.mxu0 0.0
    %1482 = vmatpush2.msra.mxu0 0.0
    %1483 = vmatprep.subr.mxu0 0.0
    %1484 = vmatpush2.msra.mxu0 0.0
    %1485 = vmatprep.subr.mxu0 0.0
    %1486 = vmatpush2.msra.mxu0 0.0
    %1487 = vmatprep.subr.mxu0 0.0
    %1488 = vmatpush2.msra.mxu0 0.0
    %1489 = vmatprep.subr.mxu0 0.0
    %1490 = vmatpush2.msra.mxu0 0.0
    %1491 = vmatprep.subr.mxu0 0.0
    %1492 = vmatpush2.msra.mxu0 0.0
    %1493 = vmatprep.subr.mxu0 0.0
    %1494 = vmatpush2.msra.mxu0 0.0
    %1495 = vmatprep.subr.mxu0 0.0
    %1496 = vmatpush2.msra.mxu0 0.0
    %1497 = vmatprep.subr.mxu0 0.0
    %1498 = vmatpush2.msra.mxu0 0.0
    %1499 = vmatprep.subr.mxu0 0.0
    %1500 = vmatpush2.msra.mxu0 0.0
    %1501 = vmatprep.subr.mxu0 0.0
    %1502 = vmatpush2.msra.mxu0 0.0
    %1503 = vmatprep.subr.mxu0 0.0
    %1504 = vmatpush2.msra.mxu0 0.0
    %1505 = vmatprep.subr.mxu0 0.0
    %1506 = vmatpush2.msra.mxu0 0.0
    %1507 = vmatprep.subr.mxu0 0.0
    %1508 = vmatpush2.msra.mxu0 0.0
    %1509 = vmatprep.mubr.f32.mxu0 0.0
    %1510 = vmatmul.mubr.f32.gmra.mxu0 %v1443
    %v1511 = vpop.f32.mrf.mxu0
    %v1512 = vadd.f32 %v597, %v1511
    %v1513 = vpop.f32.mrf.mxu0
    %1514 = vdwg.mxu0
    %1515 = vxpose.xlu0.b32.start [1/16] %v1332, 128
    %1516 = vxpose.xlu0.b32.cont [2/16] 0.0, 128
    %1517 = vxpose.xlu0.b32.cont [3/16] 0.0, 128
    %1518 = vxpose.xlu0.b32.cont [4/16] 0.0, 128
    %1519 = vxpose.xlu0.b32.cont [5/16] 0.0, 128
    %1520 = vxpose.xlu0.b32.cont [6/16] 0.0, 128
    %1521 = vxpose.xlu0.b32.cont [7/16] 0.0, 128
    %1522 = vxpose.xlu0.b32.cont [8/16] 0.0, 128
    %1523 = vxpose.xlu0.b32.cont [9/16] 0.0, 128
    %1524 = vxpose.xlu0.b32.cont [10/16] 0.0, 128
    %1525 = vxpose.xlu0.b32.cont [11/16] 0.0, 128
    %1526 = vxpose.xlu0.b32.cont [12/16] 0.0, 128
    %1527 = vxpose.xlu0.b32.cont [13/16] 0.0, 128
    %1528 = vxpose.xlu0.b32.cont [14/16] 0.0, 128
    %1529 = vxpose.xlu0.b32.cont [15/16] 0.0, 128
    %1530 = vxpose.xlu0.b32.end [16/16] 0.0, 128
    %v1531 = vpop.trf.xlu0
    %v1532 = vpop.trf.xlu0
    %v1533 = vpop.trf.xlu0
    %v1534 = vpop.trf.xlu0
    %v1535 = vpop.trf.xlu0
    %v1536 = vpop.trf.xlu0
    %v1537 = vpop.trf.xlu0
    %v1538 = vpop.trf.xlu0
    %v1539 = vpop.trf.xlu0
    %v1540 = vpop.trf.xlu0
    %v1541 = vpop.trf.xlu0
    %v1542 = vpop.trf.xlu0
    %v1543 = vpop.trf.xlu0
    %v1544 = vpop.trf.xlu0
    %v1545 = vpop.trf.xlu0
    %v1546 = vpop.trf.xlu0
    %v1548 = vsel %vm58, %v1531, 0
    %1550 = vmatprep.subr.mxu0 0.0
    %1551 = vmatpush1.msra.mxu0 0.0
    %1552 = vmatprep.subr.mxu0 0.0
    %1553 = vmatpush1.msra.mxu0 0.0
    %1554 = vmatprep.subr.mxu0 0.0
    %1555 = vmatpush1.msra.mxu0 0.0
    %1556 = vmatprep.subr.mxu0 0.0
    %1557 = vmatpush1.msra.mxu0 0.0
    %1558 = vmatprep.subr.mxu0 0.0
    %1559 = vmatpush1.msra.mxu0 0.0
    %1560 = vmatprep.subr.mxu0 0.0
    %1561 = vmatpush1.msra.mxu0 0.0
    %1562 = vmatprep.subr.mxu0 0.0
    %1563 = vmatpush1.msra.mxu0 0.0
    %1564 = vmatprep.subr.mxu0 0.0
    %1565 = vmatpush1.msra.mxu0 0.0
    %1566 = vmatprep.subr.mxu0 0.0
    %1567 = vmatpush1.msra.mxu0 0.0
    %1568 = vmatprep.subr.mxu0 0.0
    %1569 = vmatpush1.msra.mxu0 0.0
    %1570 = vmatprep.subr.mxu0 0.0
    %1571 = vmatpush1.msra.mxu0 0.0
    %1572 = vmatprep.subr.mxu0 0.0
    %1573 = vmatpush1.msra.mxu0 0.0
    %1574 = vmatprep.subr.mxu0 0.0
    %1575 = vmatpush1.msra.mxu0 0.0
    %1576 = vmatprep.subr.mxu0 0.0
    %1577 = vmatpush1.msra.mxu0 0.0
    %1578 = vmatprep.subr.mxu0 0.0
    %1579 = vmatpush1.msra.mxu0 0.0
    %1580 = vmatprep.subr.mxu0 0.0
    %1581 = vmatpush1.msra.mxu0 %v1407
    %1582 = vmatprep.subr.mxu0 0.0
    %1583 = vmatpush2.msra.mxu0 0.0
    %1584 = vmatprep.subr.mxu0 0.0
    %1585 = vmatpush2.msra.mxu0 0.0
    %1586 = vmatprep.subr.mxu0 0.0
    %1587 = vmatpush2.msra.mxu0 0.0
    %1588 = vmatprep.subr.mxu0 0.0
    %1589 = vmatpush2.msra.mxu0 0.0
    %1590 = vmatprep.subr.mxu0 0.0
    %1591 = vmatpush2.msra.mxu0 0.0
    %1592 = vmatprep.subr.mxu0 0.0
    %1593 = vmatpush2.msra.mxu0 0.0
    %1594 = vmatprep.subr.mxu0 0.0
    %1595 = vmatpush2.msra.mxu0 0.0
    %1596 = vmatprep.subr.mxu0 0.0
    %1597 = vmatpush2.msra.mxu0 0.0
    %1598 = vmatprep.subr.mxu0 0.0
    %1599 = vmatpush2.msra.mxu0 0.0
    %1600 = vmatprep.subr.mxu0 0.0
    %1601 = vmatpush2.msra.mxu0 0.0
    %1602 = vmatprep.subr.mxu0 0.0
    %1603 = vmatpush2.msra.mxu0 0.0
    %1604 = vmatprep.subr.mxu0 0.0
    %1605 = vmatpush2.msra.mxu0 0.0
    %1606 = vmatprep.subr.mxu0 0.0
    %1607 = vmatpush2.msra.mxu0 0.0
    %1608 = vmatprep.subr.mxu0 0.0
    %1609 = vmatpush2.msra.mxu0 0.0
    %1610 = vmatprep.subr.mxu0 0.0
    %1611 = vmatpush2.msra.mxu0 0.0
    %1612 = vmatprep.subr.mxu0 0.0
    %1613 = vmatpush2.msra.mxu0 0.0
    %1614 = vmatprep.mubr.f32.mxu0 0.0
    %1615 = vmatmul.mubr.f32.gmra.mxu0 %v1548
    %v1616 = vpop.f32.mrf.mxu0
    %v1617 = vadd.f32 %v597, %v1616
    %v1618 = vpop.f32.mrf.mxu0
    %1619 = vdwg.mxu0
    %1621 = vrot.lane.b32.xlu0 %v1512, 16
    %v1622 = vpop.permute.xlu0 %1621
    %vm1624 = vcmask 195712
    %1625 = vst.msk [vmem:[#allocation2] sm:$0xff] %vm1624, %v1622
    %1627 = vrot.lane.b32.xlu0 %v1617, 16
    %v1628 = vpop.permute.xlu0 %1627
    %1630 = vst.msk [vmem:[#allocation2 + $0x8] sm:$0xff] %vm1624, %v1628
    %vm1631 = vcmask 523648
    %v1632 = vsel %vm1631, %v410, -inf
    %1633 = vmax.xlane.f32.xlu0 %v1632
    %v1634 = vpop.xlane.xlu0 %1633
    %v1635 = vrot.slane %v1634, 4
    %v1636 = vmax.f32 %v1634, %v1635
    %v1637 = vrot.slane %v1636, 2
    %v1638 = vmax.f32 %v1636, %v1637
    %v1639 = vrot.slane %v1638, 1
    %v1640 = vmax.f32 %v1638, %v1639
    %s1641 = vtos %v1640
    %v1642 = vstv %s1641
    %v1643 = vsub.f32 %v410, %v1642
    %v1644 = vmul.f32 %v1643, 1.442695
    %v1645 = vpow.pop %v1644
    %v1646 = vsel %vm1631, %v1645, 0.0
    %v1647 = vrot.slane %v1646, 4
    %v1648 = vadd.f32 %v1646, %v1647
    %v1649 = vrot.slane %v1648, 2
    %v1650 = vadd.f32 %v1648, %v1649
    %v1651 = vrot.slane %v1650, 1
    %v1652 = vadd.f32 %v1650, %v1651
    %1654 = vrot.lane.b32.xlu0 %v1645, 80
    %v1655 = vpop.permute.xlu0 %1654
    %v1657 = vsel %vm413, %v1655, 0.0
    %1658 = vadd.xlane.f32.xlu0 %v1657
    %v1659 = vpop.xlane.xlu0 %1658
    %v1660 = vrcp.pop %v1652
    %v1661 = vmul.f32 %v1652, %v1660
    %v1662 = vsub.f32 2.0, %v1661
    %v1663 = vmul.f32 %v1660, %v1662
    %v1664 = vrcp.pop %v1659
    %v1665 = vmul.f32 %v1659, %v1664
    %v1666 = vsub.f32 2.0, %v1665
    %v1667 = vmul.f32 %v1664, %v1666
    %v1668 = vmul.f32 %v1645, %v1663
    %v1669 = vmul.f32 %v1645, %v1667
    %1671 = vrot.lane.b32.xlu0 %v1668, 80
    %v1672 = vpop.permute.xlu0 %1671
    %v1673 = vsel %vm413, %v1672, 0
    %1675 = vmatprep.subr.mxu0 0.0
    %1676 = vmatpush1.msra.mxu0 0.0
    %1677 = vmatprep.subr.mxu0 0.0
    %1678 = vmatpush1.msra.mxu0 0.0
    %1679 = vmatprep.subr.mxu0 0.0
    %1680 = vmatpush1.msra.mxu0 0.0
    %1681 = vmatprep.subr.mxu0 0.0
    %1682 = vmatpush1.msra.mxu0 0.0
    %1683 = vmatprep.subr.mxu0 0.0
    %1684 = vmatpush1.msra.mxu0 0.0
    %1685 = vmatprep.subr.mxu0 0.0
    %1686 = vmatpush1.msra.mxu0 0.0
    %1687 = vmatprep.subr.mxu0 0.0
    %1688 = vmatpush1.msra.mxu0 0.0
    %1689 = vmatprep.subr.mxu0 0.0
    %1690 = vmatpush1.msra.mxu0 0.0
    %1691 = vmatprep.subr.mxu0 0.0
    %1692 = vmatpush1.msra.mxu0 0.0
    %1693 = vmatprep.subr.mxu0 0.0
    %1694 = vmatpush1.msra.mxu0 0.0
    %1695 = vmatprep.subr.mxu0 0.0
    %1696 = vmatpush1.msra.mxu0 0.0
    %1697 = vmatprep.subr.mxu0 0.0
    %1698 = vmatpush1.msra.mxu0 0.0
    %1699 = vmatprep.subr.mxu0 0.0
    %1700 = vmatpush1.msra.mxu0 0.0
    %1701 = vmatprep.subr.mxu0 0.0
    %1702 = vmatpush1.msra.mxu0 0.0
    %1703 = vmatprep.subr.mxu0 0.0
    %1704 = vmatpush1.msra.mxu0 %v289
    %1705 = vmatprep.subr.mxu0 0.0
    %1706 = vmatpush1.msra.mxu0 %v284
    %1707 = vmatprep.subr.mxu0 0.0
    %1708 = vmatpush2.msra.mxu0 0.0
    %1709 = vmatprep.subr.mxu0 0.0
    %1710 = vmatpush2.msra.mxu0 0.0
    %1711 = vmatprep.subr.mxu0 0.0
    %1712 = vmatpush2.msra.mxu0 0.0
    %1713 = vmatprep.subr.mxu0 0.0
    %1714 = vmatpush2.msra.mxu0 0.0
    %1715 = vmatprep.subr.mxu0 0.0
    %1716 = vmatpush2.msra.mxu0 0.0
    %1717 = vmatprep.subr.mxu0 0.0
    %1718 = vmatpush2.msra.mxu0 0.0
    %1719 = vmatprep.subr.mxu0 0.0
    %1720 = vmatpush2.msra.mxu0 0.0
    %1721 = vmatprep.subr.mxu0 0.0
    %1722 = vmatpush2.msra.mxu0 0.0
    %1723 = vmatprep.subr.mxu0 0.0
    %1724 = vmatpush2.msra.mxu0 0.0
    %1725 = vmatprep.subr.mxu0 0.0
    %1726 = vmatpush2.msra.mxu0 0.0
    %1727 = vmatprep.subr.mxu0 0.0
    %1728 = vmatpush2.msra.mxu0 0.0
    %1729 = vmatprep.subr.mxu0 0.0
    %1730 = vmatpush2.msra.mxu0 0.0
    %1731 = vmatprep.subr.mxu0 0.0
    %1732 = vmatpush2.msra.mxu0 0.0
    %1733 = vmatprep.subr.mxu0 0.0
    %1734 = vmatpush2.msra.mxu0 0.0
    %1735 = vmatprep.subr.mxu0 0.0
    %1736 = vmatpush2.msra.mxu0 0.0
    %1737 = vmatprep.subr.mxu0 0.0
    %1738 = vmatpush2.msra.mxu0 0.0
    %1739 = vmatprep.mubr.f32.mxu0 0.0
    %1740 = vmatmul.mubr.f32.gmra.mxu0 %v1673
    %v1741 = vpop.f32.mrf.mxu0
    %v1742 = vadd.f32 0.0, %v1741
    %v1743 = vpop.f32.mrf.mxu0
    %1744 = vdwg.mxu0
    %1746 = vrot.lane.b32.xlu0 %v1669, 80
    %v1747 = vpop.permute.xlu0 %1746
    %v1748 = vsel %vm413, %v1747, 0
    %1750 = vmatprep.subr.mxu0 0.0
    %1751 = vmatpush1.msra.mxu0 0.0
    %1752 = vmatprep.subr.mxu0 0.0
    %1753 = vmatpush1.msra.mxu0 0.0
    %1754 = vmatprep.subr.mxu0 0.0
    %1755 = vmatpush1.msra.mxu0 0.0
    %1756 = vmatprep.subr.mxu0 0.0
    %1757 = vmatpush1.msra.mxu0 0.0
    %1758 = vmatprep.subr.mxu0 0.0
    %1759 = vmatpush1.msra.mxu0 0.0
    %1760 = vmatprep.subr.mxu0 0.0
    %1761 = vmatpush1.msra.mxu0 0.0
    %1762 = vmatprep.subr.mxu0 0.0
    %1763 = vmatpush1.msra.mxu0 0.0
    %1764 = vmatprep.subr.mxu0 0.0
    %1765 = vmatpush1.msra.mxu0 0.0
    %1766 = vmatprep.subr.mxu0 0.0
    %1767 = vmatpush1.msra.mxu0 0.0
    %1768 = vmatprep.subr.mxu0 0.0
    %1769 = vmatpush1.msra.mxu0 0.0
    %1770 = vmatprep.subr.mxu0 0.0
    %1771 = vmatpush1.msra.mxu0 0.0
    %1772 = vmatprep.subr.mxu0 0.0
    %1773 = vmatpush1.msra.mxu0 0.0
    %1774 = vmatprep.subr.mxu0 0.0
    %1775 = vmatpush1.msra.mxu0 0.0
    %1776 = vmatprep.subr.mxu0 0.0
    %1777 = vmatpush1.msra.mxu0 0.0
    %1778 = vmatprep.subr.mxu0 0.0
    %1779 = vmatpush1.msra.mxu0 %v36
    %1780 = vmatprep.subr.mxu0 0.0
    %1781 = vmatpush1.msra.mxu0 %v35
    %1782 = vmatprep.subr.mxu0 0.0
    %1783 = vmatpush2.msra.mxu0 0.0
    %1784 = vmatprep.subr.mxu0 0.0
    %1785 = vmatpush2.msra.mxu0 0.0
    %1786 = vmatprep.subr.mxu0 0.0
    %1787 = vmatpush2.msra.mxu0 0.0
    %1788 = vmatprep.subr.mxu0 0.0
    %1789 = vmatpush2.msra.mxu0 0.0
    %1790 = vmatprep.subr.mxu0 0.0
    %1791 = vmatpush2.msra.mxu0 0.0
    %1792 = vmatprep.subr.mxu0 0.0
    %1793 = vmatpush2.msra.mxu0 0.0
    %1794 = vmatprep.subr.mxu0 0.0
    %1795 = vmatpush2.msra.mxu0 0.0
    %1796 = vmatprep.subr.mxu0 0.0
    %1797 = vmatpush2.msra.mxu0 0.0
    %1798 = vmatprep.subr.mxu0 0.0
    %1799 = vmatpush2.msra.mxu0 0.0
    %1800 = vmatprep.subr.mxu0 0.0
    %1801 = vmatpush2.msra.mxu0 0.0
    %1802 = vmatprep.subr.mxu0 0.0
    %1803 = vmatpush2.msra.mxu0 0.0
    %1804 = vmatprep.subr.mxu0 0.0
    %1805 = vmatpush2.msra.mxu0 0.0
    %1806 = vmatprep.subr.mxu0 0.0
    %1807 = vmatpush2.msra.mxu0 0.0
    %1808 = vmatprep.subr.mxu0 0.0
    %1809 = vmatpush2.msra.mxu0 0.0
    %1810 = vmatprep.subr.mxu0 0.0
    %1811 = vmatpush2.msra.mxu0 0.0
    %1812 = vmatprep.subr.mxu0 0.0
    %1813 = vmatpush2.msra.mxu0 0.0
    %1814 = vmatprep.mubr.f32.mxu0 0.0
    %1815 = vmatmul.mubr.f32.gmra.mxu0 %v1748
    %v1816 = vpop.f32.mrf.mxu0
    %v1817 = vadd.f32 0.0, %v1816
    %v1818 = vpop.f32.mrf.mxu0
    %1819 = vdwg.mxu0
    %1820 = vxpose.xlu0.b32.start [1/16] %v43, 128
    %1821 = vxpose.xlu0.b32.cont [2/16] 0.0, 128
    %1822 = vxpose.xlu0.b32.cont [3/16] 0.0, 128
    %1823 = vxpose.xlu0.b32.cont [4/16] 0.0, 128
    %1824 = vxpose.xlu0.b32.cont [5/16] 0.0, 128
    %1825 = vxpose.xlu0.b32.cont [6/16] 0.0, 128
    %1826 = vxpose.xlu0.b32.cont [7/16] 0.0, 128
    %1827 = vxpose.xlu0.b32.cont [8/16] 0.0, 128
    %1828 = vxpose.xlu0.b32.cont [9/16] 0.0, 128
    %1829 = vxpose.xlu0.b32.cont [10/16] 0.0, 128
    %1830 = vxpose.xlu0.b32.cont [11/16] 0.0, 128
    %1831 = vxpose.xlu0.b32.cont [12/16] 0.0, 128
    %1832 = vxpose.xlu0.b32.cont [13/16] 0.0, 128
    %1833 = vxpose.xlu0.b32.cont [14/16] 0.0, 128
    %1834 = vxpose.xlu0.b32.cont [15/16] 0.0, 128
    %1835 = vxpose.xlu0.b32.end [16/16] 0.0, 128
    %v1836 = vpop.trf.xlu0
    %v1837 = vpop.trf.xlu0
    %v1838 = vpop.trf.xlu0
    %v1839 = vpop.trf.xlu0
    %v1840 = vpop.trf.xlu0
    %v1841 = vpop.trf.xlu0
    %v1842 = vpop.trf.xlu0
    %v1843 = vpop.trf.xlu0
    %v1844 = vpop.trf.xlu0
    %v1845 = vpop.trf.xlu0
    %v1846 = vpop.trf.xlu0
    %v1847 = vpop.trf.xlu0
    %v1848 = vpop.trf.xlu0
    %v1849 = vpop.trf.xlu0
    %v1850 = vpop.trf.xlu0
    %v1851 = vpop.trf.xlu0
    %v1853 = vsel %vm58, %v1836, 0
    %1855 = vmatprep.subr.mxu0 0.0
    %1856 = vmatpush1.msra.mxu0 0.0
    %1857 = vmatprep.subr.mxu0 0.0
    %1858 = vmatpush1.msra.mxu0 0.0
    %1859 = vmatprep.subr.mxu0 0.0
    %1860 = vmatpush1.msra.mxu0 0.0
    %1861 = vmatprep.subr.mxu0 0.0
    %1862 = vmatpush1.msra.mxu0 0.0
    %1863 = vmatprep.subr.mxu0 0.0
    %1864 = vmatpush1.msra.mxu0 0.0
    %1865 = vmatprep.subr.mxu0 0.0
    %1866 = vmatpush1.msra.mxu0 0.0
    %1867 = vmatprep.subr.mxu0 0.0
    %1868 = vmatpush1.msra.mxu0 0.0
    %1869 = vmatprep.subr.mxu0 0.0
    %1870 = vmatpush1.msra.mxu0 0.0
    %1871 = vmatprep.subr.mxu0 0.0
    %1872 = vmatpush1.msra.mxu0 0.0
    %1873 = vmatprep.subr.mxu0 0.0
    %1874 = vmatpush1.msra.mxu0 0.0
    %1875 = vmatprep.subr.mxu0 0.0
    %1876 = vmatpush1.msra.mxu0 0.0
    %1877 = vmatprep.subr.mxu0 0.0
    %1878 = vmatpush1.msra.mxu0 0.0
    %1879 = vmatprep.subr.mxu0 0.0
    %1880 = vmatpush1.msra.mxu0 0.0
    %1881 = vmatprep.subr.mxu0 0.0
    %1882 = vmatpush1.msra.mxu0 0.0
    %1883 = vmatprep.subr.mxu0 0.0
    %1884 = vmatpush1.msra.mxu0 0.0
    %1885 = vmatprep.subr.mxu0 0.0
    %1886 = vmatpush1.msra.mxu0 %v1817
    %1887 = vmatprep.subr.mxu0 0.0
    %1888 = vmatpush2.msra.mxu0 0.0
    %1889 = vmatprep.subr.mxu0 0.0
    %1890 = vmatpush2.msra.mxu0 0.0
    %1891 = vmatprep.subr.mxu0 0.0
    %1892 = vmatpush2.msra.mxu0 0.0
    %1893 = vmatprep.subr.mxu0 0.0
    %1894 = vmatpush2.msra.mxu0 0.0
    %1895 = vmatprep.subr.mxu0 0.0
    %1896 = vmatpush2.msra.mxu0 0.0
    %1897 = vmatprep.subr.mxu0 0.0
    %1898 = vmatpush2.msra.mxu0 0.0
    %1899 = vmatprep.subr.mxu0 0.0
    %1900 = vmatpush2.msra.mxu0 0.0
    %1901 = vmatprep.subr.mxu0 0.0
    %1902 = vmatpush2.msra.mxu0 0.0
    %1903 = vmatprep.subr.mxu0 0.0
    %1904 = vmatpush2.msra.mxu0 0.0
    %1905 = vmatprep.subr.mxu0 0.0
    %1906 = vmatpush2.msra.mxu0 0.0
    %1907 = vmatprep.subr.mxu0 0.0
    %1908 = vmatpush2.msra.mxu0 0.0
    %1909 = vmatprep.subr.mxu0 0.0
    %1910 = vmatpush2.msra.mxu0 0.0
    %1911 = vmatprep.subr.mxu0 0.0
    %1912 = vmatpush2.msra.mxu0 0.0
    %1913 = vmatprep.subr.mxu0 0.0
    %1914 = vmatpush2.msra.mxu0 0.0
    %1915 = vmatprep.subr.mxu0 0.0
    %1916 = vmatpush2.msra.mxu0 0.0
    %1917 = vmatprep.subr.mxu0 0.0
    %1918 = vmatpush2.msra.mxu0 0.0
    %1919 = vmatprep.mubr.f32.mxu0 0.0
    %1920 = vmatmul.mubr.f32.gmra.mxu0 %v1853
    %v1921 = vpop.f32.mrf.mxu0
    %v1922 = vadd.f32 %v597, %v1921
    %v1923 = vpop.f32.mrf.mxu0
    %1924 = vdwg.mxu0
    %1925 = vxpose.xlu0.b32.start [1/16] %v1742, 128
    %1926 = vxpose.xlu0.b32.cont [2/16] 0.0, 128
    %1927 = vxpose.xlu0.b32.cont [3/16] 0.0, 128
    %1928 = vxpose.xlu0.b32.cont [4/16] 0.0, 128
    %1929 = vxpose.xlu0.b32.cont [5/16] 0.0, 128
    %1930 = vxpose.xlu0.b32.cont [6/16] 0.0, 128
    %1931 = vxpose.xlu0.b32.cont [7/16] 0.0, 128
    %1932 = vxpose.xlu0.b32.cont [8/16] 0.0, 128
    %1933 = vxpose.xlu0.b32.cont [9/16] 0.0, 128
    %1934 = vxpose.xlu0.b32.cont [10/16] 0.0, 128
    %1935 = vxpose.xlu0.b32.cont [11/16] 0.0, 128
    %1936 = vxpose.xlu0.b32.cont [12/16] 0.0, 128
    %1937 = vxpose.xlu0.b32.cont [13/16] 0.0, 128
    %1938 = vxpose.xlu0.b32.cont [14/16] 0.0, 128
    %1939 = vxpose.xlu0.b32.cont [15/16] 0.0, 128
    %1940 = vxpose.xlu0.b32.end [16/16] 0.0, 128
    %v1941 = vpop.trf.xlu0
    %v1942 = vpop.trf.xlu0
    %v1943 = vpop.trf.xlu0
    %v1944 = vpop.trf.xlu0
    %v1945 = vpop.trf.xlu0
    %v1946 = vpop.trf.xlu0
    %v1947 = vpop.trf.xlu0
    %v1948 = vpop.trf.xlu0
    %v1949 = vpop.trf.xlu0
    %v1950 = vpop.trf.xlu0
    %v1951 = vpop.trf.xlu0
    %v1952 = vpop.trf.xlu0
    %v1953 = vpop.trf.xlu0
    %v1954 = vpop.trf.xlu0
    %v1955 = vpop.trf.xlu0
    %v1956 = vpop.trf.xlu0
    %v1958 = vsel %vm58, %v1941, 0
    %1960 = vmatprep.subr.mxu0 0.0
    %1961 = vmatpush1.msra.mxu0 0.0
    %1962 = vmatprep.subr.mxu0 0.0
    %1963 = vmatpush1.msra.mxu0 0.0
    %1964 = vmatprep.subr.mxu0 0.0
    %1965 = vmatpush1.msra.mxu0 0.0
    %1966 = vmatprep.subr.mxu0 0.0
    %1967 = vmatpush1.msra.mxu0 0.0
    %1968 = vmatprep.subr.mxu0 0.0
    %1969 = vmatpush1.msra.mxu0 0.0
    %1970 = vmatprep.subr.mxu0 0.0
    %1971 = vmatpush1.msra.mxu0 0.0
    %1972 = vmatprep.subr.mxu0 0.0
    %1973 = vmatpush1.msra.mxu0 0.0
    %1974 = vmatprep.subr.mxu0 0.0
    %1975 = vmatpush1.msra.mxu0 0.0
    %1976 = vmatprep.subr.mxu0 0.0
    %1977 = vmatpush1.msra.mxu0 0.0
    %1978 = vmatprep.subr.mxu0 0.0
    %1979 = vmatpush1.msra.mxu0 0.0
    %1980 = vmatprep.subr.mxu0 0.0
    %1981 = vmatpush1.msra.mxu0 0.0
    %1982 = vmatprep.subr.mxu0 0.0
    %1983 = vmatpush1.msra.mxu0 0.0
    %1984 = vmatprep.subr.mxu0 0.0
    %1985 = vmatpush1.msra.mxu0 0.0
    %1986 = vmatprep.subr.mxu0 0.0
    %1987 = vmatpush1.msra.mxu0 0.0
    %1988 = vmatprep.subr.mxu0 0.0
    %1989 = vmatpush1.msra.mxu0 0.0
    %1990 = vmatprep.subr.mxu0 0.0
    %1991 = vmatpush1.msra.mxu0 %v1817
    %1992 = vmatprep.subr.mxu0 0.0
    %1993 = vmatpush2.msra.mxu0 0.0
    %1994 = vmatprep.subr.mxu0 0.0
    %1995 = vmatpush2.msra.mxu0 0.0
    %1996 = vmatprep.subr.mxu0 0.0
    %1997 = vmatpush2.msra.mxu0 0.0
    %1998 = vmatprep.subr.mxu0 0.0
    %1999 = vmatpush2.msra.mxu0 0.0
    %2000 = vmatprep.subr.mxu0 0.0
    %2001 = vmatpush2.msra.mxu0 0.0
    %2002 = vmatprep.subr.mxu0 0.0
    %2003 = vmatpush2.msra.mxu0 0.0
    %2004 = vmatprep.subr.mxu0 0.0
    %2005 = vmatpush2.msra.mxu0 0.0
    %2006 = vmatprep.subr.mxu0 0.0
    %2007 = vmatpush2.msra.mxu0 0.0
    %2008 = vmatprep.subr.mxu0 0.0
    %2009 = vmatpush2.msra.mxu0 0.0
    %2010 = vmatprep.subr.mxu0 0.0
    %2011 = vmatpush2.msra.mxu0 0.0
    %2012 = vmatprep.subr.mxu0 0.0
    %2013 = vmatpush2.msra.mxu0 0.0
    %2014 = vmatprep.subr.mxu0 0.0
    %2015 = vmatpush2.msra.mxu0 0.0
    %2016 = vmatprep.subr.mxu0 0.0
    %2017 = vmatpush2.msra.mxu0 0.0
    %2018 = vmatprep.subr.mxu0 0.0
    %2019 = vmatpush2.msra.mxu0 0.0
    %2020 = vmatprep.subr.mxu0 0.0
    %2021 = vmatpush2.msra.mxu0 0.0
    %2022 = vmatprep.subr.mxu0 0.0
    %2023 = vmatpush2.msra.mxu0 0.0
    %2024 = vmatprep.mubr.f32.mxu0 0.0
    %2025 = vmatmul.mubr.f32.gmra.mxu0 %v1958
    %v2026 = vpop.f32.mrf.mxu0
    %v2027 = vadd.f32 %v597, %v2026
    %v2028 = vpop.f32.mrf.mxu0
    %2029 = vdwg.mxu0
    %2031 = vrot.lane.b32.xlu0 %v1922, 24
    %v2032 = vpop.permute.xlu0 %2031
    %vm2034 = vcmask 261312
    %2035 = vst.msk [vmem:[#allocation2] sm:$0xff] %vm2034, %v2032
    %2037 = vrot.lane.b32.xlu0 %v2027, 24
    %v2038 = vpop.permute.xlu0 %2037
    %2040 = vst.msk [vmem:[#allocation2 + $0x8] sm:$0xff] %vm2034, %v2038
    // Predicated region
    $region34: #{tpu_custom_call.1} parent=1 // pred_check
      _
    $region35: #{tpu_custom_call.1} parent=1 // pred_check_branch
      %2042 = sbr.rel (0) target = $region37
    $region36: #{tpu_custom_call.1} parent=1 // pred_region
      %s2044 = ssub.s32 256, 256
      %2045 = vsyncadd [#allocation3], %s2044
      %s2046 = sshll.u32 [#allocation2], 4
      %s2047 = int_to_ptr.vmem [resolvable:$true] %s2046
      %2052 = dma.vmem_to_hbm [thread:$0]  %s2047, 256, %s8, [#allocation3], 128, 128, 8
    $region37: #{tpu_custom_call.1} parent=1 // pred_fallthru
      _
    // Predicated region
    $region38: #{tpu_custom_call.1} parent=1 // pred_check
      _
    $region39: #{tpu_custom_call.1} parent=1 // pred_check_branch
      %2054 = sbr.rel (0) target = $region41
    $region40: #{tpu_custom_call.1} parent=1 // pred_region
      %2055 = dma.done [#allocation3], 256
    $region41: #{tpu_custom_call.1} parent=1 // pred_fallthru
      _
    %2056 = vsyncpa [#allocation3], 1

// kernel: tpu_custom_call.1
$region0: #{tpu_custom_call.1}
  #allocation0 [shape = 'u32[]', space=smem, size = 0x4, offset = 0x4, fixed_abs, tag = 'smem constant byte address 0x4 - core index']
  #allocation1 [shape = 'u32[144,128]{1,0:T(1,128)}', space=vmem, size = 0x12000, scoped, tag = 'internal scratch']
  %s0 = inlined_call_operand.vmem [shape: f32[32,8], index: 0, kind: input, shape index: {}]
  %s1 = inlined_call_operand.vmem [shape: f32[64,32], index: 1, kind: input, shape index: {}]
  %s2 = inlined_call_operand.vmem [shape: f32[8,8], index: 2, kind: input, shape index: {}]
  %s3 = inlined_call_operand.vmem [shape: f32[1,8], index: 3, kind: input, shape index: {}]
  %s4 = inlined_call_operand.vmem [shape: f32[32,8], index: 4, kind: input, shape index: {}]
  %s5 = inlined_call_operand.vmem [shape: f32[1,8], index: 5, kind: input, shape index: {}]
  %s6 = inlined_call_operand.vmem [shape: f32[16,8], index: 6, kind: input, shape index: {}]
  %s7 = inlined_call_operand.vmem [shape: f32[1,8], index: 7, kind: input, shape index: {}]
  %s8 = inlined_call_operand.hbm [shape: f32[1,16,32], index: 8, kind: output, shape index: {}]
  %s9 = sld [smem:[#allocation0]]
  $region42: #{tpu_custom_call.1} parent=0
    _
  %s11 = ssub.s32 1, %s9
  %s12 = scalar_select 0, %s11, %s9
  $region1: #{tpu_custom_call.1} parent=0
    #allocation2 [shape = 'u8[8192]{0}', space=vmem, size = 0x2000, scoped, tag = 'output window, operand 0, single buffered']
    #allocation3 [shape = 's32[1]{0}', space=sflag, size = 0x4, scoped, tag = 'scoped memory for tpu_custom_call.1']
    %13 = vsyncpa [#allocation3], 0
    // Predicated region
    $region2: #{tpu_custom_call.1} parent=1 // pred_check
      _
    $region3: #{tpu_custom_call.1} parent=1 // pred_check_branch
      %15 = sbr.rel (0) target = $region5
    $region4: #{tpu_custom_call.1} parent=1 // pred_region
      _
    $region5: #{tpu_custom_call.1} parent=1 // pred_fallthru
      _
    // Predicated region
    $region6: #{tpu_custom_call.1} parent=1 // pred_check
      _
    $region7: #{tpu_custom_call.1} parent=1 // pred_check_branch
      %17 = sbr.rel (0) target = $region9
    $region8: #{tpu_custom_call.1} parent=1 // pred_region
      _
    $region9: #{tpu_custom_call.1} parent=1 // pred_fallthru
      _
    // Predicated region
    $region10: #{tpu_custom_call.1} parent=1 // pred_check
      _
    $region11: #{tpu_custom_call.1} parent=1 // pred_check_branch
      %19 = sbr.rel (0) target = $region13
    $region12: #{tpu_custom_call.1} parent=1 // pred_region
      _
    $region13: #{tpu_custom_call.1} parent=1 // pred_fallthru
      _
    // Predicated region
    $region14: #{tpu_custom_call.1} parent=1 // pred_check
      _
    $region15: #{tpu_custom_call.1} parent=1 // pred_check_branch
      %21 = sbr.rel (0) target = $region17
    $region16: #{tpu_custom_call.1} parent=1 // pred_region
      _
    $region17: #{tpu_custom_call.1} parent=1 // pred_fallthru
      _
    // Predicated region
    $region18: #{tpu_custom_call.1} parent=1 // pred_check
      _
    $region19: #{tpu_custom_call.1} parent=1 // pred_check_branch
      %23 = sbr.rel (0) target = $region21
    $region20: #{tpu_custom_call.1} parent=1 // pred_region
      _
    $region21: #{tpu_custom_call.1} parent=1 // pred_fallthru
      _
    // Predicated region
    $region22: #{tpu_custom_call.1} parent=1 // pred_check
      _
    $region23: #{tpu_custom_call.1} parent=1 // pred_check_branch
      %25 = sbr.rel (0) target = $region25
    $region24: #{tpu_custom_call.1} parent=1 // pred_region
      _
    $region25: #{tpu_custom_call.1} parent=1 // pred_fallthru
      _
    // Predicated region
    $region26: #{tpu_custom_call.1} parent=1 // pred_check
      _
    $region27: #{tpu_custom_call.1} parent=1 // pred_check_branch
      %27 = sbr.rel (0) target = $region29
    $region28: #{tpu_custom_call.1} parent=1 // pred_region
      _
    $region29: #{tpu_custom_call.1} parent=1 // pred_fallthru
      _
    // Predicated region
    $region30: #{tpu_custom_call.1} parent=1 // pred_check
      _
    $region31: #{tpu_custom_call.1} parent=1 // pred_check_branch
      %29 = sbr.rel (0) target = $region33
    $region32: #{tpu_custom_call.1} parent=1 // pred_region
      _
    $region33: #{tpu_custom_call.1} parent=1 // pred_fallthru
      _
    %v30 = vld [vmem:[%s2] sm:$0xff]
    %v31 = vld [vmem:[%s4] sm:$0xff]
    %v32 = vld [vmem:[%s4 + $0x8] sm:$0xff]
    %v33 = vld [vmem:[%s4 + $0x10] sm:$0xff]
    %v34 = vld [vmem:[%s4 + $0x18] sm:$0xff]
    %v35 = vld [vmem:[%s6] sm:$0xff]
    %v36 = vld [vmem:[%s6 + $0x8] sm:$0xff]
    %v37 = vld [vmem:[%s3] sm:$0x1]
    %v38 = vld [vmem:[%s5] sm:$0x1]
    %v39 = vld [vmem:[%s7] sm:$0x1]
    %v40 = vld [vmem:[%s0] sm:$0xff]
    %v41 = vld [vmem:[%s0 + $0x8] sm:$0xff]
    %v42 = vld [vmem:[%s0 + $0x10] sm:$0xff]
    %v43 = vld [vmem:[%s0 + $0x18] sm:$0xff]
    %v44 = vld [vmem:[%s1] sm:$0xff]
    %v45 = vld [vmem:[%s1 + $0x8] sm:$0xff]
    %v46 = vld [vmem:[%s1 + $0x10] sm:$0xff]
    %v47 = vld [vmem:[%s1 + $0x18] sm:$0xff]
    %v48 = vld [vmem:[%s1 + $0x20] sm:$0xff]
    %v49 = vld [vmem:[%s1 + $0x28] sm:$0xff]
    %v50 = vld [vmem:[%s1 + $0x30] sm:$0xff]
    %v51 = vld [vmem:[%s1 + $0x38] sm:$0xff]
    %v53 = vlaneseq
    %v54 = vshrl.u32 %v53, 7
    %v55 = vsub.s32 0, %v54
    %v56 = vrot.slane %v37, %v55
    %vm58 = vcmask 64512
    %v60 = vsel %vm58, %v40, 0
    %v63 = vsel %vm58, %v41, 0
    %v66 = vsel %vm58, %v42, 0
    %v69 = vsel %vm58, %v43, 0
    %71 = vmatprep.subr.mxu0 0.0
    %72 = vmatpush1.msra.mxu0 0.0
    %73 = vmatprep.subr.mxu0 0.0
    %74 = vmatpush1.msra.mxu0 0.0
    %75 = vmatprep.subr.mxu0 0.0
    %76 = vmatpush1.msra.mxu0 0.0
    %77 = vmatprep.subr.mxu0 0.0
    %78 = vmatpush1.msra.mxu0 0.0
    %79 = vmatprep.subr.mxu0 0.0
    %80 = vmatpush1.msra.mxu0 0.0
    %81 = vmatprep.subr.mxu0 0.0
    %82 = vmatpush1.msra.mxu0 0.0
    %83 = vmatprep.subr.mxu0 0.0
    %84 = vmatpush1.msra.mxu0 0.0
    %85 = vmatprep.subr.mxu0 0.0
    %86 = vmatpush1.msra.mxu0 0.0
    %87 = vmatprep.subr.mxu0 0.0
    %88 = vmatpush1.msra.mxu0 0.0
    %89 = vmatprep.subr.mxu0 0.0
    %90 = vmatpush1.msra.mxu0 0.0
    %91 = vmatprep.subr.mxu0 0.0
    %92 = vmatpush1.msra.mxu0 0.0
    %93 = vmatprep.subr.mxu0 0.0
    %94 = vmatpush1.msra.mxu0 0.0
    %95 = vmatprep.subr.mxu0 0.0
    %96 = vmatpush1.msra.mxu0 0.0
    %97 = vmatprep.subr.mxu0 0.0
    %98 = vmatpush1.msra.mxu0 0.0
    %99 = vmatprep.subr.mxu0 0.0
    %100 = vmatpush1.msra.mxu0 0.0
    %101 = vmatprep.subr.mxu0 0.0
    %102 = vmatpush1.msra.mxu0 %v30
    %103 = vmatprep.subr.mxu0 0.0
    %104 = vmatpush2.msra.mxu0 0.0
    %105 = vmatprep.subr.mxu0 0.0
    %106 = vmatpush2.msra.mxu0 0.0
    %107 = vmatprep.subr.mxu0 0.0
    %108 = vmatpush2.msra.mxu0 0.0
    %109 = vmatprep.subr.mxu0 0.0
    %110 = vmatpush2.msra.mxu0 0.0
    %111 = vmatprep.subr.mxu0 0.0
    %112 = vmatpush2.msra.mxu0 0.0
    %113 = vmatprep.subr.mxu0 0.0
    %114 = vmatpush2.msra.mxu0 0.0
    %115 = vmatprep.subr.mxu0 0.0
    %116 = vmatpush2.msra.mxu0 0.0
    %117 = vmatprep.subr.mxu0 0.0
    %118 = vmatpush2.msra.mxu0 0.0
    %119 = vmatprep.subr.mxu0 0.0
    %120 = vmatpush2.msra.mxu0 0.0
    %121 = vmatprep.subr.mxu0 0.0
    %122 = vmatpush2.msra.mxu0 0.0
    %123 = vmatprep.subr.mxu0 0.0
    %124 = vmatpush2.msra.mxu0 0.0
    %125 = vmatprep.subr.mxu0 0.0
    %126 = vmatpush2.msra.mxu0 0.0
    %127 = vmatprep.subr.mxu0 0.0
    %128 = vmatpush2.msra.mxu0 0.0
    %129 = vmatprep.subr.mxu0 0.0
    %130 = vmatpush2.msra.mxu0 0.0
    %131 = vmatprep.subr.mxu0 0.0
    %132 = vmatpush2.msra.mxu0 0.0
    %133 = vmatprep.subr.mxu0 0.0
    %134 = vmatpush2.msra.mxu0 0.0
    %135 = vmatprep.mubr.f32.mxu0 0.0
    %136 = vmatmul.mubr.f32.gmra.mxu0 %v60
    %v137 = vpop.f32.mrf.mxu0
    %v138 = vadd.f32 %v56, %v137
    %v139 = vpop.f32.mrf.mxu0
    %140 = vmatprep.mubr.f32.mxu0 0.0
    %141 = vmatmul.mubr.f32.gmra.mxu0 %v63
    %v142 = vpop.f32.mrf.mxu0
    %v143 = vadd.f32 %v56, %v142
    %v144 = vpop.f32.mrf.mxu0
    %145 = vmatprep.mubr.f32.mxu0 0.0
    %146 = vmatmul.mubr.f32.gmra.mxu0 %v66
    %v147 = vpop.f32.mrf.mxu0
    %v148 = vadd.f32 %v56, %v147
    %v149 = vpop.f32.mrf.mxu0
    %150 = vmatprep.mubr.f32.mxu0 0.0
    %151 = vmatmul.mubr.f32.gmra.mxu0 %v69
    %v152 = vpop.f32.mrf.mxu0
    %v153 = vadd.f32 %v56, %v152
    %v154 = vpop.f32.mrf.mxu0
    %155 = vdwg.mxu0
    %v157 = vlaneseq
    %v158 = vshrl.u32 %v157, 7
    %v159 = vsub.s32 0, %v158
    %v160 = vrot.slane %v38, %v159
    %vm162 = vcmask 261120
    %v164 = vsel %vm162, %v44, 0
    %v167 = vsel %vm162, %v45, 0
    %v170 = vsel %vm162, %v46, 0
    %v173 = vsel %vm162, %v47, 0
    %v176 = vsel %vm162, %v48, 0
    %v179 = vsel %vm162, %v49, 0
    %v182 = vsel %vm162, %v50, 0
    %v185 = vsel %vm162, %v51, 0
    %187 = vmatprep.subr.mxu0 0.0
    %188 = vmatpush1.msra.mxu0 0.0
    %189 = vmatprep.subr.mxu0 0.0
    %190 = vmatpush1.msra.mxu0 0.0
    %191 = vmatprep.subr.mxu0 0.0
    %192 = vmatpush1.msra.mxu0 0.0
    %193 = vmatprep.subr.mxu0 0.0
    %194 = vmatpush1.msra.mxu0 0.0
    %195 = vmatprep.subr.mxu0 0.0
    %196 = vmatpush1.msra.mxu0 0.0
    %197 = vmatprep.subr.mxu0 0.0
    %198 = vmatpush1.msra.mxu0 0.0
    %199 = vmatprep.subr.mxu0 0.0
    %200 = vmatpush1.msra.mxu0 0.0
    %201 = vmatprep.subr.mxu0 0.0
    %202 = vmatpush1.msra.mxu0 0.0
    %203 = vmatprep.subr.mxu0 0.0
    %204 = vmatpush1.msra.mxu0 0.0
    %205 = vmatprep.subr.mxu0 0.0
    %206 = vmatpush1.msra.mxu0 0.0
    %207 = vmatprep.subr.mxu0 0.0
    %208 = vmatpush1.msra.mxu0 0.0
    %209 = vmatprep.subr.mxu0 0.0
    %210 = vmatpush1.msra.mxu0 0.0
    %211 = vmatprep.subr.mxu0 0.0
    %212 = vmatpush1.msra.mxu0 %v34
    %213 = vmatprep.subr.mxu0 0.0
    %214 = vmatpush1.msra.mxu0 %v33
    %215 = vmatprep.subr.mxu0 0.0
    %216 = vmatpush1.msra.mxu0 %v32
    %217 = vmatprep.subr.mxu0 0.0
    %218 = vmatpush1.msra.mxu0 %v31
    %219 = vmatprep.subr.mxu0 0.0
    %220 = vmatpush2.msra.mxu0 0.0
    %221 = vmatprep.subr.mxu0 0.0
    %222 = vmatpush2.msra.mxu0 0.0
    %223 = vmatprep.subr.mxu0 0.0
    %224 = vmatpush2.msra.mxu0 0.0
    %225 = vmatprep.subr.mxu0 0.0
    %226 = vmatpush2.msra.mxu0 0.0
    %227 = vmatprep.subr.mxu0 0.0
    %228 = vmatpush2.msra.mxu0 0.0
    %229 = vmatprep.subr.mxu0 0.0
    %230 = vmatpush2.msra.mxu0 0.0
    %231 = vmatprep.subr.mxu0 0.0
    %232 = vmatpush2.msra.mxu0 0.0
    %233 = vmatprep.subr.mxu0 0.0
    %234 = vmatpush2.msra.mxu0 0.0
    %235 = vmatprep.subr.mxu0 0.0
    %236 = vmatpush2.msra.mxu0 0.0
    %237 = vmatprep.subr.mxu0 0.0
    %238 = vmatpush2.msra.mxu0 0.0
    %239 = vmatprep.subr.mxu0 0.0
    %240 = vmatpush2.msra.mxu0 0.0
    %241 = vmatprep.subr.mxu0 0.0
    %242 = vmatpush2.msra.mxu0 0.0
    %243 = vmatprep.subr.mxu0 0.0
    %244 = vmatpush2.msra.mxu0 0.0
    %245 = vmatprep.subr.mxu0 0.0
    %246 = vmatpush2.msra.mxu0 0.0
    %247 = vmatprep.subr.mxu0 0.0
    %248 = vmatpush2.msra.mxu0 0.0
    %249 = vmatprep.subr.mxu0 0.0
    %250 = vmatpush2.msra.mxu0 0.0
    %251 = vmatprep.mubr.f32.mxu0 0.0
    %252 = vmatmul.mubr.f32.gmra.mxu0 %v164
    %v253 = vpop.f32.mrf.mxu0
    %v254 = vadd.f32 %v160, %v253
    %v255 = vpop.f32.mrf.mxu0
    %256 = vmatprep.mubr.f32.mxu0 0.0
    %257 = vmatmul.mubr.f32.gmra.mxu0 %v167
    %v258 = vpop.f32.mrf.mxu0
    %v259 = vadd.f32 %v160, %v258
    %v260 = vpop.f32.mrf.mxu0
    %261 = vmatprep.mubr.f32.mxu0 0.0
    %262 = vmatmul.mubr.f32.gmra.mxu0 %v170
    %v263 = vpop.f32.mrf.mxu0
    %v264 = vadd.f32 %v160, %v263
    %v265 = vpop.f32.mrf.mxu0
    %266 = vmatprep.mubr.f32.mxu0 0.0
    %267 = vmatmul.mubr.f32.gmra.mxu0 %v173
    %v268 = vpop.f32.mrf.mxu0
    %v269 = vadd.f32 %v160, %v268
    %v270 = vpop.f32.mrf.mxu0
    %271 = vmatprep.mubr.f32.mxu0 0.0
    %272 = vmatmul.mubr.f32.gmra.mxu0 %v176
    %v273 = vpop.f32.mrf.mxu0
    %v274 = vadd.f32 %v160, %v273
    %v275 = vpop.f32.mrf.mxu0
    %276 = vmatprep.mubr.f32.mxu0 0.0
    %277 = vmatmul.mubr.f32.gmra.mxu0 %v179
    %v278 = vpop.f32.mrf.mxu0
    %v279 = vadd.f32 %v160, %v278
    %v280 = vpop.f32.mrf.mxu0
    %281 = vmatprep.mubr.f32.mxu0 0.0
    %282 = vmatmul.mubr.f32.gmra.mxu0 %v182
    %v283 = vpop.f32.mrf.mxu0
    %v284 = vadd.f32 %v160, %v283
    %v285 = vpop.f32.mrf.mxu0
    %286 = vmatprep.mubr.f32.mxu0 0.0
    %287 = vmatmul.mubr.f32.gmra.mxu0 %v185
    %v288 = vpop.f32.mrf.mxu0
    %v289 = vadd.f32 %v160, %v288
    %v290 = vpop.f32.mrf.mxu0
    %291 = vdwg.mxu0
    %v293 = vsel %vm58, %v138, 0
    %v296 = vsel %vm58, %v143, 0
    %v299 = vsel %vm58, %v148, 0
    %v302 = vsel %vm58, %v153, 0
    %v305 = vsel %vm58, %v254, 0
    %v308 = vsel %vm58, %v259, 0
    %v311 = vsel %vm58, %v264, 0
    %v314 = vsel %vm58, %v269, 0
    %v317 = vsel %vm58, %v274, 0
    %v320 = vsel %vm58, %v279, 0
    %v323 = vsel %vm58, %v284, 0
    %v326 = vsel %vm58, %v289, 0
    %328 = vmatprep.subr.mxu0 0.0
    %329 = vmatpush1.xpose.msra.mxu0 0.0
    %330 = vmatprep.subr.mxu0 0.0
    %331 = vmatpush1.xpose.msra.mxu0 0.0
    %332 = vmatprep.subr.mxu0 0.0
    %333 = vmatpush1.xpose.msra.mxu0 0.0
    %334 = vmatprep.subr.mxu0 0.0
    %335 = vmatpush1.xpose.msra.mxu0 0.0
    %336 = vmatprep.subr.mxu0 0.0
    %337 = vmatpush1.xpose.msra.mxu0 0.0
    %338 = vmatprep.subr.mxu0 0.0
    %339 = vmatpush1.xpose.msra.mxu0 0.0
    %340 = vmatprep.subr.mxu0 0.0
    %341 = vmatpush1.xpose.msra.mxu0 0.0
    %342 = vmatprep.subr.mxu0 0.0
    %343 = vmatpush1.xpose.msra.mxu0 0.0
    %344 = vmatprep.subr.mxu0 0.0
    %345 = vmatpush1.xpose.msra.mxu0 %v326
    %346 = vmatprep.subr.mxu0 0.0
    %347 = vmatpush1.xpose.msra.mxu0 %v323
    %348 = vmatprep.subr.mxu0 0.0
    %349 = vmatpush1.xpose.msra.mxu0 %v320
    %350 = vmatprep.subr.mxu0 0.0
    %351 = vmatpush1.xpose.msra.mxu0 %v317
    %352 = vmatprep.subr.mxu0 0.0
    %353 = vmatpush1.xpose.msra.mxu0 %v314
    %354 = vmatprep.subr.mxu0 0.0
    %355 = vmatpush1.xpose.msra.mxu0 %v311
    %356 = vmatprep.subr.mxu0 0.0
    %357 = vmatpush1.xpose.msra.mxu0 %v308
    %358 = vmatprep.subr.mxu0 0.0
    %359 = vmatpush1.xpose.msra.mxu0 %v305
    %360 = vmatprep.subr.mxu0 0.0
    %361 = vmatpush2.xpose.msra.mxu0 0.0
    %362 = vmatprep.subr.mxu0 0.0
    %363 = vmatpush2.xpose.msra.mxu0 0.0
    %364 = vmatprep.subr.mxu0 0.0
    %365 = vmatpush2.xpose.msra.mxu0 0.0
    %366 = vmatprep.subr.mxu0 0.0
    %367 = vmatpush2.xpose.msra.mxu0 0.0
    %368 = vmatprep.subr.mxu0 0.0
    %369 = vmatpush2.xpose.msra.mxu0 0.0
    %370 = vmatprep.subr.mxu0 0.0
    %371 = vmatpush2.xpose.msra.mxu0 0.0
    %372 = vmatprep.subr.mxu0 0.0
    %373 = vmatpush2.xpose.msra.mxu0 0.0
    %374 = vmatprep.subr.mxu0 0.0
    %375 = vmatpush2.xpose.msra.mxu0 0.0
    %376 = vmatprep.subr.mxu0 0.0
    %377 = vmatpush2.xpose.msra.mxu0 0.0
    %378 = vmatprep.subr.mxu0 0.0
    %379 = vmatpush2.xpose.msra.mxu0 0.0
    %380 = vmatprep.subr.mxu0 0.0
    %381 = vmatpush2.xpose.msra.mxu0 0.0
    %382 = vmatprep.subr.mxu0 0.0
    %383 = vmatpush2.xpose.msra.mxu0 0.0
    %384 = vmatprep.subr.mxu0 0.0
    %385 = vmatpush2.xpose.msra.mxu0 0.0
    %386 = vmatprep.subr.mxu0 0.0
    %387 = vmatpush2.xpose.msra.mxu0 0.0
    %388 = vmatprep.subr.mxu0 0.0
    %389 = vmatpush2.xpose.msra.mxu0 0.0
    %390 = vmatprep.subr.mxu0 0.0
    %391 = vmatpush2.xpose.msra.mxu0 0.0
    %392 = vmatprep.mubr.f32.mxu0 0.0
    %393 = vmatmul.mubr.f32.gmra.mxu0 %v293
    %v394 = vpop.f32.mrf.mxu0
    %v395 = vadd.f32 0.0, %v394
    %v396 = vpop.f32.mrf.mxu0
    %397 = vmatprep.mubr.f32.mxu0 0.0
    %398 = vmatmul.mubr.f32.gmra.mxu0 %v296
    %v399 = vpop.f32.mrf.mxu0
    %v400 = vadd.f32 0.0, %v399
    %v401 = vpop.f32.mrf.mxu0
    %402 = vmatprep.mubr.f32.mxu0 0.0
    %403 = vmatmul.mubr.f32.gmra.mxu0 %v299
    %v404 = vpop.f32.mrf.mxu0
    %v405 = vadd.f32 0.0, %v404
    %v406 = vpop.f32.mrf.mxu0
    %407 = vmatprep.mubr.f32.mxu0 0.0
    %408 = vmatmul.mubr.f32.gmra.mxu0 %v302
    %v409 = vpop.f32.mrf.mxu0
    %v410 = vadd.f32 0.0, %v409
    %v411 = vpop.f32.mrf.mxu0
    %412 = vdwg.mxu0
    %vm413 = vcmask 130048
    %v414 = vsel %vm413, %v395, -inf
    %415 = vmax.xlane.f32.xlu0 %v414
    %v416 = vpop.xlane.xlu0 %415
    %v417 = vrot.slane %v416, 4
    %v418 = vmax.f32 %v416, %v417
    %v419 = vrot.slane %v418, 2
    %v420 = vmax.f32 %v418, %v419
    %v421 = vrot.slane %v420, 1
    %v422 = vmax.f32 %v420, %v421
    %s423 = vtos %v422
    %v424 = vstv %s423
    %v425 = vsub.f32 %v395, %v424
    %v426 = vmul.f32 %v425, 1.442695
    %v427 = vpow.pop %v426
    %v428 = vsel %vm413, %v427, 0.0
    %v429 = vrot.slane %v428, 4
    %v430 = vadd.f32 %v428, %v429
    %v431 = vrot.slane %v430, 2
    %v432 = vadd.f32 %v430, %v431
    %v433 = vrot.slane %v432, 1
    %v434 = vadd.f32 %v432, %v433
    %435 = vadd.xlane.f32.xlu0 %v428
    %v436 = vpop.xlane.xlu0 %435
    %v437 = vrcp.pop %v434
    %v438 = vmul.f32 %v434, %v437
    %v439 = vsub.f32 2.0, %v438
    %v440 = vmul.f32 %v437, %v439
    %v441 = vrcp.pop %v436
    %v442 = vmul.f32 %v436, %v441
    %v443 = vsub.f32 2.0, %v442
    %v444 = vmul.f32 %v441, %v443
    %v445 = vmul.f32 %v427, %v440
    %v446 = vmul.f32 %v427, %v444
    %v448 = vsel %vm413, %v445, 0
    %450 = vmatprep.subr.mxu0 0.0
    %451 = vmatpush1.msra.mxu0 0.0
    %452 = vmatprep.subr.mxu0 0.0
    %453 = vmatpush1.msra.mxu0 0.0
    %454 = vmatprep.subr.mxu0 0.0
    %455 = vmatpush1.msra.mxu0 0.0
    %456 = vmatprep.subr.mxu0 0.0
    %457 = vmatpush1.msra.mxu0 0.0
    %458 = vmatprep.subr.mxu0 0.0
    %459 = vmatpush1.msra.mxu0 0.0
    %460 = vmatprep.subr.mxu0 0.0
    %461 = vmatpush1.msra.mxu0 0.0
    %462 = vmatprep.subr.mxu0 0.0
    %463 = vmatpush1.msra.mxu0 0.0
    %464 = vmatprep.subr.mxu0 0.0
    %465 = vmatpush1.msra.mxu0 0.0
    %466 = vmatprep.subr.mxu0 0.0
    %467 = vmatpush1.msra.mxu0 0.0
    %468 = vmatprep.subr.mxu0 0.0
    %469 = vmatpush1.msra.mxu0 0.0
    %470 = vmatprep.subr.mxu0 0.0
    %471 = vmatpush1.msra.mxu0 0.0
    %472 = vmatprep.subr.mxu0 0.0
    %473 = vmatpush1.msra.mxu0 0.0
    %474 = vmatprep.subr.mxu0 0.0
    %475 = vmatpush1.msra.mxu0 0.0
    %476 = vmatprep.subr.mxu0 0.0
    %477 = vmatpush1.msra.mxu0 0.0
    %478 = vmatprep.subr.mxu0 0.0
    %479 = vmatpush1.msra.mxu0 %v259
    %480 = vmatprep.subr.mxu0 0.0
    %481 = vmatpush1.msra.mxu0 %v254
    %482 = vmatprep.subr.mxu0 0.0
    %483 = vmatpush2.msra.mxu0 0.0
    %484 = vmatprep.subr.mxu0 0.0
    %485 = vmatpush2.msra.mxu0 0.0
    %486 = vmatprep.subr.mxu0 0.0
    %487 = vmatpush2.msra.mxu0 0.0
    %488 = vmatprep.subr.mxu0 0.0
    %489 = vmatpush2.msra.mxu0 0.0
    %490 = vmatprep.subr.mxu0 0.0
    %491 = vmatpush2.msra.mxu0 0.0
    %492 = vmatprep.subr.mxu0 0.0
    %493 = vmatpush2.msra.mxu0 0.0
    %494 = vmatprep.subr.mxu0 0.0
    %495 = vmatpush2.msra.mxu0 0.0
    %496 = vmatprep.subr.mxu0 0.0
    %497 = vmatpush2.msra.mxu0 0.0
    %498 = vmatprep.subr.mxu0 0.0
    %499 = vmatpush2.msra.mxu0 0.0
    %500 = vmatprep.subr.mxu0 0.0
    %501 = vmatpush2.msra.mxu0 0.0
    %502 = vmatprep.subr.mxu0 0.0
    %503 = vmatpush2.msra.mxu0 0.0
    %504 = vmatprep.subr.mxu0 0.0
    %505 = vmatpush2.msra.mxu0 0.0
    %506 = vmatprep.subr.mxu0 0.0
    %507 = vmatpush2.msra.mxu0 0.0
    %508 = vmatprep.subr.mxu0 0.0
    %509 = vmatpush2.msra.mxu0 0.0
    %510 = vmatprep.subr.mxu0 0.0
    %511 = vmatpush2.msra.mxu0 0.0
    %512 = vmatprep.subr.mxu0 0.0
    %513 = vmatpush2.msra.mxu0 0.0
    %514 = vmatprep.mubr.f32.mxu0 0.0
    %515 = vmatmul.mubr.f32.gmra.mxu0 %v448
    %v516 = vpop.f32.mrf.mxu0
    %v517 = vadd.f32 0.0, %v516
    %v518 = vpop.f32.mrf.mxu0
    %519 = vdwg.mxu0
    %v521 = vsel %vm413, %v446, 0
    %523 = vmatprep.subr.mxu0 0.0
    %524 = vmatpush1.msra.mxu0 0.0
    %525 = vmatprep.subr.mxu0 0.0
    %526 = vmatpush1.msra.mxu0 0.0
    %527 = vmatprep.subr.mxu0 0.0
    %528 = vmatpush1.msra.mxu0 0.0
    %529 = vmatprep.subr.mxu0 0.0
    %530 = vmatpush1.msra.mxu0 0.0
    %531 = vmatprep.subr.mxu0 0.0
    %532 = vmatpush1.msra.mxu0 0.0
    %533 = vmatprep.subr.mxu0 0.0
    %534 = vmatpush1.msra.mxu0 0.0
    %535 = vmatprep.subr.mxu0 0.0
    %536 = vmatpush1.msra.mxu0 0.0
    %537 = vmatprep.subr.mxu0 0.0
    %538 = vmatpush1.msra.mxu0 0.0
    %539 = vmatprep.subr.mxu0 0.0
    %540 = vmatpush1.msra.mxu0 0.0
    %541 = vmatprep.subr.mxu0 0.0
    %542 = vmatpush1.msra.mxu0 0.0
    %543 = vmatprep.subr.mxu0 0.0
    %544 = vmatpush1.msra.mxu0 0.0
    %545 = vmatprep.subr.mxu0 0.0
    %546 = vmatpush1.msra.mxu0 0.0
    %547 = vmatprep.subr.mxu0 0.0
    %548 = vmatpush1.msra.mxu0 0.0
    %549 = vmatprep.subr.mxu0 0.0
    %550 = vmatpush1.msra.mxu0 0.0
    %551 = vmatprep.subr.mxu0 0.0
    %552 = vmatpush1.msra.mxu0 %v36
    %553 = vmatprep.subr.mxu0 0.0
    %554 = vmatpush1.msra.mxu0 %v35
    %555 = vmatprep.subr.mxu0 0.0
    %556 = vmatpush2.msra.mxu0 0.0
    %557 = vmatprep.subr.mxu0 0.0
    %558 = vmatpush2.msra.mxu0 0.0
    %559 = vmatprep.subr.mxu0 0.0
    %560 = vmatpush2.msra.mxu0 0.0
    %561 = vmatprep.subr.mxu0 0.0
    %562 = vmatpush2.msra.mxu0 0.0
    %563 = vmatprep.subr.mxu0 0.0
    %564 = vmatpush2.msra.mxu0 0.0
    %565 = vmatprep.subr.mxu0 0.0
    %566 = vmatpush2.msra.mxu0 0.0
    %567 = vmatprep.subr.mxu0 0.0
    %568 = vmatpush2.msra.mxu0 0.0
    %569 = vmatprep.subr.mxu0 0.0
    %570 = vmatpush2.msra.mxu0 0.0
    %571 = vmatprep.subr.mxu0 0.0
    %572 = vmatpush2.msra.mxu0 0.0
    %573 = vmatprep.subr.mxu0 0.0
    %574 = vmatpush2.msra.mxu0 0.0
    %575 = vmatprep.subr.mxu0 0.0
    %576 = vmatpush2.msra.mxu0 0.0
    %577 = vmatprep.subr.mxu0 0.0
    %578 = vmatpush2.msra.mxu0 0.0
    %579 = vmatprep.subr.mxu0 0.0
    %580 = vmatpush2.msra.mxu0 0.0
    %581 = vmatprep.subr.mxu0 0.0
    %582 = vmatpush2.msra.mxu0 0.0
    %583 = vmatprep.subr.mxu0 0.0
    %584 = vmatpush2.msra.mxu0 0.0
    %585 = vmatprep.subr.mxu0 0.0
    %586 = vmatpush2.msra.mxu0 0.0
    %587 = vmatprep.mubr.f32.mxu0 0.0
    %588 = vmatmul.mubr.f32.gmra.mxu0 %v521
    %v589 = vpop.f32.mrf.mxu0
    %v590 = vadd.f32 0.0, %v589
    %v591 = vpop.f32.mrf.mxu0
    %592 = vdwg.mxu0
    %v594 = vlaneseq
    %v595 = vshrl.u32 %v594, 7
    %v596 = vsub.s32 0, %v595
    %v597 = vrot.slane %v39, %v596
    %599 = vxpose.xlu0.b32.start [1/16] %v40, 128
    %600 = vxpose.xlu0.b32.cont [2/16] 0.0, 128
    %601 = vxpose.xlu0.b32.cont [3/16] 0.0, 128
    %602 = vxpose.xlu0.b32.cont [4/16] 0.0, 128
    %603 = vxpose.xlu0.b32.cont [5/16] 0.0, 128
    %604 = vxpose.xlu0.b32.cont [6/16] 0.0, 128
    %605 = vxpose.xlu0.b32.cont [7/16] 0.0, 128
    %606 = vxpose.xlu0.b32.cont [8/16] 0.0, 128
    %607 = vxpose.xlu0.b32.cont [9/16] 0.0, 128
    %608 = vxpose.xlu0.b32.cont [10/16] 0.0, 128
    %609 = vxpose.xlu0.b32.cont [11/16] 0.0, 128
    %610 = vxpose.xlu0.b32.cont [12/16] 0.0, 128
    %611 = vxpose.xlu0.b32.cont [13/16] 0.0, 128
    %612 = vxpose.xlu0.b32.cont [14/16] 0.0, 128
    %613 = vxpose.xlu0.b32.cont [15/16] 0.0, 128
    %614 = vxpose.xlu0.b32.end [16/16] 0.0, 128
    %v615 = vpop.trf.xlu0
    %v616 = vpop.trf.xlu0
    %v617 = vpop.trf.xlu0
    %v618 = vpop.trf.xlu0
    %v619 = vpop.trf.xlu0
    %v620 = vpop.trf.xlu0
    %v621 = vpop.trf.xlu0
    %v622 = vpop.trf.xlu0
    %v623 = vpop.trf.xlu0
    %v624 = vpop.trf.xlu0
    %v625 = vpop.trf.xlu0
    %v626 = vpop.trf.xlu0
    %v627 = vpop.trf.xlu0
    %v628 = vpop.trf.xlu0
    %v629 = vpop.trf.xlu0
    %v630 = vpop.trf.xlu0
    %v632 = vsel %vm58, %v615, 0
    %634 = vmatprep.subr.mxu0 0.0
    %635 = vmatpush1.msra.mxu0 0.0
    %636 = vmatprep.subr.mxu0 0.0
    %637 = vmatpush1.msra.mxu0 0.0
    %638 = vmatprep.subr.mxu0 0.0
    %639 = vmatpush1.msra.mxu0 0.0
    %640 = vmatprep.subr.mxu0 0.0
    %641 = vmatpush1.msra.mxu0 0.0
    %642 = vmatprep.subr.mxu0 0.0
    %643 = vmatpush1.msra.mxu0 0.0
    %644 = vmatprep.subr.mxu0 0.0
    %645 = vmatpush1.msra.mxu0 0.0
    %646 = vmatprep.subr.mxu0 0.0
    %647 = vmatpush1.msra.mxu0 0.0
    %648 = vmatprep.subr.mxu0 0.0
    %649 = vmatpush1.msra.mxu0 0.0
    %650 = vmatprep.subr.mxu0 0.0
    %651 = vmatpush1.msra.mxu0 0.0
    %652 = vmatprep.subr.mxu0 0.0
    %653 = vmatpush1.msra.mxu0 0.0
    %654 = vmatprep.subr.mxu0 0.0
    %655 = vmatpush1.msra.mxu0 0.0
    %656 = vmatprep.subr.mxu0 0.0
    %657 = vmatpush1.msra.mxu0 0.0
    %658 = vmatprep.subr.mxu0 0.0
    %659 = vmatpush1.msra.mxu0 0.0
    %660 = vmatprep.subr.mxu0 0.0
    %661 = vmatpush1.msra.mxu0 0.0
    %662 = vmatprep.subr.mxu0 0.0
    %663 = vmatpush1.msra.mxu0 0.0
    %664 = vmatprep.subr.mxu0 0.0
    %665 = vmatpush1.msra.mxu0 %v590
    %666 = vmatprep.subr.mxu0 0.0
    %667 = vmatpush2.msra.mxu0 0.0
    %668 = vmatprep.subr.mxu0 0.0
    %669 = vmatpush2.msra.mxu0 0.0
    %670 = vmatprep.subr.mxu0 0.0
    %671 = vmatpush2.msra.mxu0 0.0
    %672 = vmatprep.subr.mxu0 0.0
    %673 = vmatpush2.msra.mxu0 0.0
    %674 = vmatprep.subr.mxu0 0.0
    %675 = vmatpush2.msra.mxu0 0.0
    %676 = vmatprep.subr.mxu0 0.0
    %677 = vmatpush2.msra.mxu0 0.0
    %678 = vmatprep.subr.mxu0 0.0
    %679 = vmatpush2.msra.mxu0 0.0
    %680 = vmatprep.subr.mxu0 0.0
    %681 = vmatpush2.msra.mxu0 0.0
    %682 = vmatprep.subr.mxu0 0.0
    %683 = vmatpush2.msra.mxu0 0.0
    %684 = vmatprep.subr.mxu0 0.0
    %685 = vmatpush2.msra.mxu0 0.0
    %686 = vmatprep.subr.mxu0 0.0
    %687 = vmatpush2.msra.mxu0 0.0
    %688 = vmatprep.subr.mxu0 0.0
    %689 = vmatpush2.msra.mxu0 0.0
    %690 = vmatprep.subr.mxu0 0.0
    %691 = vmatpush2.msra.mxu0 0.0
    %692 = vmatprep.subr.mxu0 0.0
    %693 = vmatpush2.msra.mxu0 0.0
    %694 = vmatprep.subr.mxu0 0.0
    %695 = vmatpush2.msra.mxu0 0.0
    %696 = vmatprep.subr.mxu0 0.0
    %697 = vmatpush2.msra.mxu0 0.0
    %698 = vmatprep.mubr.f32.mxu0 0.0
    %699 = vmatmul.mubr.f32.gmra.mxu0 %v632
    %v700 = vpop.f32.mrf.mxu0
    %v701 = vadd.f32 %v597, %v700
    %v702 = vpop.f32.mrf.mxu0
    %703 = vdwg.mxu0
    %704 = vxpose.xlu0.b32.start [1/16] %v517, 128
    %705 = vxpose.xlu0.b32.cont [2/16] 0.0, 128
    %706 = vxpose.xlu0.b32.cont [3/16] 0.0, 128
    %707 = vxpose.xlu0.b32.cont [4/16] 0.0, 128
    %708 = vxpose.xlu0.b32.cont [5/16] 0.0, 128
    %709 = vxpose.xlu0.b32.cont [6/16] 0.0, 128
    %710 = vxpose.xlu0.b32.cont [7/16] 0.0, 128
    %711 = vxpose.xlu0.b32.cont [8/16] 0.0, 128
    %712 = vxpose.xlu0.b32.cont [9/16] 0.0, 128
    %713 = vxpose.xlu0.b32.cont [10/16] 0.0, 128
    %714 = vxpose.xlu0.b32.cont [11/16] 0.0, 128
    %715 = vxpose.xlu0.b32.cont [12/16] 0.0, 128
    %716 = vxpose.xlu0.b32.cont [13/16] 0.0, 128
    %717 = vxpose.xlu0.b32.cont [14/16] 0.0, 128
    %718 = vxpose.xlu0.b32.cont [15/16] 0.0, 128
    %719 = vxpose.xlu0.b32.end [16/16] 0.0, 128
    %v720 = vpop.trf.xlu0
    %v721 = vpop.trf.xlu0
    %v722 = vpop.trf.xlu0
    %v723 = vpop.trf.xlu0
    %v724 = vpop.trf.xlu0
    %v725 = vpop.trf.xlu0
    %v726 = vpop.trf.xlu0
    %v727 = vpop.trf.xlu0
    %v728 = vpop.trf.xlu0
    %v729 = vpop.trf.xlu0
    %v730 = vpop.trf.xlu0
    %v731 = vpop.trf.xlu0
    %v732 = vpop.trf.xlu0
    %v733 = vpop.trf.xlu0
    %v734 = vpop.trf.xlu0
    %v735 = vpop.trf.xlu0
    %v737 = vsel %vm58, %v720, 0
    %739 = vmatprep.subr.mxu0 0.0
    %740 = vmatpush1.msra.mxu0 0.0
    %741 = vmatprep.subr.mxu0 0.0
    %742 = vmatpush1.msra.mxu0 0.0
    %743 = vmatprep.subr.mxu0 0.0
    %744 = vmatpush1.msra.mxu0 0.0
    %745 = vmatprep.subr.mxu0 0.0
    %746 = vmatpush1.msra.mxu0 0.0
    %747 = vmatprep.subr.mxu0 0.0
    %748 = vmatpush1.msra.mxu0 0.0
    %749 = vmatprep.subr.mxu0 0.0
    %750 = vmatpush1.msra.mxu0 0.0
    %751 = vmatprep.subr.mxu0 0.0
    %752 = vmatpush1.msra.mxu0 0.0
    %753 = vmatprep.subr.mxu0 0.0
    %754 = vmatpush1.msra.mxu0 0.0
    %755 = vmatprep.subr.mxu0 0.0
    %756 = vmatpush1.msra.mxu0 0.0
    %757 = vmatprep.subr.mxu0 0.0
    %758 = vmatpush1.msra.mxu0 0.0
    %759 = vmatprep.subr.mxu0 0.0
    %760 = vmatpush1.msra.mxu0 0.0
    %761 = vmatprep.subr.mxu0 0.0
    %762 = vmatpush1.msra.mxu0 0.0
    %763 = vmatprep.subr.mxu0 0.0
    %764 = vmatpush1.msra.mxu0 0.0
    %765 = vmatprep.subr.mxu0 0.0
    %766 = vmatpush1.msra.mxu0 0.0
    %767 = vmatprep.subr.mxu0 0.0
    %768 = vmatpush1.msra.mxu0 0.0
    %769 = vmatprep.subr.mxu0 0.0
    %770 = vmatpush1.msra.mxu0 %v590
    %771 = vmatprep.subr.mxu0 0.0
    %772 = vmatpush2.msra.mxu0 0.0
    %773 = vmatprep.subr.mxu0 0.0
    %774 = vmatpush2.msra.mxu0 0.0
    %775 = vmatprep.subr.mxu0 0.0
    %776 = vmatpush2.msra.mxu0 0.0
    %777 = vmatprep.subr.mxu0 0.0
    %778 = vmatpush2.msra.mxu0 0.0
    %779 = vmatprep.subr.mxu0 0.0
    %780 = vmatpush2.msra.mxu0 0.0
    %781 = vmatprep.subr.mxu0 0.0
    %782 = vmatpush2.msra.mxu0 0.0
    %783 = vmatprep.subr.mxu0 0.0
    %784 = vmatpush2.msra.mxu0 0.0
    %785 = vmatprep.subr.mxu0 0.0
    %786 = vmatpush2.msra.mxu0 0.0
    %787 = vmatprep.subr.mxu0 0.0
    %788 = vmatpush2.msra.mxu0 0.0
    %789 = vmatprep.subr.mxu0 0.0
    %790 = vmatpush2.msra.mxu0 0.0
    %791 = vmatprep.subr.mxu0 0.0
    %792 = vmatpush2.msra.mxu0 0.0
    %793 = vmatprep.subr.mxu0 0.0
    %794 = vmatpush2.msra.mxu0 0.0
    %795 = vmatprep.subr.mxu0 0.0
    %796 = vmatpush2.msra.mxu0 0.0
    %797 = vmatprep.subr.mxu0 0.0
    %798 = vmatpush2.msra.mxu0 0.0
    %799 = vmatprep.subr.mxu0 0.0
    %800 = vmatpush2.msra.mxu0 0.0
    %801 = vmatprep.subr.mxu0 0.0
    %802 = vmatpush2.msra.mxu0 0.0
    %803 = vmatprep.mubr.f32.mxu0 0.0
    %804 = vmatmul.mubr.f32.gmra.mxu0 %v737
    %v805 = vpop.f32.mrf.mxu0
    %v806 = vadd.f32 %v597, %v805
    %v807 = vpop.f32.mrf.mxu0
    %808 = vdwg.mxu0
    %809 = vst.msk [vmem:[#allocation2] sm:$0xff] %vm58, %v701
    %810 = vst.msk [vmem:[#allocation2 + $0x8] sm:$0xff] %vm58, %v806
    %vm811 = vcmask 261248
    %v812 = vsel %vm811, %v400, -inf
    %813 = vmax.xlane.f32.xlu0 %v812
    %v814 = vpop.xlane.xlu0 %813
    %v815 = vrot.slane %v814, 4
    %v816 = vmax.f32 %v814, %v815
    %v817 = vrot.slane %v816, 2
    %v818 = vmax.f32 %v816, %v817
    %v819 = vrot.slane %v818, 1
    %v820 = vmax.f32 %v818, %v819
    %s821 = vtos %v820
    %v822 = vstv %s821
    %v823 = vsub.f32 %v400, %v822
    %v824 = vmul.f32 %v823, 1.442695
    %v825 = vpow.pop %v824
    %v826 = vsel %vm811, %v825, 0.0
    %v827 = vrot.slane %v826, 4
    %v828 = vadd.f32 %v826, %v827
    %v829 = vrot.slane %v828, 2
    %v830 = vadd.f32 %v828, %v829
    %v831 = vrot.slane %v830, 1
    %v832 = vadd.f32 %v830, %v831
    %834 = vrot.lane.b32.xlu0 %v825, 112
    %v835 = vpop.permute.xlu0 %834
    %v837 = vsel %vm413, %v835, 0.0
    %838 = vadd.xlane.f32.xlu0 %v837
    %v839 = vpop.xlane.xlu0 %838
    %v840 = vrcp.pop %v832
    %v841 = vmul.f32 %v832, %v840
    %v842 = vsub.f32 2.0, %v841
    %v843 = vmul.f32 %v840, %v842
    %v844 = vrcp.pop %v839
    %v845 = vmul.f32 %v839, %v844
    %v846 = vsub.f32 2.0, %v845
    %v847 = vmul.f32 %v844, %v846
    %v848 = vmul.f32 %v825, %v843
    %v849 = vmul.f32 %v825, %v847
    %851 = vrot.lane.b32.xlu0 %v848, 112
    %v852 = vpop.permute.xlu0 %851
    %v853 = vsel %vm413, %v852, 0
    %855 = vmatprep.subr.mxu0 0.0
    %856 = vmatpush1.msra.mxu0 0.0
    %857 = vmatprep.subr.mxu0 0.0
    %858 = vmatpush1.msra.mxu0 0.0
    %859 = vmatprep.subr.mxu0 0.0
    %860 = vmatpush1.msra.mxu0 0.0
    %861 = vmatprep.subr.mxu0 0.0
    %862 = vmatpush1.msra.mxu0 0.0
    %863 = vmatprep.subr.mxu0 0.0
    %864 = vmatpush1.msra.mxu0 0.0
    %865 = vmatprep.subr.mxu0 0.0
    %866 = vmatpush1.msra.mxu0 0.0
    %867 = vmatprep.subr.mxu0 0.0
    %868 = vmatpush1.msra.mxu0 0.0
    %869 = vmatprep.subr.mxu0 0.0
    %870 = vmatpush1.msra.mxu0 0.0
    %871 = vmatprep.subr.mxu0 0.0
    %872 = vmatpush1.msra.mxu0 0.0
    %873 = vmatprep.subr.mxu0 0.0
    %874 = vmatpush1.msra.mxu0 0.0
    %875 = vmatprep.subr.mxu0 0.0
    %876 = vmatpush1.msra.mxu0 0.0
    %877 = vmatprep.subr.mxu0 0.0
    %878 = vmatpush1.msra.mxu0 0.0
    %879 = vmatprep.subr.mxu0 0.0
    %880 = vmatpush1.msra.mxu0 0.0
    %881 = vmatprep.subr.mxu0 0.0
    %882 = vmatpush1.msra.mxu0 0.0
    %883 = vmatprep.subr.mxu0 0.0
    %884 = vmatpush1.msra.mxu0 %v269
    %885 = vmatprep.subr.mxu0 0.0
    %886 = vmatpush1.msra.mxu0 %v264
    %887 = vmatprep.subr.mxu0 0.0
    %888 = vmatpush2.msra.mxu0 0.0
    %889 = vmatprep.subr.mxu0 0.0
    %890 = vmatpush2.msra.mxu0 0.0
    %891 = vmatprep.subr.mxu0 0.0
    %892 = vmatpush2.msra.mxu0 0.0
    %893 = vmatprep.subr.mxu0 0.0
    %894 = vmatpush2.msra.mxu0 0.0
    %895 = vmatprep.subr.mxu0 0.0
    %896 = vmatpush2.msra.mxu0 0.0
    %897 = vmatprep.subr.mxu0 0.0
    %898 = vmatpush2.msra.mxu0 0.0
    %899 = vmatprep.subr.mxu0 0.0
    %900 = vmatpush2.msra.mxu0 0.0
    %901 = vmatprep.subr.mxu0 0.0
    %902 = vmatpush2.msra.mxu0 0.0
    %903 = vmatprep.subr.mxu0 0.0
    %904 = vmatpush2.msra.mxu0 0.0
    %905 = vmatprep.subr.mxu0 0.0
    %906 = vmatpush2.msra.mxu0 0.0
    %907 = vmatprep.subr.mxu0 0.0
    %908 = vmatpush2.msra.mxu0 0.0
    %909 = vmatprep.subr.mxu0 0.0
    %910 = vmatpush2.msra.mxu0 0.0
    %911 = vmatprep.subr.mxu0 0.0
    %912 = vmatpush2.msra.mxu0 0.0
    %913 = vmatprep.subr.mxu0 0.0
    %914 = vmatpush2.msra.mxu0 0.0
    %915 = vmatprep.subr.mxu0 0.0
    %916 = vmatpush2.msra.mxu0 0.0
    %917 = vmatprep.subr.mxu0 0.0
    %918 = vmatpush2.msra.mxu0 0.0
    %919 = vmatprep.mubr.f32.mxu0 0.0
    %920 = vmatmul.mubr.f32.gmra.mxu0 %v853
    %v921 = vpop.f32.mrf.mxu0
    %v922 = vadd.f32 0.0, %v921
    %v923 = vpop.f32.mrf.mxu0
    %924 = vdwg.mxu0
    %926 = vrot.lane.b32.xlu0 %v849, 112
    %v927 = vpop.permute.xlu0 %926
    %v928 = vsel %vm413, %v927, 0
    %930 = vmatprep.subr.mxu0 0.0
    %931 = vmatpush1.msra.mxu0 0.0
    %932 = vmatprep.subr.mxu0 0.0
    %933 = vmatpush1.msra.mxu0 0.0
    %934 = vmatprep.subr.mxu0 0.0
    %935 = vmatpush1.msra.mxu0 0.0
    %936 = vmatprep.subr.mxu0 0.0
    %937 = vmatpush1.msra.mxu0 0.0
    %938 = vmatprep.subr.mxu0 0.0
    %939 = vmatpush1.msra.mxu0 0.0
    %940 = vmatprep.subr.mxu0 0.0
    %941 = vmatpush1.msra.mxu0 0.0
    %942 = vmatprep.subr.mxu0 0.0
    %943 = vmatpush1.msra.mxu0 0.0
    %944 = vmatprep.subr.mxu0 0.0
    %945 = vmatpush1.msra.mxu0 0.0
    %946 = vmatprep.subr.mxu0 0.0
    %947 = vmatpush1.msra.mxu0 0.0
    %948 = vmatprep.subr.mxu0 0.0
    %949 = vmatpush1.msra.mxu0 0.0
    %950 = vmatprep.subr.mxu0 0.0
    %951 = vmatpush1.msra.mxu0 0.0
    %952 = vmatprep.subr.mxu0 0.0
    %953 = vmatpush1.msra.mxu0 0.0
    %954 = vmatprep.subr.mxu0 0.0
    %955 = vmatpush1.msra.mxu0 0.0
    %956 = vmatprep.subr.mxu0 0.0
    %957 = vmatpush1.msra.mxu0 0.0
    %958 = vmatprep.subr.mxu0 0.0
    %959 = vmatpush1.msra.mxu0 %v36
    %960 = vmatprep.subr.mxu0 0.0
    %961 = vmatpush1.msra.mxu0 %v35
    %962 = vmatprep.subr.mxu0 0.0
    %963 = vmatpush2.msra.mxu0 0.0
    %964 = vmatprep.subr.mxu0 0.0
    %965 = vmatpush2.msra.mxu0 0.0
    %966 = vmatprep.subr.mxu0 0.0
    %967 = vmatpush2.msra.mxu0 0.0
    %968 = vmatprep.subr.mxu0 0.0
    %969 = vmatpush2.msra.mxu0 0.0
    %970 = vmatprep.subr.mxu0 0.0
    %971 = vmatpush2.msra.mxu0 0.0
    %972 = vmatprep.subr.mxu0 0.0
    %973 = vmatpush2.msra.mxu0 0.0
    %974 = vmatprep.subr.mxu0 0.0
    %975 = vmatpush2.msra.mxu0 0.0
    %976 = vmatprep.subr.mxu0 0.0
    %977 = vmatpush2.msra.mxu0 0.0
    %978 = vmatprep.subr.mxu0 0.0
    %979 = vmatpush2.msra.mxu0 0.0
    %980 = vmatprep.subr.mxu0 0.0
    %981 = vmatpush2.msra.mxu0 0.0
    %982 = vmatprep.subr.mxu0 0.0
    %983 = vmatpush2.msra.mxu0 0.0
    %984 = vmatprep.subr.mxu0 0.0
    %985 = vmatpush2.msra.mxu0 0.0
    %986 = vmatprep.subr.mxu0 0.0
    %987 = vmatpush2.msra.mxu0 0.0
    %988 = vmatprep.subr.mxu0 0.0
    %989 = vmatpush2.msra.mxu0 0.0
    %990 = vmatprep.subr.mxu0 0.0
    %991 = vmatpush2.msra.mxu0 0.0
    %992 = vmatprep.subr.mxu0 0.0
    %993 = vmatpush2.msra.mxu0 0.0
    %994 = vmatprep.mubr.f32.mxu0 0.0
    %995 = vmatmul.mubr.f32.gmra.mxu0 %v928
    %v996 = vpop.f32.mrf.mxu0
    %v997 = vadd.f32 0.0, %v996
    %v998 = vpop.f32.mrf.mxu0
    %999 = vdwg.mxu0
    %1000 = vxpose.xlu0.b32.start [1/16] %v41, 128
    %1001 = vxpose.xlu0.b32.cont [2/16] 0.0, 128
    %1002 = vxpose.xlu0.b32.cont [3/16] 0.0, 128
    %1003 = vxpose.xlu0.b32.cont [4/16] 0.0, 128
    %1004 = vxpose.xlu0.b32.cont [5/16] 0.0, 128
    %1005 = vxpose.xlu0.b32.cont [6/16] 0.0, 128
    %1006 = vxpose.xlu0.b32.cont [7/16] 0.0, 128
    %1007 = vxpose.xlu0.b32.cont [8/16] 0.0, 128
    %1008 = vxpose.xlu0.b32.cont [9/16] 0.0, 128
    %1009 = vxpose.xlu0.b32.cont [10/16] 0.0, 128
    %1010 = vxpose.xlu0.b32.cont [11/16] 0.0, 128
    %1011 = vxpose.xlu0.b32.cont [12/16] 0.0, 128
    %1012 = vxpose.xlu0.b32.cont [13/16] 0.0, 128
    %1013 = vxpose.xlu0.b32.cont [14/16] 0.0, 128
    %1014 = vxpose.xlu0.b32.cont [15/16] 0.0, 128
    %1015 = vxpose.xlu0.b32.end [16/16] 0.0, 128
    %v1016 = vpop.trf.xlu0
    %v1017 = vpop.trf.xlu0
    %v1018 = vpop.trf.xlu0
    %v1019 = vpop.trf.xlu0
    %v1020 = vpop.trf.xlu0
    %v1021 = vpop.trf.xlu0
    %v1022 = vpop.trf.xlu0
    %v1023 = vpop.trf.xlu0
    %v1024 = vpop.trf.xlu0
    %v1025 = vpop.trf.xlu0
    %v1026 = vpop.trf.xlu0
    %v1027 = vpop.trf.xlu0
    %v1028 = vpop.trf.xlu0
    %v1029 = vpop.trf.xlu0
    %v1030 = vpop.trf.xlu0
    %v1031 = vpop.trf.xlu0
    %v1033 = vsel %vm58, %v1016, 0
    %1035 = vmatprep.subr.mxu0 0.0
    %1036 = vmatpush1.msra.mxu0 0.0
    %1037 = vmatprep.subr.mxu0 0.0
    %1038 = vmatpush1.msra.mxu0 0.0
    %1039 = vmatprep.subr.mxu0 0.0
    %1040 = vmatpush1.msra.mxu0 0.0
    %1041 = vmatprep.subr.mxu0 0.0
    %1042 = vmatpush1.msra.mxu0 0.0
    %1043 = vmatprep.subr.mxu0 0.0
    %1044 = vmatpush1.msra.mxu0 0.0
    %1045 = vmatprep.subr.mxu0 0.0
    %1046 = vmatpush1.msra.mxu0 0.0
    %1047 = vmatprep.subr.mxu0 0.0
    %1048 = vmatpush1.msra.mxu0 0.0
    %1049 = vmatprep.subr.mxu0 0.0
    %1050 = vmatpush1.msra.mxu0 0.0
    %1051 = vmatprep.subr.mxu0 0.0
    %1052 = vmatpush1.msra.mxu0 0.0
    %1053 = vmatprep.subr.mxu0 0.0
    %1054 = vmatpush1.msra.mxu0 0.0
    %1055 = vmatprep.subr.mxu0 0.0
    %1056 = vmatpush1.msra.mxu0 0.0
    %1057 = vmatprep.subr.mxu0 0.0
    %1058 = vmatpush1.msra.mxu0 0.0
    %1059 = vmatprep.subr.mxu0 0.0
    %1060 = vmatpush1.msra.mxu0 0.0
    %1061 = vmatprep.subr.mxu0 0.0
    %1062 = vmatpush1.msra.mxu0 0.0
    %1063 = vmatprep.subr.mxu0 0.0
    %1064 = vmatpush1.msra.mxu0 0.0
    %1065 = vmatprep.subr.mxu0 0.0
    %1066 = vmatpush1.msra.mxu0 %v997
    %1067 = vmatprep.subr.mxu0 0.0
    %1068 = vmatpush2.msra.mxu0 0.0
    %1069 = vmatprep.subr.mxu0 0.0
    %1070 = vmatpush2.msra.mxu0 0.0
    %1071 = vmatprep.subr.mxu0 0.0
    %1072 = vmatpush2.msra.mxu0 0.0
    %1073 = vmatprep.subr.mxu0 0.0
    %1074 = vmatpush2.msra.mxu0 0.0
    %1075 = vmatprep.subr.mxu0 0.0
    %1076 = vmatpush2.msra.mxu0 0.0
    %1077 = vmatprep.subr.mxu0 0.0
    %1078 = vmatpush2.msra.mxu0 0.0
    %1079 = vmatprep.subr.mxu0 0.0
    %1080 = vmatpush2.msra.mxu0 0.0
    %1081 = vmatprep.subr.mxu0 0.0
    %1082 = vmatpush2.msra.mxu0 0.0
    %1083 = vmatprep.subr.mxu0 0.0
    %1084 = vmatpush2.msra.mxu0 0.0
    %1085 = vmatprep.subr.mxu0 0.0
    %1086 = vmatpush2.msra.mxu0 0.0
    %1087 = vmatprep.subr.mxu0 0.0
    %1088 = vmatpush2.msra.mxu0 0.0
    %1089 = vmatprep.subr.mxu0 0.0
    %1090 = vmatpush2.msra.mxu0 0.0
    %1091 = vmatprep.subr.mxu0 0.0
    %1092 = vmatpush2.msra.mxu0 0.0
    %1093 = vmatprep.subr.mxu0 0.0
    %1094 = vmatpush2.msra.mxu0 0.0
    %1095 = vmatprep.subr.mxu0 0.0
    %1096 = vmatpush2.msra.mxu0 0.0
    %1097 = vmatprep.subr.mxu0 0.0
    %1098 = vmatpush2.msra.mxu0 0.0
    %1099 = vmatprep.mubr.f32.mxu0 0.0
    %1100 = vmatmul.mubr.f32.gmra.mxu0 %v1033
    %v1101 = vpop.f32.mrf.mxu0
    %v1102 = vadd.f32 %v597, %v1101
    %v1103 = vpop.f32.mrf.mxu0
    %1104 = vdwg.mxu0
    %1105 = vxpose.xlu0.b32.start [1/16] %v922, 128
    %1106 = vxpose.xlu0.b32.cont [2/16] 0.0, 128
    %1107 = vxpose.xlu0.b32.cont [3/16] 0.0, 128
    %1108 = vxpose.xlu0.b32.cont [4/16] 0.0, 128
    %1109 = vxpose.xlu0.b32.cont [5/16] 0.0, 128
    %1110 = vxpose.xlu0.b32.cont [6/16] 0.0, 128
    %1111 = vxpose.xlu0.b32.cont [7/16] 0.0, 128
    %1112 = vxpose.xlu0.b32.cont [8/16] 0.0, 128
    %1113 = vxpose.xlu0.b32.cont [9/16] 0.0, 128
    %1114 = vxpose.xlu0.b32.cont [10/16] 0.0, 128
    %1115 = vxpose.xlu0.b32.cont [11/16] 0.0, 128
    %1116 = vxpose.xlu0.b32.cont [12/16] 0.0, 128
    %1117 = vxpose.xlu0.b32.cont [13/16] 0.0, 128
    %1118 = vxpose.xlu0.b32.cont [14/16] 0.0, 128
    %1119 = vxpose.xlu0.b32.cont [15/16] 0.0, 128
    %1120 = vxpose.xlu0.b32.end [16/16] 0.0, 128
    %v1121 = vpop.trf.xlu0
    %v1122 = vpop.trf.xlu0
    %v1123 = vpop.trf.xlu0
    %v1124 = vpop.trf.xlu0
    %v1125 = vpop.trf.xlu0
    %v1126 = vpop.trf.xlu0
    %v1127 = vpop.trf.xlu0
    %v1128 = vpop.trf.xlu0
    %v1129 = vpop.trf.xlu0
    %v1130 = vpop.trf.xlu0
    %v1131 = vpop.trf.xlu0
    %v1132 = vpop.trf.xlu0
    %v1133 = vpop.trf.xlu0
    %v1134 = vpop.trf.xlu0
    %v1135 = vpop.trf.xlu0
    %v1136 = vpop.trf.xlu0
    %v1138 = vsel %vm58, %v1121, 0
    %1140 = vmatprep.subr.mxu0 0.0
    %1141 = vmatpush1.msra.mxu0 0.0
    %1142 = vmatprep.subr.mxu0 0.0
    %1143 = vmatpush1.msra.mxu0 0.0
    %1144 = vmatprep.subr.mxu0 0.0
    %1145 = vmatpush1.msra.mxu0 0.0
    %1146 = vmatprep.subr.mxu0 0.0
    %1147 = vmatpush1.msra.mxu0 0.0
    %1148 = vmatprep.subr.mxu0 0.0
    %1149 = vmatpush1.msra.mxu0 0.0
    %1150 = vmatprep.subr.mxu0 0.0
    %1151 = vmatpush1.msra.mxu0 0.0
    %1152 = vmatprep.subr.mxu0 0.0
    %1153 = vmatpush1.msra.mxu0 0.0
    %1154 = vmatprep.subr.mxu0 0.0
    %1155 = vmatpush1.msra.mxu0 0.0
    %1156 = vmatprep.subr.mxu0 0.0
    %1157 = vmatpush1.msra.mxu0 0.0
    %1158 = vmatprep.subr.mxu0 0.0
    %1159 = vmatpush1.msra.mxu0 0.0
    %1160 = vmatprep.subr.mxu0 0.0
    %1161 = vmatpush1.msra.mxu0 0.0
    %1162 = vmatprep.subr.mxu0 0.0
    %1163 = vmatpush1.msra.mxu0 0.0
    %1164 = vmatprep.subr.mxu0 0.0
    %1165 = vmatpush1.msra.mxu0 0.0
    %1166 = vmatprep.subr.mxu0 0.0
    %1167 = vmatpush1.msra.mxu0 0.0
    %1168 = vmatprep.subr.mxu0 0.0
    %1169 = vmatpush1.msra.mxu0 0.0
    %1170 = vmatprep.subr.mxu0 0.0
    %1171 = vmatpush1.msra.mxu0 %v997
    %1172 = vmatprep.subr.mxu0 0.0
    %1173 = vmatpush2.msra.mxu0 0.0
    %1174 = vmatprep.subr.mxu0 0.0
    %1175 = vmatpush2.msra.mxu0 0.0
    %1176 = vmatprep.subr.mxu0 0.0
    %1177 = vmatpush2.msra.mxu0 0.0
    %1178 = vmatprep.subr.mxu0 0.0
    %1179 = vmatpush2.msra.mxu0 0.0
    %1180 = vmatprep.subr.mxu0 0.0
    %1181 = vmatpush2.msra.mxu0 0.0
    %1182 = vmatprep.subr.mxu0 0.0
    %1183 = vmatpush2.msra.mxu0 0.0
    %1184 = vmatprep.subr.mxu0 0.0
    %1185 = vmatpush2.msra.mxu0 0.0
    %1186 = vmatprep.subr.mxu0 0.0
    %1187 = vmatpush2.msra.mxu0 0.0
    %1188 = vmatprep.subr.mxu0 0.0
    %1189 = vmatpush2.msra.mxu0 0.0
    %1190 = vmatprep.subr.mxu0 0.0
    %1191 = vmatpush2.msra.mxu0 0.0
    %1192 = vmatprep.subr.mxu0 0.0
    %1193 = vmatpush2.msra.mxu0 0.0
    %1194 = vmatprep.subr.mxu0 0.0
    %1195 = vmatpush2.msra.mxu0 0.0
    %1196 = vmatprep.subr.mxu0 0.0
    %1197 = vmatpush2.msra.mxu0 0.0
    %1198 = vmatprep.subr.mxu0 0.0
    %1199 = vmatpush2.msra.mxu0 0.0
    %1200 = vmatprep.subr.mxu0 0.0
    %1201 = vmatpush2.msra.mxu0 0.0
    %1202 = vmatprep.subr.mxu0 0.0
    %1203 = vmatpush2.msra.mxu0 0.0
    %1204 = vmatprep.mubr.f32.mxu0 0.0
    %1205 = vmatmul.mubr.f32.gmra.mxu0 %v1138
    %v1206 = vpop.f32.mrf.mxu0
    %v1207 = vadd.f32 %v597, %v1206
    %v1208 = vpop.f32.mrf.mxu0
    %1209 = vdwg.mxu0
    %1211 = vrot.lane.b32.xlu0 %v1102, 8
    %v1212 = vpop.permute.xlu0 %1211
    %vm1214 = vcmask 130112
    %1215 = vst.msk [vmem:[#allocation2] sm:$0xff] %vm1214, %v1212
    %1217 = vrot.lane.b32.xlu0 %v1207, 8
    %v1218 = vpop.permute.xlu0 %1217
    %1220 = vst.msk [vmem:[#allocation2 + $0x8] sm:$0xff] %vm1214, %v1218
    %vm1221 = vcmask 392448
    %v1222 = vsel %vm1221, %v405, -inf
    %1223 = vmax.xlane.f32.xlu0 %v1222
    %v1224 = vpop.xlane.xlu0 %1223
    %v1225 = vrot.slane %v1224, 4
    %v1226 = vmax.f32 %v1224, %v1225
    %v1227 = vrot.slane %v1226, 2
    %v1228 = vmax.f32 %v1226, %v1227
    %v1229 = vrot.slane %v1228, 1
    %v1230 = vmax.f32 %v1228, %v1229
    %s1231 = vtos %v1230
    %v1232 = vstv %s1231
    %v1233 = vsub.f32 %v405, %v1232
    %v1234 = vmul.f32 %v1233, 1.442695
    %v1235 = vpow.pop %v1234
    %v1236 = vsel %vm1221, %v1235, 0.0
    %v1237 = vrot.slane %v1236, 4
    %v1238 = vadd.f32 %v1236, %v1237
    %v1239 = vrot.slane %v1238, 2
    %v1240 = vadd.f32 %v1238, %v1239
    %v1241 = vrot.slane %v1240, 1
    %v1242 = vadd.f32 %v1240, %v1241
    %1244 = vrot.lane.b32.xlu0 %v1235, 96
    %v1245 = vpop.permute.xlu0 %1244
    %v1247 = vsel %vm413, %v1245, 0.0
    %1248 = vadd.xlane.f32.xlu0 %v1247
    %v1249 = vpop.xlane.xlu0 %1248
    %v1250 = vrcp.pop %v1242
    %v1251 = vmul.f32 %v1242, %v1250
    %v1252 = vsub.f32 2.0, %v1251
    %v1253 = vmul.f32 %v1250, %v1252
    %v1254 = vrcp.pop %v1249
    %v1255 = vmul.f32 %v1249, %v1254
    %v1256 = vsub.f32 2.0, %v1255
    %v1257 = vmul.f32 %v1254, %v1256
    %v1258 = vmul.f32 %v1235, %v1253
    %v1259 = vmul.f32 %v1235, %v1257
    %1261 = vrot.lane.b32.xlu0 %v1258, 96
    %v1262 = vpop.permute.xlu0 %1261
    %v1263 = vsel %vm413, %v1262, 0
    %1265 = vmatprep.subr.mxu0 0.0
    %1266 = vmatpush1.msra.mxu0 0.0
    %1267 = vmatprep.subr.mxu0 0.0
    %1268 = vmatpush1.msra.mxu0 0.0
    %1269 = vmatprep.subr.mxu0 0.0
    %1270 = vmatpush1.msra.mxu0 0.0
    %1271 = vmatprep.subr.mxu0 0.0
    %1272 = vmatpush1.msra.mxu0 0.0
    %1273 = vmatprep.subr.mxu0 0.0
    %1274 = vmatpush1.msra.mxu0 0.0
    %1275 = vmatprep.subr.mxu0 0.0
    %1276 = vmatpush1.msra.mxu0 0.0
    %1277 = vmatprep.subr.mxu0 0.0
    %1278 = vmatpush1.msra.mxu0 0.0
    %1279 = vmatprep.subr.mxu0 0.0
    %1280 = vmatpush1.msra.mxu0 0.0
    %1281 = vmatprep.subr.mxu0 0.0
    %1282 = vmatpush1.msra.mxu0 0.0
    %1283 = vmatprep.subr.mxu0 0.0
    %1284 = vmatpush1.msra.mxu0 0.0
    %1285 = vmatprep.subr.mxu0 0.0
    %1286 = vmatpush1.msra.mxu0 0.0
    %1287 = vmatprep.subr.mxu0 0.0
    %1288 = vmatpush1.msra.mxu0 0.0
    %1289 = vmatprep.subr.mxu0 0.0
    %1290 = vmatpush1.msra.mxu0 0.0
    %1291 = vmatprep.subr.mxu0 0.0
    %1292 = vmatpush1.msra.mxu0 0.0
    %1293 = vmatprep.subr.mxu0 0.0
    %1294 = vmatpush1.msra.mxu0 %v279
    %1295 = vmatprep.subr.mxu0 0.0
    %1296 = vmatpush1.msra.mxu0 %v274
    %1297 = vmatprep.subr.mxu0 0.0
    %1298 = vmatpush2.msra.mxu0 0.0
    %1299 = vmatprep.subr.mxu0 0.0
    %1300 = vmatpush2.msra.mxu0 0.0
    %1301 = vmatprep.subr.mxu0 0.0
    %1302 = vmatpush2.msra.mxu0 0.0
    %1303 = vmatprep.subr.mxu0 0.0
    %1304 = vmatpush2.msra.mxu0 0.0
    %1305 = vmatprep.subr.mxu0 0.0
    %1306 = vmatpush2.msra.mxu0 0.0
    %1307 = vmatprep.subr.mxu0 0.0
    %1308 = vmatpush2.msra.mxu0 0.0
    %1309 = vmatprep.subr.mxu0 0.0
    %1310 = vmatpush2.msra.mxu0 0.0
    %1311 = vmatprep.subr.mxu0 0.0
    %1312 = vmatpush2.msra.mxu0 0.0
    %1313 = vmatprep.subr.mxu0 0.0
    %1314 = vmatpush2.msra.mxu0 0.0
    %1315 = vmatprep.subr.mxu0 0.0
    %1316 = vmatpush2.msra.mxu0 0.0
    %1317 = vmatprep.subr.mxu0 0.0
    %1318 = vmatpush2.msra.mxu0 0.0
    %1319 = vmatprep.subr.mxu0 0.0
    %1320 = vmatpush2.msra.mxu0 0.0
    %1321 = vmatprep.subr.mxu0 0.0
    %1322 = vmatpush2.msra.mxu0 0.0
    %1323 = vmatprep.subr.mxu0 0.0
    %1324 = vmatpush2.msra.mxu0 0.0
    %1325 = vmatprep.subr.mxu0 0.0
    %1326 = vmatpush2.msra.mxu0 0.0
    %1327 = vmatprep.subr.mxu0 0.0
    %1328 = vmatpush2.msra.mxu0 0.0
    %1329 = vmatprep.mubr.f32.mxu0 0.0
    %1330 = vmatmul.mubr.f32.gmra.mxu0 %v1263
    %v1331 = vpop.f32.mrf.mxu0
    %v1332 = vadd.f32 0.0, %v1331
    %v1333 = vpop.f32.mrf.mxu0
    %1334 = vdwg.mxu0
    %1336 = vrot.lane.b32.xlu0 %v1259, 96
    %v1337 = vpop.permute.xlu0 %1336
    %v1338 = vsel %vm413, %v1337, 0
    %1340 = vmatprep.subr.mxu0 0.0
    %1341 = vmatpush1.msra.mxu0 0.0
    %1342 = vmatprep.subr.mxu0 0.0
    %1343 = vmatpush1.msra.mxu0 0.0
    %1344 = vmatprep.subr.mxu0 0.0
    %1345 = vmatpush1.msra.mxu0 0.0
    %1346 = vmatprep.subr.mxu0 0.0
    %1347 = vmatpush1.msra.mxu0 0.0
    %1348 = vmatprep.subr.mxu0 0.0
    %1349 = vmatpush1.msra.mxu0 0.0
    %1350 = vmatprep.subr.mxu0 0.0
    %1351 = vmatpush1.msra.mxu0 0.0
    %1352 = vmatprep.subr.mxu0 0.0
    %1353 = vmatpush1.msra.mxu0 0.0
    %1354 = vmatprep.subr.mxu0 0.0
    %1355 = vmatpush1.msra.mxu0 0.0
    %1356 = vmatprep.subr.mxu0 0.0
    %1357 = vmatpush1.msra.mxu0 0.0
    %1358 = vmatprep.subr.mxu0 0.0
    %1359 = vmatpush1.msra.mxu0 0.0
    %1360 = vmatprep.subr.mxu0 0.0
    %1361 = vmatpush1.msra.mxu0 0.0
    %1362 = vmatprep.subr.mxu0 0.0
    %1363 = vmatpush1.msra.mxu0 0.0
    %1364 = vmatprep.subr.mxu0 0.0
    %1365 = vmatpush1.msra.mxu0 0.0
    %1366 = vmatprep.subr.mxu0 0.0
    %1367 = vmatpush1.msra.mxu0 0.0
    %1368 = vmatprep.subr.mxu0 0.0
    %1369 = vmatpush1.msra.mxu0 %v36
    %1370 = vmatprep.subr.mxu0 0.0
    %1371 = vmatpush1.msra.mxu0 %v35
    %1372 = vmatprep.subr.mxu0 0.0
    %1373 = vmatpush2.msra.mxu0 0.0
    %1374 = vmatprep.subr.mxu0 0.0
    %1375 = vmatpush2.msra.mxu0 0.0
    %1376 = vmatprep.subr.mxu0 0.0
    %1377 = vmatpush2.msra.mxu0 0.0
    %1378 = vmatprep.subr.mxu0 0.0
    %1379 = vmatpush2.msra.mxu0 0.0
    %1380 = vmatprep.subr.mxu0 0.0
    %1381 = vmatpush2.msra.mxu0 0.0
    %1382 = vmatprep.subr.mxu0 0.0
    %1383 = vmatpush2.msra.mxu0 0.0
    %1384 = vmatprep.subr.mxu0 0.0
    %1385 = vmatpush2.msra.mxu0 0.0
    %1386 = vmatprep.subr.mxu0 0.0
    %1387 = vmatpush2.msra.mxu0 0.0
    %1388 = vmatprep.subr.mxu0 0.0
    %1389 = vmatpush2.msra.mxu0 0.0
    %1390 = vmatprep.subr.mxu0 0.0
    %1391 = vmatpush2.msra.mxu0 0.0
    %1392 = vmatprep.subr.mxu0 0.0
    %1393 = vmatpush2.msra.mxu0 0.0
    %1394 = vmatprep.subr.mxu0 0.0
    %1395 = vmatpush2.msra.mxu0 0.0
    %1396 = vmatprep.subr.mxu0 0.0
    %1397 = vmatpush2.msra.mxu0 0.0
    %1398 = vmatprep.subr.mxu0 0.0
    %1399 = vmatpush2.msra.mxu0 0.0
    %1400 = vmatprep.subr.mxu0 0.0
    %1401 = vmatpush2.msra.mxu0 0.0
    %1402 = vmatprep.subr.mxu0 0.0
    %1403 = vmatpush2.msra.mxu0 0.0
    %1404 = vmatprep.mubr.f32.mxu0 0.0
    %1405 = vmatmul.mubr.f32.gmra.mxu0 %v1338
    %v1406 = vpop.f32.mrf.mxu0
    %v1407 = vadd.f32 0.0, %v1406
    %v1408 = vpop.f32.mrf.mxu0
    %1409 = vdwg.mxu0
    %1410 = vxpose.xlu0.b32.start [1/16] %v42, 128
    %1411 = vxpose.xlu0.b32.cont [2/16] 0.0, 128
    %1412 = vxpose.xlu0.b32.cont [3/16] 0.0, 128
    %1413 = vxpose.xlu0.b32.cont [4/16] 0.0, 128
    %1414 = vxpose.xlu0.b32.cont [5/16] 0.0, 128
    %1415 = vxpose.xlu0.b32.cont [6/16] 0.0, 128
    %1416 = vxpose.xlu0.b32.cont [7/16] 0.0, 128
    %1417 = vxpose.xlu0.b32.cont [8/16] 0.0, 128
    %1418 = vxpose.xlu0.b32.cont [9/16] 0.0, 128
    %1419 = vxpose.xlu0.b32.cont [10/16] 0.0, 128
    %1420 = vxpose.xlu0.b32.cont [11/16] 0.0, 128
    %1421 = vxpose.xlu0.b32.cont [12/16] 0.0, 128
    %1422 = vxpose.xlu0.b32.cont [13/16] 0.0, 128
    %1423 = vxpose.xlu0.b32.cont [14/16] 0.0, 128
    %1424 = vxpose.xlu0.b32.cont [15/16] 0.0, 128
    %1425 = vxpose.xlu0.b32.end [16/16] 0.0, 128
    %v1426 = vpop.trf.xlu0
    %v1427 = vpop.trf.xlu0
    %v1428 = vpop.trf.xlu0
    %v1429 = vpop.trf.xlu0
    %v1430 = vpop.trf.xlu0
    %v1431 = vpop.trf.xlu0
    %v1432 = vpop.trf.xlu0
    %v1433 = vpop.trf.xlu0
    %v1434 = vpop.trf.xlu0
    %v1435 = vpop.trf.xlu0
    %v1436 = vpop.trf.xlu0
    %v1437 = vpop.trf.xlu0
    %v1438 = vpop.trf.xlu0
    %v1439 = vpop.trf.xlu0
    %v1440 = vpop.trf.xlu0
    %v1441 = vpop.trf.xlu0
    %v1443 = vsel %vm58, %v1426, 0
    %1445 = vmatprep.subr.mxu0 0.0
    %1446 = vmatpush1.msra.mxu0 0.0
    %1447 = vmatprep.subr.mxu0 0.0
    %1448 = vmatpush1.msra.mxu0 0.0
    %1449 = vmatprep.subr.mxu0 0.0
    %1450 = vmatpush1.msra.mxu0 0.0
    %1451 = vmatprep.subr.mxu0 0.0
    %1452 = vmatpush1.msra.mxu0 0.0
    %1453 = vmatprep.subr.mxu0 0.0
    %1454 = vmatpush1.msra.mxu0 0.0
    %1455 = vmatprep.subr.mxu0 0.0
    %1456 = vmatpush1.msra.mxu0 0.0
    %1457 = vmatprep.subr.mxu0 0.0
    %1458 = vmatpush1.msra.mxu0 0.0
    %1459 = vmatprep.subr.mxu0 0.0
    %1460 = vmatpush1.msra.mxu0 0.0
    %1461 = vmatprep.subr.mxu0 0.0
    %1462 = vmatpush1.msra.mxu0 0.0
    %1463 = vmatprep.subr.mxu0 0.0
    %1464 = vmatpush1.msra.mxu0 0.0
    %1465 = vmatprep.subr.mxu0 0.0
    %1466 = vmatpush1.msra.mxu0 0.0
    %1467 = vmatprep.subr.mxu0 0.0
    %1468 = vmatpush1.msra.mxu0 0.0
    %1469 = vmatprep.subr.mxu0 0.0
    %1470 = vmatpush1.msra.mxu0 0.0
    %1471 = vmatprep.subr.mxu0 0.0
    %1472 = vmatpush1.msra.mxu0 0.0
    %1473 = vmatprep.subr.mxu0 0.0
    %1474 = vmatpush1.msra.mxu0 0.0
    %1475 = vmatprep.subr.mxu0 0.0
    %1476 = vmatpush1.msra.mxu0 %v1407
    %1477 = vmatprep.subr.mxu0 0.0
    %1478 = vmatpush2.msra.mxu0 0.0
    %1479 = vmatprep.subr.mxu0 0.0
    %1480 = vmatpush2.msra.mxu0 0.0
    %1481 = vmatprep.subr.mxu0 0.0
    %1482 = vmatpush2.msra.mxu0 0.0
    %1483 = vmatprep.subr.mxu0 0.0
    %1484 = vmatpush2.msra.mxu0 0.0
    %1485 = vmatprep.subr.mxu0 0.0
    %1486 = vmatpush2.msra.mxu0 0.0
    %1487 = vmatprep.subr.mxu0 0.0
    %1488 = vmatpush2.msra.mxu0 0.0
    %1489 = vmatprep.subr.mxu0 0.0
    %1490 = vmatpush2.msra.mxu0 0.0
    %1491 = vmatprep.subr.mxu0 0.0
    %1492 = vmatpush2.msra.mxu0 0.0
    %1493 = vmatprep.subr.mxu0 0.0
    %1494 = vmatpush2.msra.mxu0 0.0
    %1495 = vmatprep.subr.mxu0 0.0
    %1496 = vmatpush2.msra.mxu0 0.0
    %1497 = vmatprep.subr.mxu0 0.0
    %1498 = vmatpush2.msra.mxu0 0.0
    %1499 = vmatprep.subr.mxu0 0.0
    %1500 = vmatpush2.msra.mxu0 0.0
    %1501 = vmatprep.subr.mxu0 0.0
    %1502 = vmatpush2.msra.mxu0 0.0
    %1503 = vmatprep.subr.mxu0 0.0
    %1504 = vmatpush2.msra.mxu0 0.0
    %1505 = vmatprep.subr.mxu0 0.0
    %1506 = vmatpush2.msra.mxu0 0.0
    %1507 = vmatprep.subr.mxu0 0.0
    %1508 = vmatpush2.msra.mxu0 0.0
    %1509 = vmatprep.mubr.f32.mxu0 0.0
    %1510 = vmatmul.mubr.f32.gmra.mxu0 %v1443
    %v1511 = vpop.f32.mrf.mxu0
    %v1512 = vadd.f32 %v597, %v1511
    %v1513 = vpop.f32.mrf.mxu0
    %1514 = vdwg.mxu0
    %1515 = vxpose.xlu0.b32.start [1/16] %v1332, 128
    %1516 = vxpose.xlu0.b32.cont [2/16] 0.0, 128
    %1517 = vxpose.xlu0.b32.cont [3/16] 0.0, 128
    %1518 = vxpose.xlu0.b32.cont [4/16] 0.0, 128
    %1519 = vxpose.xlu0.b32.cont [5/16] 0.0, 128
    %1520 = vxpose.xlu0.b32.cont [6/16] 0.0, 128
    %1521 = vxpose.xlu0.b32.cont [7/16] 0.0, 128
    %1522 = vxpose.xlu0.b32.cont [8/16] 0.0, 128
    %1523 = vxpose.xlu0.b32.cont [9/16] 0.0, 128
    %1524 = vxpose.xlu0.b32.cont [10/16] 0.0, 128
    %1525 = vxpose.xlu0.b32.cont [11/16] 0.0, 128
    %1526 = vxpose.xlu0.b32.cont [12/16] 0.0, 128
    %1527 = vxpose.xlu0.b32.cont [13/16] 0.0, 128
    %1528 = vxpose.xlu0.b32.cont [14/16] 0.0, 128
    %1529 = vxpose.xlu0.b32.cont [15/16] 0.0, 128
    %1530 = vxpose.xlu0.b32.end [16/16] 0.0, 128
    %v1531 = vpop.trf.xlu0
    %v1532 = vpop.trf.xlu0
    %v1533 = vpop.trf.xlu0
    %v1534 = vpop.trf.xlu0
    %v1535 = vpop.trf.xlu0
    %v1536 = vpop.trf.xlu0
    %v1537 = vpop.trf.xlu0
    %v1538 = vpop.trf.xlu0
    %v1539 = vpop.trf.xlu0
    %v1540 = vpop.trf.xlu0
    %v1541 = vpop.trf.xlu0
    %v1542 = vpop.trf.xlu0
    %v1543 = vpop.trf.xlu0
    %v1544 = vpop.trf.xlu0
    %v1545 = vpop.trf.xlu0
    %v1546 = vpop.trf.xlu0
    %v1548 = vsel %vm58, %v1531, 0
    %1550 = vmatprep.subr.mxu0 0.0
    %1551 = vmatpush1.msra.mxu0 0.0
    %1552 = vmatprep.subr.mxu0 0.0
    %1553 = vmatpush1.msra.mxu0 0.0
    %1554 = vmatprep.subr.mxu0 0.0
    %1555 = vmatpush1.msra.mxu0 0.0
    %1556 = vmatprep.subr.mxu0 0.0
    %1557 = vmatpush1.msra.mxu0 0.0
    %1558 = vmatprep.subr.mxu0 0.0
    %1559 = vmatpush1.msra.mxu0 0.0
    %1560 = vmatprep.subr.mxu0 0.0
    %1561 = vmatpush1.msra.mxu0 0.0
    %1562 = vmatprep.subr.mxu0 0.0
    %1563 = vmatpush1.msra.mxu0 0.0
    %1564 = vmatprep.subr.mxu0 0.0
    %1565 = vmatpush1.msra.mxu0 0.0
    %1566 = vmatprep.subr.mxu0 0.0
    %1567 = vmatpush1.msra.mxu0 0.0
    %1568 = vmatprep.subr.mxu0 0.0
    %1569 = vmatpush1.msra.mxu0 0.0
    %1570 = vmatprep.subr.mxu0 0.0
    %1571 = vmatpush1.msra.mxu0 0.0
    %1572 = vmatprep.subr.mxu0 0.0
    %1573 = vmatpush1.msra.mxu0 0.0
    %1574 = vmatprep.subr.mxu0 0.0
    %1575 = vmatpush1.msra.mxu0 0.0
    %1576 = vmatprep.subr.mxu0 0.0
    %1577 = vmatpush1.msra.mxu0 0.0
    %1578 = vmatprep.subr.mxu0 0.0
    %1579 = vmatpush1.msra.mxu0 0.0
    %1580 = vmatprep.subr.mxu0 0.0
    %1581 = vmatpush1.msra.mxu0 %v1407
    %1582 = vmatprep.subr.mxu0 0.0
    %1583 = vmatpush2.msra.mxu0 0.0
    %1584 = vmatprep.subr.mxu0 0.0
    %1585 = vmatpush2.msra.mxu0 0.0
    %1586 = vmatprep.subr.mxu0 0.0
    %1587 = vmatpush2.msra.mxu0 0.0
    %1588 = vmatprep.subr.mxu0 0.0
    %1589 = vmatpush2.msra.mxu0 0.0
    %1590 = vmatprep.subr.mxu0 0.0
    %1591 = vmatpush2.msra.mxu0 0.0
    %1592 = vmatprep.subr.mxu0 0.0
    %1593 = vmatpush2.msra.mxu0 0.0
    %1594 = vmatprep.subr.mxu0 0.0
    %1595 = vmatpush2.msra.mxu0 0.0
    %1596 = vmatprep.subr.mxu0 0.0
    %1597 = vmatpush2.msra.mxu0 0.0
    %1598 = vmatprep.subr.mxu0 0.0
    %1599 = vmatpush2.msra.mxu0 0.0
    %1600 = vmatprep.subr.mxu0 0.0
    %1601 = vmatpush2.msra.mxu0 0.0
    %1602 = vmatprep.subr.mxu0 0.0
    %1603 = vmatpush2.msra.mxu0 0.0
    %1604 = vmatprep.subr.mxu0 0.0
    %1605 = vmatpush2.msra.mxu0 0.0
    %1606 = vmatprep.subr.mxu0 0.0
    %1607 = vmatpush2.msra.mxu0 0.0
    %1608 = vmatprep.subr.mxu0 0.0
    %1609 = vmatpush2.msra.mxu0 0.0
    %1610 = vmatprep.subr.mxu0 0.0
    %1611 = vmatpush2.msra.mxu0 0.0
    %1612 = vmatprep.subr.mxu0 0.0
    %1613 = vmatpush2.msra.mxu0 0.0
    %1614 = vmatprep.mubr.f32.mxu0 0.0
    %1615 = vmatmul.mubr.f32.gmra.mxu0 %v1548
    %v1616 = vpop.f32.mrf.mxu0
    %v1617 = vadd.f32 %v597, %v1616
    %v1618 = vpop.f32.mrf.mxu0
    %1619 = vdwg.mxu0
    %1621 = vrot.lane.b32.xlu0 %v1512, 16
    %v1622 = vpop.permute.xlu0 %1621
    %vm1624 = vcmask 195712
    %1625 = vst.msk [vmem:[#allocation2] sm:$0xff] %vm1624, %v1622
    %1627 = vrot.lane.b32.xlu0 %v1617, 16
    %v1628 = vpop.permute.xlu0 %1627
    %1630 = vst.msk [vmem:[#allocation2 + $0x8] sm:$0xff] %vm1624, %v1628
    %vm1631 = vcmask 523648
    %v1632 = vsel %vm1631, %v410, -inf
    %1633 = vmax.xlane.f32.xlu0 %v1632
    %v1634 = vpop.xlane.xlu0 %1633
    %v1635 = vrot.slane %v1634, 4
    %v1636 = vmax.f32 %v1634, %v1635
    %v1637 = vrot.slane %v1636, 2
    %v1638 = vmax.f32 %v1636, %v1637
    %v1639 = vrot.slane %v1638, 1
    %v1640 = vmax.f32 %v1638, %v1639
    %s1641 = vtos %v1640
    %v1642 = vstv %s1641
    %v1643 = vsub.f32 %v410, %v1642
    %v1644 = vmul.f32 %v1643, 1.442695
    %v1645 = vpow.pop %v1644
    %v1646 = vsel %vm1631, %v1645, 0.0
    %v1647 = vrot.slane %v1646, 4
    %v1648 = vadd.f32 %v1646, %v1647
    %v1649 = vrot.slane %v1648, 2
    %v1650 = vadd.f32 %v1648, %v1649
    %v1651 = vrot.slane %v1650, 1
    %v1652 = vadd.f32 %v1650, %v1651
    %1654 = vrot.lane.b32.xlu0 %v1645, 80
    %v1655 = vpop.permute.xlu0 %1654
    %v1657 = vsel %vm413, %v1655, 0.0
    %1658 = vadd.xlane.f32.xlu0 %v1657
    %v1659 = vpop.xlane.xlu0 %1658
    %v1660 = vrcp.pop %v1652
    %v1661 = vmul.f32 %v1652, %v1660
    %v1662 = vsub.f32 2.0, %v1661
    %v1663 = vmul.f32 %v1660, %v1662
    %v1664 = vrcp.pop %v1659
    %v1665 = vmul.f32 %v1659, %v1664
    %v1666 = vsub.f32 2.0, %v1665
    %v1667 = vmul.f32 %v1664, %v1666
    %v1668 = vmul.f32 %v1645, %v1663
    %v1669 = vmul.f32 %v1645, %v1667
    %1671 = vrot.lane.b32.xlu0 %v1668, 80
    %v1672 = vpop.permute.xlu0 %1671
    %v1673 = vsel %vm413, %v1672, 0
    %1675 = vmatprep.subr.mxu0 0.0
    %1676 = vmatpush1.msra.mxu0 0.0
    %1677 = vmatprep.subr.mxu0 0.0
    %1678 = vmatpush1.msra.mxu0 0.0
    %1679 = vmatprep.subr.mxu0 0.0
    %1680 = vmatpush1.msra.mxu0 0.0
    %1681 = vmatprep.subr.mxu0 0.0
    %1682 = vmatpush1.msra.mxu0 0.0
    %1683 = vmatprep.subr.mxu0 0.0
    %1684 = vmatpush1.msra.mxu0 0.0
    %1685 = vmatprep.subr.mxu0 0.0
    %1686 = vmatpush1.msra.mxu0 0.0
    %1687 = vmatprep.subr.mxu0 0.0
    %1688 = vmatpush1.msra.mxu0 0.0
    %1689 = vmatprep.subr.mxu0 0.0
    %1690 = vmatpush1.msra.mxu0 0.0
    %1691 = vmatprep.subr.mxu0 0.0
    %1692 = vmatpush1.msra.mxu0 0.0
    %1693 = vmatprep.subr.mxu0 0.0
    %1694 = vmatpush1.msra.mxu0 0.0
    %1695 = vmatprep.subr.mxu0 0.0
    %1696 = vmatpush1.msra.mxu0 0.0
    %1697 = vmatprep.subr.mxu0 0.0
    %1698 = vmatpush1.msra.mxu0 0.0
    %1699 = vmatprep.subr.mxu0 0.0
    %1700 = vmatpush1.msra.mxu0 0.0
    %1701 = vmatprep.subr.mxu0 0.0
    %1702 = vmatpush1.msra.mxu0 0.0
    %1703 = vmatprep.subr.mxu0 0.0
    %1704 = vmatpush1.msra.mxu0 %v289
    %1705 = vmatprep.subr.mxu0 0.0
    %1706 = vmatpush1.msra.mxu0 %v284
    %1707 = vmatprep.subr.mxu0 0.0
    %1708 = vmatpush2.msra.mxu0 0.0
    %1709 = vmatprep.subr.mxu0 0.0
    %1710 = vmatpush2.msra.mxu0 0.0
    %1711 = vmatprep.subr.mxu0 0.0
    %1712 = vmatpush2.msra.mxu0 0.0
    %1713 = vmatprep.subr.mxu0 0.0
    %1714 = vmatpush2.msra.mxu0 0.0
    %1715 = vmatprep.subr.mxu0 0.0
    %1716 = vmatpush2.msra.mxu0 0.0
    %1717 = vmatprep.subr.mxu0 0.0
    %1718 = vmatpush2.msra.mxu0 0.0
    %1719 = vmatprep.subr.mxu0 0.0
    %1720 = vmatpush2.msra.mxu0 0.0
    %1721 = vmatprep.subr.mxu0 0.0
    %1722 = vmatpush2.msra.mxu0 0.0
    %1723 = vmatprep.subr.mxu0 0.0
    %1724 = vmatpush2.msra.mxu0 0.0
    %1725 = vmatprep.subr.mxu0 0.0
    %1726 = vmatpush2.msra.mxu0 0.0
    %1727 = vmatprep.subr.mxu0 0.0
    %1728 = vmatpush2.msra.mxu0 0.0
    %1729 = vmatprep.subr.mxu0 0.0
    %1730 = vmatpush2.msra.mxu0 0.0
    %1731 = vmatprep.subr.mxu0 0.0
    %1732 = vmatpush2.msra.mxu0 0.0
    %1733 = vmatprep.subr.mxu0 0.0
    %1734 = vmatpush2.msra.mxu0 0.0
    %1735 = vmatprep.subr.mxu0 0.0
    %1736 = vmatpush2.msra.mxu0 0.0
    %1737 = vmatprep.subr.mxu0 0.0
    %1738 = vmatpush2.msra.mxu0 0.0
    %1739 = vmatprep.mubr.f32.mxu0 0.0
    %1740 = vmatmul.mubr.f32.gmra.mxu0 %v1673
    %v1741 = vpop.f32.mrf.mxu0
    %v1742 = vadd.f32 0.0, %v1741
    %v1743 = vpop.f32.mrf.mxu0
    %1744 = vdwg.mxu0
    %1746 = vrot.lane.b32.xlu0 %v1669, 80
    %v1747 = vpop.permute.xlu0 %1746
    %v1748 = vsel %vm413, %v1747, 0
    %1750 = vmatprep.subr.mxu0 0.0
    %1751 = vmatpush1.msra.mxu0 0.0
    %1752 = vmatprep.subr.mxu0 0.0
    %1753 = vmatpush1.msra.mxu0 0.0
    %1754 = vmatprep.subr.mxu0 0.0
    %1755 = vmatpush1.msra.mxu0 0.0
    %1756 = vmatprep.subr.mxu0 0.0
    %1757 = vmatpush1.msra.mxu0 0.0
    %1758 = vmatprep.subr.mxu0 0.0
    %1759 = vmatpush1.msra.mxu0 0.0
    %1760 = vmatprep.subr.mxu0 0.0
    %1761 = vmatpush1.msra.mxu0 0.0
    %1762 = vmatprep.subr.mxu0 0.0
    %1763 = vmatpush1.msra.mxu0 0.0
    %1764 = vmatprep.subr.mxu0 0.0
    %1765 = vmatpush1.msra.mxu0 0.0
    %1766 = vmatprep.subr.mxu0 0.0
    %1767 = vmatpush1.msra.mxu0 0.0
    %1768 = vmatprep.subr.mxu0 0.0
    %1769 = vmatpush1.msra.mxu0 0.0
    %1770 = vmatprep.subr.mxu0 0.0
    %1771 = vmatpush1.msra.mxu0 0.0
    %1772 = vmatprep.subr.mxu0 0.0
    %1773 = vmatpush1.msra.mxu0 0.0
    %1774 = vmatprep.subr.mxu0 0.0
    %1775 = vmatpush1.msra.mxu0 0.0
    %1776 = vmatprep.subr.mxu0 0.0
    %1777 = vmatpush1.msra.mxu0 0.0
    %1778 = vmatprep.subr.mxu0 0.0
    %1779 = vmatpush1.msra.mxu0 %v36
    %1780 = vmatprep.subr.mxu0 0.0
    %1781 = vmatpush1.msra.mxu0 %v35
    %1782 = vmatprep.subr.mxu0 0.0
    %1783 = vmatpush2.msra.mxu0 0.0
    %1784 = vmatprep.subr.mxu0 0.0
    %1785 = vmatpush2.msra.mxu0 0.0
    %1786 = vmatprep.subr.mxu0 0.0
    %1787 = vmatpush2.msra.mxu0 0.0
    %1788 = vmatprep.subr.mxu0 0.0
    %1789 = vmatpush2.msra.mxu0 0.0
    %1790 = vmatprep.subr.mxu0 0.0
    %1791 = vmatpush2.msra.mxu0 0.0
    %1792 = vmatprep.subr.mxu0 0.0
    %1793 = vmatpush2.msra.mxu0 0.0
    %1794 = vmatprep.subr.mxu0 0.0
    %1795 = vmatpush2.msra.mxu0 0.0
    %1796 = vmatprep.subr.mxu0 0.0
    %1797 = vmatpush2.msra.mxu0 0.0
    %1798 = vmatprep.subr.mxu0 0.0
    %1799 = vmatpush2.msra.mxu0 0.0
    %1800 = vmatprep.subr.mxu0 0.0
    %1801 = vmatpush2.msra.mxu0 0.0
    %1802 = vmatprep.subr.mxu0 0.0
    %1803 = vmatpush2.msra.mxu0 0.0
    %1804 = vmatprep.subr.mxu0 0.0
    %1805 = vmatpush2.msra.mxu0 0.0
    %1806 = vmatprep.subr.mxu0 0.0
    %1807 = vmatpush2.msra.mxu0 0.0
    %1808 = vmatprep.subr.mxu0 0.0
    %1809 = vmatpush2.msra.mxu0 0.0
    %1810 = vmatprep.subr.mxu0 0.0
    %1811 = vmatpush2.msra.mxu0 0.0
    %1812 = vmatprep.subr.mxu0 0.0
    %1813 = vmatpush2.msra.mxu0 0.0
    %1814 = vmatprep.mubr.f32.mxu0 0.0
    %1815 = vmatmul.mubr.f32.gmra.mxu0 %v1748
    %v1816 = vpop.f32.mrf.mxu0
    %v1817 = vadd.f32 0.0, %v1816
    %v1818 = vpop.f32.mrf.mxu0
    %1819 = vdwg.mxu0
    %1820 = vxpose.xlu0.b32.start [1/16] %v43, 128
    %1821 = vxpose.xlu0.b32.cont [2/16] 0.0, 128
    %1822 = vxpose.xlu0.b32.cont [3/16] 0.0, 128
    %1823 = vxpose.xlu0.b32.cont [4/16] 0.0, 128
    %1824 = vxpose.xlu0.b32.cont [5/16] 0.0, 128
    %1825 = vxpose.xlu0.b32.cont [6/16] 0.0, 128
    %1826 = vxpose.xlu0.b32.cont [7/16] 0.0, 128
    %1827 = vxpose.xlu0.b32.cont [8/16] 0.0, 128
    %1828 = vxpose.xlu0.b32.cont [9/16] 0.0, 128
    %1829 = vxpose.xlu0.b32.cont [10/16] 0.0, 128
    %1830 = vxpose.xlu0.b32.cont [11/16] 0.0, 128
    %1831 = vxpose.xlu0.b32.cont [12/16] 0.0, 128
    %1832 = vxpose.xlu0.b32.cont [13/16] 0.0, 128
    %1833 = vxpose.xlu0.b32.cont [14/16] 0.0, 128
    %1834 = vxpose.xlu0.b32.cont [15/16] 0.0, 128
    %1835 = vxpose.xlu0.b32.end [16/16] 0.0, 128
    %v1836 = vpop.trf.xlu0
    %v1837 = vpop.trf.xlu0
    %v1838 = vpop.trf.xlu0
    %v1839 = vpop.trf.xlu0
    %v1840 = vpop.trf.xlu0
    %v1841 = vpop.trf.xlu0
    %v1842 = vpop.trf.xlu0
    %v1843 = vpop.trf.xlu0
    %v1844 = vpop.trf.xlu0
    %v1845 = vpop.trf.xlu0
    %v1846 = vpop.trf.xlu0
    %v1847 = vpop.trf.xlu0
    %v1848 = vpop.trf.xlu0
    %v1849 = vpop.trf.xlu0
    %v1850 = vpop.trf.xlu0
    %v1851 = vpop.trf.xlu0
    %v1853 = vsel %vm58, %v1836, 0
    %1855 = vmatprep.subr.mxu0 0.0
    %1856 = vmatpush1.msra.mxu0 0.0
    %1857 = vmatprep.subr.mxu0 0.0
    %1858 = vmatpush1.msra.mxu0 0.0
    %1859 = vmatprep.subr.mxu0 0.0
    %1860 = vmatpush1.msra.mxu0 0.0
    %1861 = vmatprep.subr.mxu0 0.0
    %1862 = vmatpush1.msra.mxu0 0.0
    %1863 = vmatprep.subr.mxu0 0.0
    %1864 = vmatpush1.msra.mxu0 0.0
    %1865 = vmatprep.subr.mxu0 0.0
    %1866 = vmatpush1.msra.mxu0 0.0
    %1867 = vmatprep.subr.mxu0 0.0
    %1868 = vmatpush1.msra.mxu0 0.0
    %1869 = vmatprep.subr.mxu0 0.0
    %1870 = vmatpush1.msra.mxu0 0.0
    %1871 = vmatprep.subr.mxu0 0.0
    %1872 = vmatpush1.msra.mxu0 0.0
    %1873 = vmatprep.subr.mxu0 0.0
    %1874 = vmatpush1.msra.mxu0 0.0
    %1875 = vmatprep.subr.mxu0 0.0
    %1876 = vmatpush1.msra.mxu0 0.0
    %1877 = vmatprep.subr.mxu0 0.0
    %1878 = vmatpush1.msra.mxu0 0.0
    %1879 = vmatprep.subr.mxu0 0.0
    %1880 = vmatpush1.msra.mxu0 0.0
    %1881 = vmatprep.subr.mxu0 0.0
    %1882 = vmatpush1.msra.mxu0 0.0
    %1883 = vmatprep.subr.mxu0 0.0
    %1884 = vmatpush1.msra.mxu0 0.0
    %1885 = vmatprep.subr.mxu0 0.0
    %1886 = vmatpush1.msra.mxu0 %v1817
    %1887 = vmatprep.subr.mxu0 0.0
    %1888 = vmatpush2.msra.mxu0 0.0
    %1889 = vmatprep.subr.mxu0 0.0
    %1890 = vmatpush2.msra.mxu0 0.0
    %1891 = vmatprep.subr.mxu0 0.0
    %1892 = vmatpush2.msra.mxu0 0.0
    %1893 = vmatprep.subr.mxu0 0.0
    %1894 = vmatpush2.msra.mxu0 0.0
    %1895 = vmatprep.subr.mxu0 0.0
    %1896 = vmatpush2.msra.mxu0 0.0
    %1897 = vmatprep.subr.mxu0 0.0
    %1898 = vmatpush2.msra.mxu0 0.0
    %1899 = vmatprep.subr.mxu0 0.0
    %1900 = vmatpush2.msra.mxu0 0.0
    %1901 = vmatprep.subr.mxu0 0.0
    %1902 = vmatpush2.msra.mxu0 0.0
    %1903 = vmatprep.subr.mxu0 0.0
    %1904 = vmatpush2.msra.mxu0 0.0
    %1905 = vmatprep.subr.mxu0 0.0
    %1906 = vmatpush2.msra.mxu0 0.0
    %1907 = vmatprep.subr.mxu0 0.0
    %1908 = vmatpush2.msra.mxu0 0.0
    %1909 = vmatprep.subr.mxu0 0.0
    %1910 = vmatpush2.msra.mxu0 0.0
    %1911 = vmatprep.subr.mxu0 0.0
    %1912 = vmatpush2.msra.mxu0 0.0
    %1913 = vmatprep.subr.mxu0 0.0
    %1914 = vmatpush2.msra.mxu0 0.0
    %1915 = vmatprep.subr.mxu0 0.0
    %1916 = vmatpush2.msra.mxu0 0.0
    %1917 = vmatprep.subr.mxu0 0.0
    %1918 = vmatpush2.msra.mxu0 0.0
    %1919 = vmatprep.mubr.f32.mxu0 0.0
    %1920 = vmatmul.mubr.f32.gmra.mxu0 %v1853
    %v1921 = vpop.f32.mrf.mxu0
    %v1922 = vadd.f32 %v597, %v1921
    %v1923 = vpop.f32.mrf.mxu0
    %1924 = vdwg.mxu0
    %1925 = vxpose.xlu0.b32.start [1/16] %v1742, 128
    %1926 = vxpose.xlu0.b32.cont [2/16] 0.0, 128
    %1927 = vxpose.xlu0.b32.cont [3/16] 0.0, 128
    %1928 = vxpose.xlu0.b32.cont [4/16] 0.0, 128
    %1929 = vxpose.xlu0.b32.cont [5/16] 0.0, 128
    %1930 = vxpose.xlu0.b32.cont [6/16] 0.0, 128
    %1931 = vxpose.xlu0.b32.cont [7/16] 0.0, 128
    %1932 = vxpose.xlu0.b32.cont [8/16] 0.0, 128
    %1933 = vxpose.xlu0.b32.cont [9/16] 0.0, 128
    %1934 = vxpose.xlu0.b32.cont [10/16] 0.0, 128
    %1935 = vxpose.xlu0.b32.cont [11/16] 0.0, 128
    %1936 = vxpose.xlu0.b32.cont [12/16] 0.0, 128
    %1937 = vxpose.xlu0.b32.cont [13/16] 0.0, 128
    %1938 = vxpose.xlu0.b32.cont [14/16] 0.0, 128
    %1939 = vxpose.xlu0.b32.cont [15/16] 0.0, 128
    %1940 = vxpose.xlu0.b32.end [16/16] 0.0, 128
    %v1941 = vpop.trf.xlu0
    %v1942 = vpop.trf.xlu0
    %v1943 = vpop.trf.xlu0
    %v1944 = vpop.trf.xlu0
    %v1945 = vpop.trf.xlu0
    %v1946 = vpop.trf.xlu0
    %v1947 = vpop.trf.xlu0
    %v1948 = vpop.trf.xlu0
    %v1949 = vpop.trf.xlu0
    %v1950 = vpop.trf.xlu0
    %v1951 = vpop.trf.xlu0
    %v1952 = vpop.trf.xlu0
    %v1953 = vpop.trf.xlu0
    %v1954 = vpop.trf.xlu0
    %v1955 = vpop.trf.xlu0
    %v1956 = vpop.trf.xlu0
    %v1958 = vsel %vm58, %v1941, 0
    %1960 = vmatprep.subr.mxu0 0.0
    %1961 = vmatpush1.msra.mxu0 0.0
    %1962 = vmatprep.subr.mxu0 0.0
    %1963 = vmatpush1.msra.mxu0 0.0
    %1964 = vmatprep.subr.mxu0 0.0
    %1965 = vmatpush1.msra.mxu0 0.0
    %1966 = vmatprep.subr.mxu0 0.0
    %1967 = vmatpush1.msra.mxu0 0.0
    %1968 = vmatprep.subr.mxu0 0.0
    %1969 = vmatpush1.msra.mxu0 0.0
    %1970 = vmatprep.subr.mxu0 0.0
    %1971 = vmatpush1.msra.mxu0 0.0
    %1972 = vmatprep.subr.mxu0 0.0
    %1973 = vmatpush1.msra.mxu0 0.0
    %1974 = vmatprep.subr.mxu0 0.0
    %1975 = vmatpush1.msra.mxu0 0.0
    %1976 = vmatprep.subr.mxu0 0.0
    %1977 = vmatpush1.msra.mxu0 0.0
    %1978 = vmatprep.subr.mxu0 0.0
    %1979 = vmatpush1.msra.mxu0 0.0
    %1980 = vmatprep.subr.mxu0 0.0
    %1981 = vmatpush1.msra.mxu0 0.0
    %1982 = vmatprep.subr.mxu0 0.0
    %1983 = vmatpush1.msra.mxu0 0.0
    %1984 = vmatprep.subr.mxu0 0.0
    %1985 = vmatpush1.msra.mxu0 0.0
    %1986 = vmatprep.subr.mxu0 0.0
    %1987 = vmatpush1.msra.mxu0 0.0
    %1988 = vmatprep.subr.mxu0 0.0
    %1989 = vmatpush1.msra.mxu0 0.0
    %1990 = vmatprep.subr.mxu0 0.0
    %1991 = vmatpush1.msra.mxu0 %v1817
    %1992 = vmatprep.subr.mxu0 0.0
    %1993 = vmatpush2.msra.mxu0 0.0
    %1994 = vmatprep.subr.mxu0 0.0
    %1995 = vmatpush2.msra.mxu0 0.0
    %1996 = vmatprep.subr.mxu0 0.0
    %1997 = vmatpush2.msra.mxu0 0.0
    %1998 = vmatprep.subr.mxu0 0.0
    %1999 = vmatpush2.msra.mxu0 0.0
    %2000 = vmatprep.subr.mxu0 0.0
    %2001 = vmatpush2.msra.mxu0 0.0
    %2002 = vmatprep.subr.mxu0 0.0
    %2003 = vmatpush2.msra.mxu0 0.0
    %2004 = vmatprep.subr.mxu0 0.0
    %2005 = vmatpush2.msra.mxu0 0.0
    %2006 = vmatprep.subr.mxu0 0.0
    %2007 = vmatpush2.msra.mxu0 0.0
    %2008 = vmatprep.subr.mxu0 0.0
    %2009 = vmatpush2.msra.mxu0 0.0
    %2010 = vmatprep.subr.mxu0 0.0
    %2011 = vmatpush2.msra.mxu0 0.0
    %2012 = vmatprep.subr.mxu0 0.0
    %2013 = vmatpush2.msra.mxu0 0.0
    %2014 = vmatprep.subr.mxu0 0.0
    %2015 = vmatpush2.msra.mxu0 0.0
    %2016 = vmatprep.subr.mxu0 0.0
    %2017 = vmatpush2.msra.mxu0 0.0
    %2018 = vmatprep.subr.mxu0 0.0
    %2019 = vmatpush2.msra.mxu0 0.0
    %2020 = vmatprep.subr.mxu0 0.0
    %2021 = vmatpush2.msra.mxu0 0.0
    %2022 = vmatprep.subr.mxu0 0.0
    %2023 = vmatpush2.msra.mxu0 0.0
    %2024 = vmatprep.mubr.f32.mxu0 0.0
    %2025 = vmatmul.mubr.f32.gmra.mxu0 %v1958
    %v2026 = vpop.f32.mrf.mxu0
    %v2027 = vadd.f32 %v597, %v2026
    %v2028 = vpop.f32.mrf.mxu0
    %2029 = vdwg.mxu0
    %2031 = vrot.lane.b32.xlu0 %v1922, 24
    %v2032 = vpop.permute.xlu0 %2031
    %vm2034 = vcmask 261312
    %2035 = vst.msk [vmem:[#allocation2] sm:$0xff] %vm2034, %v2032
    %2037 = vrot.lane.b32.xlu0 %v2027, 24
    %v2038 = vpop.permute.xlu0 %2037
    %2040 = vst.msk [vmem:[#allocation2 + $0x8] sm:$0xff] %vm2034, %v2038
    // Predicated region
    $region34: #{tpu_custom_call.1} parent=1 // pred_check
      _
    $region35: #{tpu_custom_call.1} parent=1 // pred_check_branch
      %2042 = sbr.rel (0) target = $region37
    $region36: #{tpu_custom_call.1} parent=1 // pred_region
      %s2044 = ssub.s32 256, 256
      %2045 = vsyncadd [#allocation3], %s2044
      %s2046 = sshll.u32 [#allocation2], 4
      %s2047 = int_to_ptr.vmem [resolvable:$true] %s2046
      %2052 = dma.vmem_to_hbm [thread:$0]  %s2047, 256, %s8, [#allocation3], 128, 128, 8
    $region37: #{tpu_custom_call.1} parent=1 // pred_fallthru
      _
    // Predicated region
    $region38: #{tpu_custom_call.1} parent=1 // pred_check
      _
    $region39: #{tpu_custom_call.1} parent=1 // pred_check_branch
      %2054 = sbr.rel (0) target = $region41
    $region40: #{tpu_custom_call.1} parent=1 // pred_region
      %2055 = dma.done [#allocation3], 256
    $region41: #{tpu_custom_call.1} parent=1 // pred_fallthru
      _
    %2056 = vsyncpa [#allocation3], 1

</llo_original>
